<compile_context>
chip_gen: v6e
topology: v6e:2x2x1
jax: 0.10.0
libtpu: 0.0.40
codegen_flags: <defaults>
</compile_context>

<pallas_src>
import math
import functools

import jax
import jax.numpy as jnp
from jax import lax
from jax.experimental import pallas as pl
from jax.experimental.pallas import tpu as pltpu


# ----------------------------- Encoder kernel -------------------------------

def _encoder_kernel(x_ref, fc1_w_ref, fc1_b_ref, wih_ref, whh_ref, b_ref,
                    wk_ref, bk_ref, enc_out_ref, k_out_ref, h_sc, c_sc,
                    *, num_layers):
    H = h_sc.shape[-1]

    @pl.when(pl.program_id(0) == 0)
    def _():
        h_sc[...] = jnp.zeros_like(h_sc)
        c_sc[...] = jnp.zeros_like(c_sc)

    # fc1 folded into the time-blocked input (bf16 MXU operands, f32 accumulate).
    x = (jnp.dot(x_ref[...].astype(jnp.bfloat16), fc1_w_ref[...],
                 preferred_element_type=jnp.float32) + fc1_b_ref[...])

    # Stacked LSTM layers, time-synchronous; PyTorch gate order i, f, g, o.
    for l in range(num_layers):
        gates = (jnp.dot(x.astype(jnp.bfloat16), wih_ref[l],
                         preferred_element_type=jnp.float32)
                 + jnp.dot(h_sc[l].astype(jnp.bfloat16), whh_ref[l],
                           preferred_element_type=jnp.float32)
                 + b_ref[l])
        i = jax.nn.sigmoid(gates[:, 0 * H:1 * H])
        f = jax.nn.sigmoid(gates[:, 1 * H:2 * H])
        g = jnp.tanh(gates[:, 2 * H:3 * H])
        o = jax.nn.sigmoid(gates[:, 3 * H:4 * H])
        c_new = f * c_sc[l] + i * g
        h_new = o * jnp.tanh(c_new)
        h_sc[l] = h_new
        c_sc[l] = c_new
        x = h_new

    enc_out_ref[...] = x
    # Attention key projection hoisted out of the per-decode-step path (bf16 K output).
    k_out_ref[...] = (jnp.dot(x.astype(jnp.bfloat16), wk_ref[...],
                              preferred_element_type=jnp.float32)
                      + bk_ref[...]).astype(k_out_ref.dtype)


def encoder_forward(X, params, *, hidden_dim, num_enc_layers):
    B, L, D = X.shape
    H = hidden_dim
    x_t = jnp.transpose(X, (1, 0, 2))                       # (L, B, D)

    t_map = lambda t: (t, 0, 0)
    c2 = lambda t: (0, 0)
    c3 = lambda t: (0, 0, 0)

    enc_lbh, k_lbh = pl.pallas_call(
        functools.partial(_encoder_kernel, num_layers=num_enc_layers),
        out_shape=(jax.ShapeDtypeStruct((L, B, H), jnp.float32),
                   jax.ShapeDtypeStruct((L, B, H), jnp.bfloat16)),
        grid=(L,),
        in_specs=[
            pl.BlockSpec((None, B, D), t_map),              # x_t blocked over time
            pl.BlockSpec((D, H), c2),                       # fc1_w   (resident)
            pl.BlockSpec((1, H), c2),                       # fc1_b   (resident)
            pl.BlockSpec((num_enc_layers, H, 4 * H), c3),   # wih     (resident)
            pl.BlockSpec((num_enc_layers, H, 4 * H), c3),   # whh     (resident)
            pl.BlockSpec((num_enc_layers, 1, 4 * H), c3),   # bias    (resident)
            pl.BlockSpec((H, H), c2),                       # attn_wk (resident)
            pl.BlockSpec((1, H), c2),                       # attn_bk (resident)
        ],
        out_specs=(pl.BlockSpec((None, B, H), t_map),
                   pl.BlockSpec((None, B, H), t_map)),
        scratch_shapes=[pltpu.VMEM((num_enc_layers, B, H), jnp.float32),   # h
                        pltpu.VMEM((num_enc_layers, B, H), jnp.float32)],  # c
        compiler_params=pltpu.CompilerParams(dimension_semantics=("arbitrary",)),
    )(x_t, params['fc1_w'], params['fc1_b'],
      params['enc_wih'], params['enc_whh'], params['enc_b'],
      params['attn_wk'], params['attn_bk'])

    enc = jnp.transpose(enc_lbh, (1, 0, 2))                 # (B, L, H) f32
    k = jnp.transpose(k_lbh, (1, 0, 2))                     # (B, L, H) bf16
    return enc, k


# ----------------------------- Decoder kernel -------------------------------

def _decoder_kernel(noise_ref, enc_ref, k_ref, wih_ref, whh_ref, b_ref,
                    wq_ref, bq_ref, w_out_ref, idx_out_ref,
                    h_sc, c_sc, x_sc, mask_sc, first_sc,
                    *, num_layers, num_heads, steps):
    B, L, H = enc_ref.shape
    hd = H // num_heads
    t = pl.program_id(0)

    @pl.when(t == 0)
    def _():
        h_sc[...] = jnp.zeros_like(h_sc)        # decoder h0
        c_sc[...] = jnp.zeros_like(c_sc)        # decoder c0
        x_sc[...] = jnp.zeros_like(x_sc)        # zero start token
        mask_sc[...] = jnp.zeros_like(mask_sc)  # running key_padding_mask
        first_sc[...] = jnp.zeros_like(first_sc)

    # Effective mask for this step; at the final step (t == L) the first picked city is
    # un-masked again (indices_to_ignore[:, 1:] in the reference module).
    is_last = (t == steps - 1).astype(jnp.float32)
    eff_mask = mask_sc[...] - is_last * first_sc[...]

    # ---- decoder LSTM stack (state carried in VMEM scratch across grid steps) ----
    x = x_sc[...]
    for l in range(num_layers):
        gates = (jnp.dot(x.astype(jnp.bfloat16), wih_ref[l],
                         preferred_element_type=jnp.float32)
                 + jnp.dot(h_sc[l].astype(jnp.bfloat16), whh_ref[l],
                           preferred_element_type=jnp.float32)
                 + b_ref[l])
        i = jax.nn.sigmoid(gates[:, 0 * H:1 * H])
        f = jax.nn.sigmoid(gates[:, 1 * H:2 * H])
        g = jnp.tanh(gates[:, 2 * H:3 * H])
        o = jax.nn.sigmoid(gates[:, 3 * H:4 * H])
        c_new = f * c_sc[l] + i * g
        h_new = o * jnp.tanh(c_new)
        h_sc[l] = h_new
        c_sc[l] = c_new
        x = h_new

    # ---- multi-head attention weights (q proj + MXU q.K + one softmax pass) ----
    q = (jnp.dot(x.astype(jnp.bfloat16), wq_ref[...],
                 preferred_element_type=jnp.float32) + bq_ref[...])    # (B, H) f32
    qh = q.astype(jnp.bfloat16)
    k = k_ref[...]                                                     # (B, L, H) bf16
    head_scores = []
    for hh in range(num_heads):                                        # static unroll
        qs = qh[:, None, hh * hd:(hh + 1) * hd]                        # (B, 1, hd)
        ks = k[:, :, hh * hd:(hh + 1) * hd]                            # (B, L, hd)
        head_scores.append(jnp.einsum('bqd,bkd->bqk', qs, ks,
                                      preferred_element_type=jnp.float32))
    s = jnp.concatenate(head_scores, axis=1) * (1.0 / math.sqrt(hd))   # (B, nh, L)
    s = jnp.where(eff_mask[:, None, :] > 0.5, -1e30, s)                # key padding mask
    m = jnp.max(s, axis=-1, keepdims=True)                             # single softmax
    p = jnp.exp(s - m)
    p = p / jnp.sum(p, axis=-1, keepdims=True)
    w = jnp.mean(p, axis=1)                                            # head average
    w = jnp.maximum(w, 1e-9)                                           # clamp(min=1e-9)
    w = w / jnp.sum(w, axis=-1, keepdims=True)                         # renormalize
    w_out_ref[...] = w

    # ---- city selection: argmax(log(w) + gumbel); noise==0 in eval -> pure argmax ----
    sel = jnp.log(w) + noise_ref[...]                                  # (B, L)
    iota = lax.broadcasted_iota(jnp.int32, (B, L), 1)
    mx = jnp.max(sel, axis=-1, keepdims=True)
    idx = jnp.min(jnp.where(sel == mx, iota, L), axis=-1, keepdims=True)  # (B, 1) int32
    onehot = (iota == idx).astype(jnp.float32)                            # (B, L)
    idx_out_ref[...] = idx.astype(jnp.float32)

    @pl.when(t == 0)
    def _():
        first_sc[...] = onehot            # remember the first picked city

    mask_sc[...] = jnp.maximum(mask_sc[...], onehot)                   # running mask
    # gather chosen city encodings as the next x_star (exact f32 select)
    x_sc[...] = jnp.sum(onehot[:, :, None] * enc_ref[...], axis=1)


def decode(noise, enc, k, params, *, num_dec_layers, num_heads):
    steps, B, L = noise.shape
    H = enc.shape[-1]

    t_map = lambda t: (t, 0, 0)
    c2 = lambda t: (0, 0)
    c3 = lambda t: (0, 0, 0)

    # NOTE: resident state (enc + K + weights + h/c) is only a few hundred KiB here;
    # set pltpu.CompilerParams(vmem_limit_bytes=...) / tile enc,K if scaled up (v7x VMEM).
    return pl.pallas_call(
        functools.partial(_decoder_kernel, num_layers=num_dec_layers,
                          num_heads=num_heads, steps=steps),
        out_shape=(jax.ShapeDtypeStruct((steps, B, L), jnp.float32),
                   jax.ShapeDtypeStruct((steps, B, 1), jnp.float32)),
        grid=(steps,),
        in_specs=[
            pl.BlockSpec((None, B, L), t_map),              # gumbel noise (0 in eval)
            pl.BlockSpec((B, L, H), c3),                    # enc  (resident)
            pl.BlockSpec((B, L, H), c3),                    # K    (resident)
            pl.BlockSpec((num_dec_layers, H, 4 * H), c3),   # wih  (resident)
            pl.BlockSpec((num_dec_layers, H, 4 * H), c3),   # whh  (resident)
            pl.BlockSpec((num_dec_layers, 1, 4 * H), c3),   # bias (resident)
            pl.BlockSpec((H, H), c2),                       # attn_wq
            pl.BlockSpec((1, H), c2),                       # attn_bq
        ],
        out_specs=(pl.BlockSpec((None, B, L), t_map),
                   pl.BlockSpec((None, B, 1), t_map)),
        scratch_shapes=[pltpu.VMEM((num_dec_layers, B, H), jnp.float32),  # h
                        pltpu.VMEM((num_dec_layers, B, H), jnp.float32),  # c
                        pltpu.VMEM((B, H), jnp.float32),                  # x_star
                        pltpu.VMEM((B, L), jnp.float32),                  # running mask
                        pltpu.VMEM((B, L), jnp.float32)],                 # first pick
        compiler_params=pltpu.CompilerParams(dimension_semantics=("arbitrary",)),
    )(noise, enc, k,
      params['dec_wih'], params['dec_whh'], params['dec_b'],
      params['attn_wq'], params['attn_bq'])


# ----------------------------- Model forward --------------------------------

def tspnet_forward(X, params, *, hidden_dim, num_enc_layers, num_dec_layers,
                   num_heads, mod='eval', key=None):
    B, L, _ = X.shape
    enc, k = encoder_forward(X, params, hidden_dim=hidden_dim,
                             num_enc_layers=num_enc_layers)
    steps = L + 1
    if mod == 'eval':
        noise = jnp.zeros((steps, B, L), jnp.float32)
    elif mod == 'train':
        u = jax.random.uniform(key, (steps, B, L), jnp.float32, 1e-20, 1.0)
        noise = -jnp.log(-jnp.log(u))                      # Gumbel-max sampling
    else:
        raise ValueError('wrong mode')

    w_all, idx_all = decode(noise, enc, k, params,
                            num_dec_layers=num_dec_layers, num_heads=num_heads)
    outs = jnp.transpose(w_all, (1, 0, 2))                 # (B, L+1, L)
    action_indices = jnp.transpose(idx_all, (1, 0, 2))     # (B, L+1, 1)
    return outs, action_indices


# ----------------------------- Parameter init -------------------------------

def init_params(key, input_dim, hidden_dim, num_enc_layers, num_dec_layers):
    H = hidden_dim

    def u(k, shape, scale):
        return jax.random.uniform(k, shape, jnp.float32, -scale, scale)

    keys = iter(jax.random.split(key, 64))
    s_lin = 1.0 / math.sqrt(input_dim)
    s_lstm = 1.0 / math.sqrt(hidden_dim)

    params = {
        'fc1_w': u(next(keys), (input_dim, H), s_lin).astype(jnp.bfloat16),
        'fc1_b': u(next(keys), (1, H), s_lin),
    }

    def lstm_stack(num_layers):
        wih = jnp.stack([u(next(keys), (H, 4 * H), s_lstm) for _ in range(num_layers)])
        whh = jnp.stack([u(next(keys), (H, 4 * H), s_lstm) for _ in range(num_layers)])
        b = jnp.stack([u(next(keys), (1, 4 * H), s_lstm)           # b_ih + b_hh folded
                       for _ in range(num_layers)])
        return wih.astype(jnp.bfloat16), whh.astype(jnp.bfloat16), b

    params['enc_wih'], params['enc_whh'], params['enc_b'] = lstm_stack(num_enc_layers)
    params['dec_wih'], params['dec_whh'], params['dec_b'] = lstm_stack(num_dec_layers)

    xav = math.sqrt(6.0 / (2 * H))
    params['attn_wq'] = u(next(keys), (H, H), xav).astype(jnp.bfloat16)
    params['attn_bq'] = jnp.zeros((1, H), jnp.float32)
    params['attn_wk'] = u(next(keys), (H, H), xav).astype(jnp.bfloat16)
    params['attn_bk'] = jnp.zeros((1, H), jnp.float32)
    return params


# ----------------------------- Main ------------------------------------------

if __name__ == "__main__":
    B, L, D, H = 2, 8, 2, 32        # batch, #cities, coord dim, hidden dim
    NUM_L_ENC, NUM_L_DEC, NUM_HEADS = 3, 3, 2

    root = jax.random.PRNGKey(0)
    k_params, k_data = jax.random.split(root)
    params = init_params(k_params, D, H, NUM_L_ENC, NUM_L_DEC)
    X = jax.random.uniform(k_data, (B, L, D), jnp.float32)

    fwd = jax.jit(functools.partial(
        tspnet_forward, hidden_dim=H, num_enc_layers=NUM_L_ENC,
        num_dec_layers=NUM_L_DEC, num_heads=NUM_HEADS, mod='eval'))

    outs, action_indices = fwd(X, params)
    jax.block_until_ready((outs, action_indices))

    assert outs.shape == (B, L + 1, L)
    assert action_indices.shape == (B, L + 1, 1)
    print("KERNEL_OK")
</pallas_src>

<mosaic_0001>
module attributes {stable_mosaic.version = 11 : i64} {
  func.func @_encoder_kernel(%arg0: i32, %arg1: memref<1x2x2xf32, #tpu.memory_space<vmem>>, %arg2: memref<2x32xbf16, #tpu.memory_space<vmem>>, %arg3: memref<1x32xf32, #tpu.memory_space<vmem>>, %arg4: memref<3x32x128xbf16, #tpu.memory_space<vmem>>, %arg5: memref<3x32x128xbf16, #tpu.memory_space<vmem>>, %arg6: memref<3x1x128xf32, #tpu.memory_space<vmem>>, %arg7: memref<32x32xbf16, #tpu.memory_space<vmem>>, %arg8: memref<1x32xf32, #tpu.memory_space<vmem>>, %arg9: memref<1x2x32xf32, #tpu.memory_space<vmem>>, %arg10: memref<1x2x32xbf16, #tpu.memory_space<vmem>>, %arg11: memref<3x2x32xf32, #tpu.memory_space<vmem>>, %arg12: memref<3x2x32xf32, #tpu.memory_space<vmem>>) attributes {dimension_semantics = [#tpu.dimension_semantics<arbitrary>], iteration_bounds = array<i64: 8>, scalar_prefetch = 0 : i64, scratch_operands = 2 : i64, tpu.core_type = #tpu.core_type<tc>, window_params = [{transform_indices = @transform_0, window_bounds = array<i64: 1, 2, 2>}, {pipeline_mode = #tpu.pipeline_mode<synchronous>, transform_indices = @transform_1, window_bounds = array<i64: 2, 32>}, {pipeline_mode = #tpu.pipeline_mode<synchronous>, transform_indices = @transform_2, window_bounds = array<i64: 1, 32>}, {pipeline_mode = #tpu.pipeline_mode<synchronous>, transform_indices = @transform_3, window_bounds = array<i64: 3, 32, 128>}, {pipeline_mode = #tpu.pipeline_mode<synchronous>, transform_indices = @transform_4, window_bounds = array<i64: 3, 32, 128>}, {pipeline_mode = #tpu.pipeline_mode<synchronous>, transform_indices = @transform_5, window_bounds = array<i64: 3, 1, 128>}, {pipeline_mode = #tpu.pipeline_mode<synchronous>, transform_indices = @transform_6, window_bounds = array<i64: 32, 32>}, {pipeline_mode = #tpu.pipeline_mode<synchronous>, transform_indices = @transform_7, window_bounds = array<i64: 1, 32>}, {transform_indices = @transform_8, window_bounds = array<i64: 1, 2, 32>}, {transform_indices = @transform_9, window_bounds = array<i64: 1, 2, 32>}]} {
    %c0_i32 = arith.constant 0 : i32
    %0 = arith.cmpi eq, %arg0, %c0_i32 : i32
    %1 = arith.extui %0 : i1 to i32
    %c0_i32_0 = arith.constant 0 : i32
    %2 = arith.cmpi ne, %1, %c0_i32_0 : i32
    scf.if %2 {
      %cst_94 = arith.constant 0.000000e+00 : f32
      %168 = vector.broadcast %cst_94 : f32 to vector<3x2x32xf32>
      %c0_95 = arith.constant 0 : index
      %c0_96 = arith.constant 0 : index
      %c0_97 = arith.constant 0 : index
      %169 = vector.load %arg11[%c0_95, %c0_96, %c0_97] : memref<3x2x32xf32, #tpu.memory_space<vmem>>, vector<3x2x32xf32>
      tpu.vector_store %arg11[%c0_95, %c0_96, %c0_97], %168 {strides = array<i32>} : memref<3x2x32xf32, #tpu.memory_space<vmem>>, vector<3x2x32xf32>,
      %cst_98 = arith.constant 0.000000e+00 : f32
      %170 = vector.broadcast %cst_98 : f32 to vector<3x2x32xf32>
      %c0_99 = arith.constant 0 : index
      %c0_100 = arith.constant 0 : index
      %c0_101 = arith.constant 0 : index
      %171 = vector.load %arg12[%c0_99, %c0_100, %c0_101] : memref<3x2x32xf32, #tpu.memory_space<vmem>>, vector<3x2x32xf32>
      tpu.vector_store %arg12[%c0_99, %c0_100, %c0_101], %170 {strides = array<i32>} : memref<3x2x32xf32, #tpu.memory_space<vmem>>, vector<3x2x32xf32>,
    } else {
    }
    %c0 = arith.constant 0 : index
    %c0_1 = arith.constant 0 : index
    %c0_2 = arith.constant 0 : index
    %3 = vector.load %arg1[%c0, %c0_1, %c0_2] : memref<1x2x2xf32, #tpu.memory_space<vmem>>, vector<1x2x2xf32>
    %4 = vector.shape_cast %3 : vector<1x2x2xf32> to vector<2x2xf32>
    %5 = arith.truncf %4 : vector<2x2xf32> to vector<2x2xbf16>
    %c0_3 = arith.constant 0 : index
    %c0_4 = arith.constant 0 : index
    %6 = vector.load %arg2[%c0_3, %c0_4] : memref<2x32xbf16, #tpu.memory_space<vmem>>, vector<2x32xbf16>
    %cst = arith.constant dense<0.000000e+00> : vector<2x32xf32>
    %7 = tpu.matmul %5, %6, %cst {dimension_numbers = #tpu.dot_dimension_numbers<[1], [0], [0], [1], [0, 0, 1, 1], [], []>} : vector<2x2xbf16>, vector<2x32xbf16>, vector<2x32xf32> -> vector<2x32xf32>
    %c0_5 = arith.constant 0 : index
    %c0_6 = arith.constant 0 : index
    %8 = vector.load %arg3[%c0_5, %c0_6] : memref<1x32xf32, #tpu.memory_space<vmem>>, vector<1x32xf32>
    %9 = vector.broadcast %8 : vector<1x32xf32> to vector<2x32xf32>
    %10 = arith.addf %7, %9 : vector<2x32xf32>
    %11 = arith.truncf %10 : vector<2x32xf32> to vector<2x32xbf16>
    %c0_7 = arith.constant 0 : index
    %c0_8 = arith.constant 0 : index
    %c0_9 = arith.constant 0 : index
    %12 = vector.load %arg4[%c0_7, %c0_8, %c0_9] : memref<3x32x128xbf16, #tpu.memory_space<vmem>>, vector<1x32x128xbf16>
    %13 = vector.shape_cast %12 : vector<1x32x128xbf16> to vector<32x128xbf16>
    %cst_10 = arith.constant dense<0.000000e+00> : vector<2x128xf32>
    %14 = tpu.matmul %11, %13, %cst_10 {dimension_numbers = #tpu.dot_dimension_numbers<[1], [0], [0], [1], [0, 0, 1, 1], [], []>} : vector<2x32xbf16>, vector<32x128xbf16>, vector<2x128xf32> -> vector<2x128xf32>
    %c0_11 = arith.constant 0 : index
    %c0_12 = arith.constant 0 : index
    %c0_13 = arith.constant 0 : index
    %15 = vector.load %arg11[%c0_11, %c0_12, %c0_13] : memref<3x2x32xf32, #tpu.memory_space<vmem>>, vector<1x2x32xf32>
    %16 = vector.shape_cast %15 : vector<1x2x32xf32> to vector<2x32xf32>
    %17 = arith.truncf %16 : vector<2x32xf32> to vector<2x32xbf16>
    %c0_14 = arith.constant 0 : index
    %c0_15 = arith.constant 0 : index
    %c0_16 = arith.constant 0 : index
    %18 = vector.load %arg5[%c0_14, %c0_15, %c0_16] : memref<3x32x128xbf16, #tpu.memory_space<vmem>>, vector<1x32x128xbf16>
    %19 = vector.shape_cast %18 : vector<1x32x128xbf16> to vector<32x128xbf16>
    %cst_17 = arith.constant dense<0.000000e+00> : vector<2x128xf32>
    %20 = tpu.matmul %17, %19, %cst_17 {dimension_numbers = #tpu.dot_dimension_numbers<[1], [0], [0], [1], [0, 0, 1, 1], [], []>} : vector<2x32xbf16>, vector<32x128xbf16>, vector<2x128xf32> -> vector<2x128xf32>
    %21 = arith.addf %14, %20 : vector<2x128xf32>
    %c0_18 = arith.constant 0 : index
    %c0_19 = arith.constant 0 : index
    %c0_20 = arith.constant 0 : index
    %22 = vector.load %arg6[%c0_18, %c0_19, %c0_20] : memref<3x1x128xf32, #tpu.memory_space<vmem>>, vector<1x1x128xf32>
    %23 = vector.shape_cast %22 : vector<1x1x128xf32> to vector<1x128xf32>
    %24 = vector.broadcast %23 : vector<1x128xf32> to vector<2x128xf32>
    %25 = arith.addf %21, %24 : vector<2x128xf32>
    %26 = vector.extract_strided_slice %25 {offsets = [0, 0], sizes = [2, 32], strides = [1, 1]} : vector<2x128xf32> to vector<2x32xf32>
    %27 = arith.negf %26 : vector<2x32xf32>
    %28 = math.exp %27 : vector<2x32xf32>
    %cst_21 = arith.constant 1.000000e+00 : f32
    %29 = vector.broadcast %cst_21 : f32 to vector<2x32xf32>
    %30 = arith.addf %29, %28 : vector<2x32xf32>
    %31 = arith.divf %29, %30 : vector<2x32xf32>
    %32 = vector.extract_strided_slice %25 {offsets = [0, 32], sizes = [2, 32], strides = [1, 1]} : vector<2x128xf32> to vector<2x32xf32>
    %33 = arith.negf %32 : vector<2x32xf32>
    %34 = math.exp %33 : vector<2x32xf32>
    %cst_22 = arith.constant 1.000000e+00 : f32
    %35 = vector.broadcast %cst_22 : f32 to vector<2x32xf32>
    %36 = arith.addf %35, %34 : vector<2x32xf32>
    %37 = arith.divf %35, %36 : vector<2x32xf32>
    %38 = vector.extract_strided_slice %25 {offsets = [0, 64], sizes = [2, 32], strides = [1, 1]} : vector<2x128xf32> to vector<2x32xf32>
    %39 = math.tanh %38 : vector<2x32xf32>
    %40 = vector.extract_strided_slice %25 {offsets = [0, 96], sizes = [2, 32], strides = [1, 1]} : vector<2x128xf32> to vector<2x32xf32>
    %41 = arith.negf %40 : vector<2x32xf32>
    %42 = math.exp %41 : vector<2x32xf32>
    %cst_23 = arith.constant 1.000000e+00 : f32
    %43 = vector.broadcast %cst_23 : f32 to vector<2x32xf32>
    %44 = arith.addf %43, %42 : vector<2x32xf32>
    %45 = arith.divf %43, %44 : vector<2x32xf32>
    %c0_24 = arith.constant 0 : index
    %c0_25 = arith.constant 0 : index
    %c0_26 = arith.constant 0 : index
    %46 = vector.load %arg12[%c0_24, %c0_25, %c0_26] : memref<3x2x32xf32, #tpu.memory_space<vmem>>, vector<1x2x32xf32>
    %47 = vector.shape_cast %46 : vector<1x2x32xf32> to vector<2x32xf32>
    %48 = arith.mulf %37, %47 : vector<2x32xf32>
    %49 = arith.mulf %31, %39 : vector<2x32xf32>
    %50 = arith.addf %48, %49 : vector<2x32xf32>
    %51 = math.tanh %50 : vector<2x32xf32>
    %52 = arith.mulf %45, %51 : vector<2x32xf32>
    %c0_27 = arith.constant 0 : index
    %c0_28 = arith.constant 0 : index
    %c0_29 = arith.constant 0 : index
    %53 = vector.load %arg11[%c0_27, %c0_28, %c0_29] : memref<3x2x32xf32, #tpu.memory_space<vmem>>, vector<1x2x32xf32>
    %54 = vector.shape_cast %53 : vector<1x2x32xf32> to vector<2x32xf32>
    %55 = vector.shape_cast %52 : vector<2x32xf32> to vector<1x2x32xf32>
    tpu.vector_store %arg11[%c0_27, %c0_28, %c0_29], %55 {strides = array<i32>} : memref<3x2x32xf32, #tpu.memory_space<vmem>>, vector<1x2x32xf32>,
    %c0_30 = arith.constant 0 : index
    %c0_31 = arith.constant 0 : index
    %c0_32 = arith.constant 0 : index
    %56 = vector.load %arg12[%c0_30, %c0_31, %c0_32] : memref<3x2x32xf32, #tpu.memory_space<vmem>>, vector<1x2x32xf32>
    %57 = vector.shape_cast %56 : vector<1x2x32xf32> to vector<2x32xf32>
    %58 = vector.shape_cast %50 : vector<2x32xf32> to vector<1x2x32xf32>
    tpu.vector_store %arg12[%c0_30, %c0_31, %c0_32], %58 {strides = array<i32>} : memref<3x2x32xf32, #tpu.memory_space<vmem>>, vector<1x2x32xf32>,
    %59 = arith.truncf %52 : vector<2x32xf32> to vector<2x32xbf16>
    %c1 = arith.constant 1 : index
    %c0_33 = arith.constant 0 : index
    %c0_34 = arith.constant 0 : index
    %60 = vector.load %arg4[%c1, %c0_33, %c0_34] : memref<3x32x128xbf16, #tpu.memory_space<vmem>>, vector<1x32x128xbf16>
    %61 = vector.shape_cast %60 : vector<1x32x128xbf16> to vector<32x128xbf16>
    %cst_35 = arith.constant dense<0.000000e+00> : vector<2x128xf32>
    %62 = tpu.matmul %59, %61, %cst_35 {dimension_numbers = #tpu.dot_dimension_numbers<[1], [0], [0], [1], [0, 0, 1, 1], [], []>} : vector<2x32xbf16>, vector<32x128xbf16>, vector<2x128xf32> -> vector<2x128xf32>
    %c1_36 = arith.constant 1 : index
    %c0_37 = arith.constant 0 : index
    %c0_38 = arith.constant 0 : index
    %63 = vector.load %arg11[%c1_36, %c0_37, %c0_38] : memref<3x2x32xf32, #tpu.memory_space<vmem>>, vector<1x2x32xf32>
    %64 = vector.shape_cast %63 : vector<1x2x32xf32> to vector<2x32xf32>
    %65 = arith.truncf %64 : vector<2x32xf32> to vector<2x32xbf16>
    %c1_39 = arith.constant 1 : index
    %c0_40 = arith.constant 0 : index
    %c0_41 = arith.constant 0 : index
    %66 = vector.load %arg5[%c1_39, %c0_40, %c0_41] : memref<3x32x128xbf16, #tpu.memory_space<vmem>>, vector<1x32x128xbf16>
    %67 = vector.shape_cast %66 : vector<1x32x128xbf16> to vector<32x128xbf16>
    %cst_42 = arith.constant dense<0.000000e+00> : vector<2x128xf32>
    %68 = tpu.matmul %65, %67, %cst_42 {dimension_numbers = #tpu.dot_dimension_numbers<[1], [0], [0], [1], [0, 0, 1, 1], [], []>} : vector<2x32xbf16>, vector<32x128xbf16>, vector<2x128xf32> -> vector<2x128xf32>
    %69 = arith.addf %62, %68 : vector<2x128xf32>
    %c1_43 = arith.constant 1 : index
    %c0_44 = arith.constant 0 : index
    %c0_45 = arith.constant 0 : index
    %70 = vector.load %arg6[%c1_43, %c0_44, %c0_45] : memref<3x1x128xf32, #tpu.memory_space<vmem>>, vector<1x1x128xf32>
    %71 = vector.shape_cast %70 : vector<1x1x128xf32> to vector<1x128xf32>
    %72 = vector.broadcast %71 : vector<1x128xf32> to vector<2x128xf32>
    %73 = arith.addf %69, %72 : vector<2x128xf32>
    %74 = vector.extract_strided_slice %73 {offsets = [0, 0], sizes = [2, 32], strides = [1, 1]} : vector<2x128xf32> to vector<2x32xf32>
    %75 = arith.negf %74 : vector<2x32xf32>
    %76 = math.exp %75 : vector<2x32xf32>
    %cst_46 = arith.constant 1.000000e+00 : f32
    %77 = vector.broadcast %cst_46 : f32 to vector<2x32xf32>
    %78 = arith.addf %77, %76 : vector<2x32xf32>
    %79 = arith.divf %77, %78 : vector<2x32xf32>
    %80 = vector.extract_strided_slice %73 {offsets = [0, 32], sizes = [2, 32], strides = [1, 1]} : vector<2x128xf32> to vector<2x32xf32>
    %81 = arith.negf %80 : vector<2x32xf32>
    %82 = math.exp %81 : vector<2x32xf32>
    %cst_47 = arith.constant 1.000000e+00 : f32
    %83 = vector.broadcast %cst_47 : f32 to vector<2x32xf32>
    %84 = arith.addf %83, %82 : vector<2x32xf32>
    %85 = arith.divf %83, %84 : vector<2x32xf32>
    %86 = vector.extract_strided_slice %73 {offsets = [0, 64], sizes = [2, 32], strides = [1, 1]} : vector<2x128xf32> to vector<2x32xf32>
    %87 = math.tanh %86 : vector<2x32xf32>
    %88 = vector.extract_strided_slice %73 {offsets = [0, 96], sizes = [2, 32], strides = [1, 1]} : vector<2x128xf32> to vector<2x32xf32>
    %89 = arith.negf %88 : vector<2x32xf32>
    %90 = math.exp %89 : vector<2x32xf32>
    %cst_48 = arith.constant 1.000000e+00 : f32
    %91 = vector.broadcast %cst_48 : f32 to vector<2x32xf32>
    %92 = arith.addf %91, %90 : vector<2x32xf32>
    %93 = arith.divf %91, %92 : vector<2x32xf32>
    %c1_49 = arith.constant 1 : index
    %c0_50 = arith.constant 0 : index
    %c0_51 = arith.constant 0 : index
    %94 = vector.load %arg12[%c1_49, %c0_50, %c0_51] : memref<3x2x32xf32, #tpu.memory_space<vmem>>, vector<1x2x32xf32>
    %95 = vector.shape_cast %94 : vector<1x2x32xf32> to vector<2x32xf32>
    %96 = arith.mulf %85, %95 : vector<2x32xf32>
    %97 = arith.mulf %79, %87 : vector<2x32xf32>
    %98 = arith.addf %96, %97 : vector<2x32xf32>
    %99 = math.tanh %98 : vector<2x32xf32>
    %100 = arith.mulf %93, %99 : vector<2x32xf32>
    %c1_52 = arith.constant 1 : index
    %c0_53 = arith.constant 0 : index
    %c0_54 = arith.constant 0 : index
    %101 = vector.load %arg11[%c1_52, %c0_53, %c0_54] : memref<3x2x32xf32, #tpu.memory_space<vmem>>, vector<1x2x32xf32>
    %102 = vector.shape_cast %101 : vector<1x2x32xf32> to vector<2x32xf32>
    %103 = vector.shape_cast %100 : vector<2x32xf32> to vector<1x2x32xf32>
    tpu.vector_store %arg11[%c1_52, %c0_53, %c0_54], %103 {strides = array<i32>} : memref<3x2x32xf32, #tpu.memory_space<vmem>>, vector<1x2x32xf32>,
    %c1_55 = arith.constant 1 : index
    %c0_56 = arith.constant 0 : index
    %c0_57 = arith.constant 0 : index
    %104 = vector.load %arg12[%c1_55, %c0_56, %c0_57] : memref<3x2x32xf32, #tpu.memory_space<vmem>>, vector<1x2x32xf32>
    %105 = vector.shape_cast %104 : vector<1x2x32xf32> to vector<2x32xf32>
    %106 = vector.shape_cast %98 : vector<2x32xf32> to vector<1x2x32xf32>
    tpu.vector_store %arg12[%c1_55, %c0_56, %c0_57], %106 {strides = array<i32>} : memref<3x2x32xf32, #tpu.memory_space<vmem>>, vector<1x2x32xf32>,
    %107 = arith.truncf %100 : vector<2x32xf32> to vector<2x32xbf16>
    %c2 = arith.constant 2 : index
    %c0_58 = arith.constant 0 : index
    %c0_59 = arith.constant 0 : index
    %108 = vector.load %arg4[%c2, %c0_58, %c0_59] : memref<3x32x128xbf16, #tpu.memory_space<vmem>>, vector<1x32x128xbf16>
    %109 = vector.shape_cast %108 : vector<1x32x128xbf16> to vector<32x128xbf16>
    %cst_60 = arith.constant dense<0.000000e+00> : vector<2x128xf32>
    %110 = tpu.matmul %107, %109, %cst_60 {dimension_numbers = #tpu.dot_dimension_numbers<[1], [0], [0], [1], [0, 0, 1, 1], [], []>} : vector<2x32xbf16>, vector<32x128xbf16>, vector<2x128xf32> -> vector<2x128xf32>
    %c2_61 = arith.constant 2 : index
    %c0_62 = arith.constant 0 : index
    %c0_63 = arith.constant 0 : index
    %111 = vector.load %arg11[%c2_61, %c0_62, %c0_63] : memref<3x2x32xf32, #tpu.memory_space<vmem>>, vector<1x2x32xf32>
    %112 = vector.shape_cast %111 : vector<1x2x32xf32> to vector<2x32xf32>
    %113 = arith.truncf %112 : vector<2x32xf32> to vector<2x32xbf16>
    %c2_64 = arith.constant 2 : index
    %c0_65 = arith.constant 0 : index
    %c0_66 = arith.constant 0 : index
    %114 = vector.load %arg5[%c2_64, %c0_65, %c0_66] : memref<3x32x128xbf16, #tpu.memory_space<vmem>>, vector<1x32x128xbf16>
    %115 = vector.shape_cast %114 : vector<1x32x128xbf16> to vector<32x128xbf16>
    %cst_67 = arith.constant dense<0.000000e+00> : vector<2x128xf32>
    %116 = tpu.matmul %113, %115, %cst_67 {dimension_numbers = #tpu.dot_dimension_numbers<[1], [0], [0], [1], [0, 0, 1, 1], [], []>} : vector<2x32xbf16>, vector<32x128xbf16>, vector<2x128xf32> -> vector<2x128xf32>
    %117 = arith.addf %110, %116 : vector<2x128xf32>
    %c2_68 = arith.constant 2 : index
    %c0_69 = arith.constant 0 : index
    %c0_70 = arith.constant 0 : index
    %118 = vector.load %arg6[%c2_68, %c0_69, %c0_70] : memref<3x1x128xf32, #tpu.memory_space<vmem>>, vector<1x1x128xf32>
    %119 = vector.shape_cast %118 : vector<1x1x128xf32> to vector<1x128xf32>
    %120 = vector.broadcast %119 : vector<1x128xf32> to vector<2x128xf32>
    %121 = arith.addf %117, %120 : vector<2x128xf32>
    %122 = vector.extract_strided_slice %121 {offsets = [0, 0], sizes = [2, 32], strides = [1, 1]} : vector<2x128xf32> to vector<2x32xf32>
    %123 = arith.negf %122 : vector<2x32xf32>
    %124 = math.exp %123 : vector<2x32xf32>
    %cst_71 = arith.constant 1.000000e+00 : f32
    %125 = vector.broadcast %cst_71 : f32 to vector<2x32xf32>
    %126 = arith.addf %125, %124 : vector<2x32xf32>
    %127 = arith.divf %125, %126 : vector<2x32xf32>
    %128 = vector.extract_strided_slice %121 {offsets = [0, 32], sizes = [2, 32], strides = [1, 1]} : vector<2x128xf32> to vector<2x32xf32>
    %129 = arith.negf %128 : vector<2x32xf32>
    %130 = math.exp %129 : vector<2x32xf32>
    %cst_72 = arith.constant 1.000000e+00 : f32
    %131 = vector.broadcast %cst_72 : f32 to vector<2x32xf32>
    %132 = arith.addf %131, %130 : vector<2x32xf32>
    %133 = arith.divf %131, %132 : vector<2x32xf32>
    %134 = vector.extract_strided_slice %121 {offsets = [0, 64], sizes = [2, 32], strides = [1, 1]} : vector<2x128xf32> to vector<2x32xf32>
    %135 = math.tanh %134 : vector<2x32xf32>
    %136 = vector.extract_strided_slice %121 {offsets = [0, 96], sizes = [2, 32], strides = [1, 1]} : vector<2x128xf32> to vector<2x32xf32>
    %137 = arith.negf %136 : vector<2x32xf32>
    %138 = math.exp %137 : vector<2x32xf32>
    %cst_73 = arith.constant 1.000000e+00 : f32
    %139 = vector.broadcast %cst_73 : f32 to vector<2x32xf32>
    %140 = arith.addf %139, %138 : vector<2x32xf32>
    %141 = arith.divf %139, %140 : vector<2x32xf32>
    %c2_74 = arith.constant 2 : index
    %c0_75 = arith.constant 0 : index
    %c0_76 = arith.constant 0 : index
    %142 = vector.load %arg12[%c2_74, %c0_75, %c0_76] : memref<3x2x32xf32, #tpu.memory_space<vmem>>, vector<1x2x32xf32>
    %143 = vector.shape_cast %142 : vector<1x2x32xf32> to vector<2x32xf32>
    %144 = arith.mulf %133, %143 : vector<2x32xf32>
    %145 = arith.mulf %127, %135 : vector<2x32xf32>
    %146 = arith.addf %144, %145 : vector<2x32xf32>
    %147 = math.tanh %146 : vector<2x32xf32>
    %148 = arith.mulf %141, %147 : vector<2x32xf32>
    %c2_77 = arith.constant 2 : index
    %c0_78 = arith.constant 0 : index
    %c0_79 = arith.constant 0 : index
    %149 = vector.load %arg11[%c2_77, %c0_78, %c0_79] : memref<3x2x32xf32, #tpu.memory_space<vmem>>, vector<1x2x32xf32>
    %150 = vector.shape_cast %149 : vector<1x2x32xf32> to vector<2x32xf32>
    %151 = vector.shape_cast %148 : vector<2x32xf32> to vector<1x2x32xf32>
    tpu.vector_store %arg11[%c2_77, %c0_78, %c0_79], %151 {strides = array<i32>} : memref<3x2x32xf32, #tpu.memory_space<vmem>>, vector<1x2x32xf32>,
    %c2_80 = arith.constant 2 : index
    %c0_81 = arith.constant 0 : index
    %c0_82 = arith.constant 0 : index
    %152 = vector.load %arg12[%c2_80, %c0_81, %c0_82] : memref<3x2x32xf32, #tpu.memory_space<vmem>>, vector<1x2x32xf32>
    %153 = vector.shape_cast %152 : vector<1x2x32xf32> to vector<2x32xf32>
    %154 = vector.shape_cast %146 : vector<2x32xf32> to vector<1x2x32xf32>
    tpu.vector_store %arg12[%c2_80, %c0_81, %c0_82], %154 {strides = array<i32>} : memref<3x2x32xf32, #tpu.memory_space<vmem>>, vector<1x2x32xf32>,
    %c0_83 = arith.constant 0 : index
    %c0_84 = arith.constant 0 : index
    %c0_85 = arith.constant 0 : index
    %155 = vector.load %arg9[%c0_83, %c0_84, %c0_85] : memref<1x2x32xf32, #tpu.memory_space<vmem>>, vector<1x2x32xf32>
    %156 = vector.shape_cast %155 : vector<1x2x32xf32> to vector<2x32xf32>
    %157 = vector.shape_cast %148 : vector<2x32xf32> to vector<1x2x32xf32>
    tpu.vector_store %arg9[%c0_83, %c0_84, %c0_85], %157 {strides = array<i32>} : memref<1x2x32xf32, #tpu.memory_space<vmem>>, vector<1x2x32xf32>,
    %158 = arith.truncf %148 : vector<2x32xf32> to vector<2x32xbf16>
    %c0_86 = arith.constant 0 : index
    %c0_87 = arith.constant 0 : index
    %159 = vector.load %arg7[%c0_86, %c0_87] : memref<32x32xbf16, #tpu.memory_space<vmem>>, vector<32x32xbf16>
    %cst_88 = arith.constant dense<0.000000e+00> : vector<2x32xf32>
    %160 = tpu.matmul %158, %159, %cst_88 {dimension_numbers = #tpu.dot_dimension_numbers<[1], [0], [0], [1], [0, 0, 1, 1], [], []>} : vector<2x32xbf16>, vector<32x32xbf16>, vector<2x32xf32> -> vector<2x32xf32>
    %c0_89 = arith.constant 0 : index
    %c0_90 = arith.constant 0 : index
    %161 = vector.load %arg8[%c0_89, %c0_90] : memref<1x32xf32, #tpu.memory_space<vmem>>, vector<1x32xf32>
    %162 = vector.broadcast %161 : vector<1x32xf32> to vector<2x32xf32>
    %163 = arith.addf %160, %162 : vector<2x32xf32>
    %164 = arith.truncf %163 : vector<2x32xf32> to vector<2x32xbf16>
    %c0_91 = arith.constant 0 : index
    %c0_92 = arith.constant 0 : index
    %c0_93 = arith.constant 0 : index
    %165 = vector.load %arg10[%c0_91, %c0_92, %c0_93] : memref<1x2x32xbf16, #tpu.memory_space<vmem>>, vector<1x2x32xbf16>
    %166 = vector.shape_cast %165 : vector<1x2x32xbf16> to vector<2x32xbf16>
    %167 = vector.shape_cast %164 : vector<2x32xbf16> to vector<1x2x32xbf16>
    tpu.vector_store %arg10[%c0_91, %c0_92, %c0_93], %167 {strides = array<i32>} : memref<1x2x32xbf16, #tpu.memory_space<vmem>>, vector<1x2x32xbf16>,
    return
  }
  func.func @transform_0(%arg0: i32) -> (i32, i32, i32) {
    %c0_i32 = arith.constant 0 : i32
    %c0_i32_0 = arith.constant 0 : i32
    %c0_i32_1 = arith.constant 0 : i32
    return %arg0, %c0_i32, %c0_i32_0 : i32, i32, i32
  }
  func.func @transform_1(%arg0: i32) -> (i32, i32) {
    %c0_i32 = arith.constant 0 : i32
    %c0_i32_0 = arith.constant 0 : i32
    %c0_i32_1 = arith.constant 0 : i32
    return %c0_i32, %c0_i32_0 : i32, i32
  }
  func.func @transform_2(%arg0: i32) -> (i32, i32) {
    %c0_i32 = arith.constant 0 : i32
    %c0_i32_0 = arith.constant 0 : i32
    %c0_i32_1 = arith.constant 0 : i32
    return %c0_i32, %c0_i32_0 : i32, i32
  }
  func.func @transform_3(%arg0: i32) -> (i32, i32, i32) {
    %c0_i32 = arith.constant 0 : i32
    %c0_i32_0 = arith.constant 0 : i32
    %c0_i32_1 = arith.constant 0 : i32
    %c0_i32_2 = arith.constant 0 : i32
    return %c0_i32, %c0_i32_0, %c0_i32_1 : i32, i32, i32
  }
  func.func @transform_4(%arg0: i32) -> (i32, i32, i32) {
    %c0_i32 = arith.constant 0 : i32
    %c0_i32_0 = arith.constant 0 : i32
    %c0_i32_1 = arith.constant 0 : i32
    %c0_i32_2 = arith.constant 0 : i32
    return %c0_i32, %c0_i32_0, %c0_i32_1 : i32, i32, i32
  }
  func.func @transform_5(%arg0: i32) -> (i32, i32, i32) {
    %c0_i32 = arith.constant 0 : i32
    %c0_i32_0 = arith.constant 0 : i32
    %c0_i32_1 = arith.constant 0 : i32
    %c0_i32_2 = arith.constant 0 : i32
    return %c0_i32, %c0_i32_0, %c0_i32_1 : i32, i32, i32
  }
  func.func @transform_6(%arg0: i32) -> (i32, i32) {
    %c0_i32 = arith.constant 0 : i32
    %c0_i32_0 = arith.constant 0 : i32
    %c0_i32_1 = arith.constant 0 : i32
    return %c0_i32, %c0_i32_0 : i32, i32
  }
  func.func @transform_7(%arg0: i32) -> (i32, i32) {
    %c0_i32 = arith.constant 0 : i32
    %c0_i32_0 = arith.constant 0 : i32
    %c0_i32_1 = arith.constant 0 : i32
    return %c0_i32, %c0_i32_0 : i32, i32
  }
  func.func @transform_8(%arg0: i32) -> (i32, i32, i32) {
    %c0_i32 = arith.constant 0 : i32
    %c0_i32_0 = arith.constant 0 : i32
    %c0_i32_1 = arith.constant 0 : i32
    return %arg0, %c0_i32, %c0_i32_0 : i32, i32, i32
  }
  func.func @transform_9(%arg0: i32) -> (i32, i32, i32) {
    %c0_i32 = arith.constant 0 : i32
    %c0_i32_0 = arith.constant 0 : i32
    %c0_i32_1 = arith.constant 0 : i32
    return %arg0, %c0_i32, %c0_i32_0 : i32, i32, i32
  }
}

module attributes {stable_mosaic.version = 11 : i64} {
  func.func @_decoder_kernel(%arg0: i32, %arg1: memref<1x2x8xf32, #tpu.memory_space<vmem>>, %arg2: memref<2x8x32xf32, #tpu.memory_space<vmem>>, %arg3: memref<2x8x32xbf16, #tpu.memory_space<vmem>>, %arg4: memref<3x32x128xbf16, #tpu.memory_space<vmem>>, %arg5: memref<3x32x128xbf16, #tpu.memory_space<vmem>>, %arg6: memref<3x1x128xf32, #tpu.memory_space<vmem>>, %arg7: memref<32x32xbf16, #tpu.memory_space<vmem>>, %arg8: memref<1x32xf32, #tpu.memory_space<vmem>>, %arg9: memref<1x2x8xf32, #tpu.memory_space<vmem>>, %arg10: memref<1x2x1xf32, #tpu.memory_space<vmem>>, %arg11: memref<3x2x32xf32, #tpu.memory_space<vmem>>, %arg12: memref<3x2x32xf32, #tpu.memory_space<vmem>>, %arg13: memref<2x32xf32, #tpu.memory_space<vmem>>, %arg14: memref<2x8xf32, #tpu.memory_space<vmem>>, %arg15: memref<2x8xf32, #tpu.memory_space<vmem>>) attributes {dimension_semantics = [#tpu.dimension_semantics<arbitrary>], iteration_bounds = array<i64: 9>, scalar_prefetch = 0 : i64, scratch_operands = 5 : i64, tpu.core_type = #tpu.core_type<tc>, window_params = [{transform_indices = @transform_0, window_bounds = array<i64: 1, 2, 8>}, {pipeline_mode = #tpu.pipeline_mode<synchronous>, transform_indices = @transform_1, window_bounds = array<i64: 2, 8, 32>}, {pipeline_mode = #tpu.pipeline_mode<synchronous>, transform_indices = @transform_2, window_bounds = array<i64: 2, 8, 32>}, {pipeline_mode = #tpu.pipeline_mode<synchronous>, transform_indices = @transform_3, window_bounds = array<i64: 3, 32, 128>}, {pipeline_mode = #tpu.pipeline_mode<synchronous>, transform_indices = @transform_4, window_bounds = array<i64: 3, 32, 128>}, {pipeline_mode = #tpu.pipeline_mode<synchronous>, transform_indices = @transform_5, window_bounds = array<i64: 3, 1, 128>}, {pipeline_mode = #tpu.pipeline_mode<synchronous>, transform_indices = @transform_6, window_bounds = array<i64: 32, 32>}, {pipeline_mode = #tpu.pipeline_mode<synchronous>, transform_indices = @transform_7, window_bounds = array<i64: 1, 32>}, {transform_indices = @transform_8, window_bounds = array<i64: 1, 2, 8>}, {transform_indices = @transform_9, window_bounds = array<i64: 1, 2, 1>}]} {
    %c0_i32 = arith.constant 0 : i32
    %0 = arith.cmpi eq, %arg0, %c0_i32 : i32
    %1 = arith.extui %0 : i1 to i32
    %c0_i32_0 = arith.constant 0 : i32
    %2 = arith.cmpi ne, %1, %c0_i32_0 : i32
    scf.if %2 {
      %cst_124 = arith.constant 0.000000e+00 : f32
      %236 = vector.broadcast %cst_124 : f32 to vector<3x2x32xf32>
      %c0_125 = arith.constant 0 : index
      %c0_126 = arith.constant 0 : index
      %c0_127 = arith.constant 0 : index
      %237 = vector.load %arg11[%c0_125, %c0_126, %c0_127] : memref<3x2x32xf32, #tpu.memory_space<vmem>>, vector<3x2x32xf32>
      tpu.vector_store %arg11[%c0_125, %c0_126, %c0_127], %236 {strides = array<i32>} : memref<3x2x32xf32, #tpu.memory_space<vmem>>, vector<3x2x32xf32>,
      %cst_128 = arith.constant 0.000000e+00 : f32
      %238 = vector.broadcast %cst_128 : f32 to vector<3x2x32xf32>
      %c0_129 = arith.constant 0 : index
      %c0_130 = arith.constant 0 : index
      %c0_131 = arith.constant 0 : index
      %239 = vector.load %arg12[%c0_129, %c0_130, %c0_131] : memref<3x2x32xf32, #tpu.memory_space<vmem>>, vector<3x2x32xf32>
      tpu.vector_store %arg12[%c0_129, %c0_130, %c0_131], %238 {strides = array<i32>} : memref<3x2x32xf32, #tpu.memory_space<vmem>>, vector<3x2x32xf32>,
      %cst_132 = arith.constant 0.000000e+00 : f32
      %240 = vector.broadcast %cst_132 : f32 to vector<2x32xf32>
      %c0_133 = arith.constant 0 : index
      %c0_134 = arith.constant 0 : index
      %241 = vector.load %arg13[%c0_133, %c0_134] : memref<2x32xf32, #tpu.memory_space<vmem>>, vector<2x32xf32>
      tpu.vector_store %arg13[%c0_133, %c0_134], %240 {strides = array<i32>} : memref<2x32xf32, #tpu.memory_space<vmem>>, vector<2x32xf32>,
      %cst_135 = arith.constant 0.000000e+00 : f32
      %242 = vector.broadcast %cst_135 : f32 to vector<2x8xf32>
      %c0_136 = arith.constant 0 : index
      %c0_137 = arith.constant 0 : index
      %243 = vector.load %arg14[%c0_136, %c0_137] : memref<2x8xf32, #tpu.memory_space<vmem>>, vector<2x8xf32>
      tpu.vector_store %arg14[%c0_136, %c0_137], %242 {strides = array<i32>} : memref<2x8xf32, #tpu.memory_space<vmem>>, vector<2x8xf32>,
      %cst_138 = arith.constant 0.000000e+00 : f32
      %244 = vector.broadcast %cst_138 : f32 to vector<2x8xf32>
      %c0_139 = arith.constant 0 : index
      %c0_140 = arith.constant 0 : index
      %245 = vector.load %arg15[%c0_139, %c0_140] : memref<2x8xf32, #tpu.memory_space<vmem>>, vector<2x8xf32>
      tpu.vector_store %arg15[%c0_139, %c0_140], %244 {strides = array<i32>} : memref<2x8xf32, #tpu.memory_space<vmem>>, vector<2x8xf32>,
    } else {
    }
    %c8_i32 = arith.constant 8 : i32
    %3 = arith.cmpi eq, %arg0, %c8_i32 : i32
    %4 = arith.extui %3 : i1 to i32
    %5 = arith.sitofp %4 : i32 to f32
    %c0 = arith.constant 0 : index
    %c0_1 = arith.constant 0 : index
    %6 = vector.load %arg14[%c0, %c0_1] : memref<2x8xf32, #tpu.memory_space<vmem>>, vector<2x8xf32>
    %c0_2 = arith.constant 0 : index
    %c0_3 = arith.constant 0 : index
    %7 = vector.load %arg15[%c0_2, %c0_3] : memref<2x8xf32, #tpu.memory_space<vmem>>, vector<2x8xf32>
    %8 = vector.broadcast %5 : f32 to vector<2x8xf32>
    %9 = arith.mulf %8, %7 : vector<2x8xf32>
    %10 = arith.subf %6, %9 : vector<2x8xf32>
    %c0_4 = arith.constant 0 : index
    %c0_5 = arith.constant 0 : index
    %11 = vector.load %arg13[%c0_4, %c0_5] : memref<2x32xf32, #tpu.memory_space<vmem>>, vector<2x32xf32>
    %12 = arith.truncf %11 : vector<2x32xf32> to vector<2x32xbf16>
    %c0_6 = arith.constant 0 : index
    %c0_7 = arith.constant 0 : index
    %c0_8 = arith.constant 0 : index
    %13 = vector.load %arg4[%c0_6, %c0_7, %c0_8] : memref<3x32x128xbf16, #tpu.memory_space<vmem>>, vector<1x32x128xbf16>
    %14 = vector.shape_cast %13 : vector<1x32x128xbf16> to vector<32x128xbf16>
    %cst = arith.constant dense<0.000000e+00> : vector<2x128xf32>
    %15 = tpu.matmul %12, %14, %cst {dimension_numbers = #tpu.dot_dimension_numbers<[1], [0], [0], [1], [0, 0, 1, 1], [], []>} : vector<2x32xbf16>, vector<32x128xbf16>, vector<2x128xf32> -> vector<2x128xf32>
    %c0_9 = arith.constant 0 : index
    %c0_10 = arith.constant 0 : index
    %c0_11 = arith.constant 0 : index
    %16 = vector.load %arg11[%c0_9, %c0_10, %c0_11] : memref<3x2x32xf32, #tpu.memory_space<vmem>>, vector<1x2x32xf32>
    %17 = vector.shape_cast %16 : vector<1x2x32xf32> to vector<2x32xf32>
    %18 = arith.truncf %17 : vector<2x32xf32> to vector<2x32xbf16>
    %c0_12 = arith.constant 0 : index
    %c0_13 = arith.constant 0 : index
    %c0_14 = arith.constant 0 : index
    %19 = vector.load %arg5[%c0_12, %c0_13, %c0_14] : memref<3x32x128xbf16, #tpu.memory_space<vmem>>, vector<1x32x128xbf16>
    %20 = vector.shape_cast %19 : vector<1x32x128xbf16> to vector<32x128xbf16>
    %cst_15 = arith.constant dense<0.000000e+00> : vector<2x128xf32>
    %21 = tpu.matmul %18, %20, %cst_15 {dimension_numbers = #tpu.dot_dimension_numbers<[1], [0], [0], [1], [0, 0, 1, 1], [], []>} : vector<2x32xbf16>, vector<32x128xbf16>, vector<2x128xf32> -> vector<2x128xf32>
    %22 = arith.addf %15, %21 : vector<2x128xf32>
    %c0_16 = arith.constant 0 : index
    %c0_17 = arith.constant 0 : index
    %c0_18 = arith.constant 0 : index
    %23 = vector.load %arg6[%c0_16, %c0_17, %c0_18] : memref<3x1x128xf32, #tpu.memory_space<vmem>>, vector<1x1x128xf32>
    %24 = vector.shape_cast %23 : vector<1x1x128xf32> to vector<1x128xf32>
    %25 = vector.broadcast %24 : vector<1x128xf32> to vector<2x128xf32>
    %26 = arith.addf %22, %25 : vector<2x128xf32>
    %27 = vector.extract_strided_slice %26 {offsets = [0, 0], sizes = [2, 32], strides = [1, 1]} : vector<2x128xf32> to vector<2x32xf32>
    %28 = arith.negf %27 : vector<2x32xf32>
    %29 = math.exp %28 : vector<2x32xf32>
    %cst_19 = arith.constant 1.000000e+00 : f32
    %30 = vector.broadcast %cst_19 : f32 to vector<2x32xf32>
    %31 = arith.addf %30, %29 : vector<2x32xf32>
    %32 = arith.divf %30, %31 : vector<2x32xf32>
    %33 = vector.extract_strided_slice %26 {offsets = [0, 32], sizes = [2, 32], strides = [1, 1]} : vector<2x128xf32> to vector<2x32xf32>
    %34 = arith.negf %33 : vector<2x32xf32>
    %35 = math.exp %34 : vector<2x32xf32>
    %cst_20 = arith.constant 1.000000e+00 : f32
    %36 = vector.broadcast %cst_20 : f32 to vector<2x32xf32>
    %37 = arith.addf %36, %35 : vector<2x32xf32>
    %38 = arith.divf %36, %37 : vector<2x32xf32>
    %39 = vector.extract_strided_slice %26 {offsets = [0, 64], sizes = [2, 32], strides = [1, 1]} : vector<2x128xf32> to vector<2x32xf32>
    %40 = math.tanh %39 : vector<2x32xf32>
    %41 = vector.extract_strided_slice %26 {offsets = [0, 96], sizes = [2, 32], strides = [1, 1]} : vector<2x128xf32> to vector<2x32xf32>
    %42 = arith.negf %41 : vector<2x32xf32>
    %43 = math.exp %42 : vector<2x32xf32>
    %cst_21 = arith.constant 1.000000e+00 : f32
    %44 = vector.broadcast %cst_21 : f32 to vector<2x32xf32>
    %45 = arith.addf %44, %43 : vector<2x32xf32>
    %46 = arith.divf %44, %45 : vector<2x32xf32>
    %c0_22 = arith.constant 0 : index
    %c0_23 = arith.constant 0 : index
    %c0_24 = arith.constant 0 : index
    %47 = vector.load %arg12[%c0_22, %c0_23, %c0_24] : memref<3x2x32xf32, #tpu.memory_space<vmem>>, vector<1x2x32xf32>
    %48 = vector.shape_cast %47 : vector<1x2x32xf32> to vector<2x32xf32>
    %49 = arith.mulf %38, %48 : vector<2x32xf32>
    %50 = arith.mulf %32, %40 : vector<2x32xf32>
    %51 = arith.addf %49, %50 : vector<2x32xf32>
    %52 = math.tanh %51 : vector<2x32xf32>
    %53 = arith.mulf %46, %52 : vector<2x32xf32>
    %c0_25 = arith.constant 0 : index
    %c0_26 = arith.constant 0 : index
    %c0_27 = arith.constant 0 : index
    %54 = vector.load %arg11[%c0_25, %c0_26, %c0_27] : memref<3x2x32xf32, #tpu.memory_space<vmem>>, vector<1x2x32xf32>
    %55 = vector.shape_cast %54 : vector<1x2x32xf32> to vector<2x32xf32>
    %56 = vector.shape_cast %53 : vector<2x32xf32> to vector<1x2x32xf32>
    tpu.vector_store %arg11[%c0_25, %c0_26, %c0_27], %56 {strides = array<i32>} : memref<3x2x32xf32, #tpu.memory_space<vmem>>, vector<1x2x32xf32>,
    %c0_28 = arith.constant 0 : index
    %c0_29 = arith.constant 0 : index
    %c0_30 = arith.constant 0 : index
    %57 = vector.load %arg12[%c0_28, %c0_29, %c0_30] : memref<3x2x32xf32, #tpu.memory_space<vmem>>, vector<1x2x32xf32>
    %58 = vector.shape_cast %57 : vector<1x2x32xf32> to vector<2x32xf32>
    %59 = vector.shape_cast %51 : vector<2x32xf32> to vector<1x2x32xf32>
    tpu.vector_store %arg12[%c0_28, %c0_29, %c0_30], %59 {strides = array<i32>} : memref<3x2x32xf32, #tpu.memory_space<vmem>>, vector<1x2x32xf32>,
    %60 = arith.truncf %53 : vector<2x32xf32> to vector<2x32xbf16>
    %c1 = arith.constant 1 : index
    %c0_31 = arith.constant 0 : index
    %c0_32 = arith.constant 0 : index
    %61 = vector.load %arg4[%c1, %c0_31, %c0_32] : memref<3x32x128xbf16, #tpu.memory_space<vmem>>, vector<1x32x128xbf16>
    %62 = vector.shape_cast %61 : vector<1x32x128xbf16> to vector<32x128xbf16>
    %cst_33 = arith.constant dense<0.000000e+00> : vector<2x128xf32>
    %63 = tpu.matmul %60, %62, %cst_33 {dimension_numbers = #tpu.dot_dimension_numbers<[1], [0], [0], [1], [0, 0, 1, 1], [], []>} : vector<2x32xbf16>, vector<32x128xbf16>, vector<2x128xf32> -> vector<2x128xf32>
    %c1_34 = arith.constant 1 : index
    %c0_35 = arith.constant 0 : index
    %c0_36 = arith.constant 0 : index
    %64 = vector.load %arg11[%c1_34, %c0_35, %c0_36] : memref<3x2x32xf32, #tpu.memory_space<vmem>>, vector<1x2x32xf32>
    %65 = vector.shape_cast %64 : vector<1x2x32xf32> to vector<2x32xf32>
    %66 = arith.truncf %65 : vector<2x32xf32> to vector<2x32xbf16>
    %c1_37 = arith.constant 1 : index
    %c0_38 = arith.constant 0 : index
    %c0_39 = arith.constant 0 : index
    %67 = vector.load %arg5[%c1_37, %c0_38, %c0_39] : memref<3x32x128xbf16, #tpu.memory_space<vmem>>, vector<1x32x128xbf16>
    %68 = vector.shape_cast %67 : vector<1x32x128xbf16> to vector<32x128xbf16>
    %cst_40 = arith.constant dense<0.000000e+00> : vector<2x128xf32>
    %69 = tpu.matmul %66, %68, %cst_40 {dimension_numbers = #tpu.dot_dimension_numbers<[1], [0], [0], [1], [0, 0, 1, 1], [], []>} : vector<2x32xbf16>, vector<32x128xbf16>, vector<2x128xf32> -> vector<2x128xf32>
    %70 = arith.addf %63, %69 : vector<2x128xf32>
    %c1_41 = arith.constant 1 : index
    %c0_42 = arith.constant 0 : index
    %c0_43 = arith.constant 0 : index
    %71 = vector.load %arg6[%c1_41, %c0_42, %c0_43] : memref<3x1x128xf32, #tpu.memory_space<vmem>>, vector<1x1x128xf32>
    %72 = vector.shape_cast %71 : vector<1x1x128xf32> to vector<1x128xf32>
    %73 = vector.broadcast %72 : vector<1x128xf32> to vector<2x128xf32>
    %74 = arith.addf %70, %73 : vector<2x128xf32>
    %75 = vector.extract_strided_slice %74 {offsets = [0, 0], sizes = [2, 32], strides = [1, 1]} : vector<2x128xf32> to vector<2x32xf32>
    %76 = arith.negf %75 : vector<2x32xf32>
    %77 = math.exp %76 : vector<2x32xf32>
    %cst_44 = arith.constant 1.000000e+00 : f32
    %78 = vector.broadcast %cst_44 : f32 to vector<2x32xf32>
    %79 = arith.addf %78, %77 : vector<2x32xf32>
    %80 = arith.divf %78, %79 : vector<2x32xf32>
    %81 = vector.extract_strided_slice %74 {offsets = [0, 32], sizes = [2, 32], strides = [1, 1]} : vector<2x128xf32> to vector<2x32xf32>
    %82 = arith.negf %81 : vector<2x32xf32>
    %83 = math.exp %82 : vector<2x32xf32>
    %cst_45 = arith.constant 1.000000e+00 : f32
    %84 = vector.broadcast %cst_45 : f32 to vector<2x32xf32>
    %85 = arith.addf %84, %83 : vector<2x32xf32>
    %86 = arith.divf %84, %85 : vector<2x32xf32>
    %87 = vector.extract_strided_slice %74 {offsets = [0, 64], sizes = [2, 32], strides = [1, 1]} : vector<2x128xf32> to vector<2x32xf32>
    %88 = math.tanh %87 : vector<2x32xf32>
    %89 = vector.extract_strided_slice %74 {offsets = [0, 96], sizes = [2, 32], strides = [1, 1]} : vector<2x128xf32> to vector<2x32xf32>
    %90 = arith.negf %89 : vector<2x32xf32>
    %91 = math.exp %90 : vector<2x32xf32>
    %cst_46 = arith.constant 1.000000e+00 : f32
    %92 = vector.broadcast %cst_46 : f32 to vector<2x32xf32>
    %93 = arith.addf %92, %91 : vector<2x32xf32>
    %94 = arith.divf %92, %93 : vector<2x32xf32>
    %c1_47 = arith.constant 1 : index
    %c0_48 = arith.constant 0 : index
    %c0_49 = arith.constant 0 : index
    %95 = vector.load %arg12[%c1_47, %c0_48, %c0_49] : memref<3x2x32xf32, #tpu.memory_space<vmem>>, vector<1x2x32xf32>
    %96 = vector.shape_cast %95 : vector<1x2x32xf32> to vector<2x32xf32>
    %97 = arith.mulf %86, %96 : vector<2x32xf32>
    %98 = arith.mulf %80, %88 : vector<2x32xf32>
    %99 = arith.addf %97, %98 : vector<2x32xf32>
    %100 = math.tanh %99 : vector<2x32xf32>
    %101 = arith.mulf %94, %100 : vector<2x32xf32>
    %c1_50 = arith.constant 1 : index
    %c0_51 = arith.constant 0 : index
    %c0_52 = arith.constant 0 : index
    %102 = vector.load %arg11[%c1_50, %c0_51, %c0_52] : memref<3x2x32xf32, #tpu.memory_space<vmem>>, vector<1x2x32xf32>
    %103 = vector.shape_cast %102 : vector<1x2x32xf32> to vector<2x32xf32>
    %104 = vector.shape_cast %101 : vector<2x32xf32> to vector<1x2x32xf32>
    tpu.vector_store %arg11[%c1_50, %c0_51, %c0_52], %104 {strides = array<i32>} : memref<3x2x32xf32, #tpu.memory_space<vmem>>, vector<1x2x32xf32>,
    %c1_53 = arith.constant 1 : index
    %c0_54 = arith.constant 0 : index
    %c0_55 = arith.constant 0 : index
    %105 = vector.load %arg12[%c1_53, %c0_54, %c0_55] : memref<3x2x32xf32, #tpu.memory_space<vmem>>, vector<1x2x32xf32>
    %106 = vector.shape_cast %105 : vector<1x2x32xf32> to vector<2x32xf32>
    %107 = vector.shape_cast %99 : vector<2x32xf32> to vector<1x2x32xf32>
    tpu.vector_store %arg12[%c1_53, %c0_54, %c0_55], %107 {strides = array<i32>} : memref<3x2x32xf32, #tpu.memory_space<vmem>>, vector<1x2x32xf32>,
    %108 = arith.truncf %101 : vector<2x32xf32> to vector<2x32xbf16>
    %c2 = arith.constant 2 : index
    %c0_56 = arith.constant 0 : index
    %c0_57 = arith.constant 0 : index
    %109 = vector.load %arg4[%c2, %c0_56, %c0_57] : memref<3x32x128xbf16, #tpu.memory_space<vmem>>, vector<1x32x128xbf16>
    %110 = vector.shape_cast %109 : vector<1x32x128xbf16> to vector<32x128xbf16>
    %cst_58 = arith.constant dense<0.000000e+00> : vector<2x128xf32>
    %111 = tpu.matmul %108, %110, %cst_58 {dimension_numbers = #tpu.dot_dimension_numbers<[1], [0], [0], [1], [0, 0, 1, 1], [], []>} : vector<2x32xbf16>, vector<32x128xbf16>, vector<2x128xf32> -> vector<2x128xf32>
    %c2_59 = arith.constant 2 : index
    %c0_60 = arith.constant 0 : index
    %c0_61 = arith.constant 0 : index
    %112 = vector.load %arg11[%c2_59, %c0_60, %c0_61] : memref<3x2x32xf32, #tpu.memory_space<vmem>>, vector<1x2x32xf32>
    %113 = vector.shape_cast %112 : vector<1x2x32xf32> to vector<2x32xf32>
    %114 = arith.truncf %113 : vector<2x32xf32> to vector<2x32xbf16>
    %c2_62 = arith.constant 2 : index
    %c0_63 = arith.constant 0 : index
    %c0_64 = arith.constant 0 : index
    %115 = vector.load %arg5[%c2_62, %c0_63, %c0_64] : memref<3x32x128xbf16, #tpu.memory_space<vmem>>, vector<1x32x128xbf16>
    %116 = vector.shape_cast %115 : vector<1x32x128xbf16> to vector<32x128xbf16>
    %cst_65 = arith.constant dense<0.000000e+00> : vector<2x128xf32>
    %117 = tpu.matmul %114, %116, %cst_65 {dimension_numbers = #tpu.dot_dimension_numbers<[1], [0], [0], [1], [0, 0, 1, 1], [], []>} : vector<2x32xbf16>, vector<32x128xbf16>, vector<2x128xf32> -> vector<2x128xf32>
    %118 = arith.addf %111, %117 : vector<2x128xf32>
    %c2_66 = arith.constant 2 : index
    %c0_67 = arith.constant 0 : index
    %c0_68 = arith.constant 0 : index
    %119 = vector.load %arg6[%c2_66, %c0_67, %c0_68] : memref<3x1x128xf32, #tpu.memory_space<vmem>>, vector<1x1x128xf32>
    %120 = vector.shape_cast %119 : vector<1x1x128xf32> to vector<1x128xf32>
    %121 = vector.broadcast %120 : vector<1x128xf32> to vector<2x128xf32>
    %122 = arith.addf %118, %121 : vector<2x128xf32>
    %123 = vector.extract_strided_slice %122 {offsets = [0, 0], sizes = [2, 32], strides = [1, 1]} : vector<2x128xf32> to vector<2x32xf32>
    %124 = arith.negf %123 : vector<2x32xf32>
    %125 = math.exp %124 : vector<2x32xf32>
    %cst_69 = arith.constant 1.000000e+00 : f32
    %126 = vector.broadcast %cst_69 : f32 to vector<2x32xf32>
    %127 = arith.addf %126, %125 : vector<2x32xf32>
    %128 = arith.divf %126, %127 : vector<2x32xf32>
    %129 = vector.extract_strided_slice %122 {offsets = [0, 32], sizes = [2, 32], strides = [1, 1]} : vector<2x128xf32> to vector<2x32xf32>
    %130 = arith.negf %129 : vector<2x32xf32>
    %131 = math.exp %130 : vector<2x32xf32>
    %cst_70 = arith.constant 1.000000e+00 : f32
    %132 = vector.broadcast %cst_70 : f32 to vector<2x32xf32>
    %133 = arith.addf %132, %131 : vector<2x32xf32>
    %134 = arith.divf %132, %133 : vector<2x32xf32>
    %135 = vector.extract_strided_slice %122 {offsets = [0, 64], sizes = [2, 32], strides = [1, 1]} : vector<2x128xf32> to vector<2x32xf32>
    %136 = math.tanh %135 : vector<2x32xf32>
    %137 = vector.extract_strided_slice %122 {offsets = [0, 96], sizes = [2, 32], strides = [1, 1]} : vector<2x128xf32> to vector<2x32xf32>
    %138 = arith.negf %137 : vector<2x32xf32>
    %139 = math.exp %138 : vector<2x32xf32>
    %cst_71 = arith.constant 1.000000e+00 : f32
    %140 = vector.broadcast %cst_71 : f32 to vector<2x32xf32>
    %141 = arith.addf %140, %139 : vector<2x32xf32>
    %142 = arith.divf %140, %141 : vector<2x32xf32>
    %c2_72 = arith.constant 2 : index
    %c0_73 = arith.constant 0 : index
    %c0_74 = arith.constant 0 : index
    %143 = vector.load %arg12[%c2_72, %c0_73, %c0_74] : memref<3x2x32xf32, #tpu.memory_space<vmem>>, vector<1x2x32xf32>
    %144 = vector.shape_cast %143 : vector<1x2x32xf32> to vector<2x32xf32>
    %145 = arith.mulf %134, %144 : vector<2x32xf32>
    %146 = arith.mulf %128, %136 : vector<2x32xf32>
    %147 = arith.addf %145, %146 : vector<2x32xf32>
    %148 = math.tanh %147 : vector<2x32xf32>
    %149 = arith.mulf %142, %148 : vector<2x32xf32>
    %c2_75 = arith.constant 2 : index
    %c0_76 = arith.constant 0 : index
    %c0_77 = arith.constant 0 : index
    %150 = vector.load %arg11[%c2_75, %c0_76, %c0_77] : memref<3x2x32xf32, #tpu.memory_space<vmem>>, vector<1x2x32xf32>
    %151 = vector.shape_cast %150 : vector<1x2x32xf32> to vector<2x32xf32>
    %152 = vector.shape_cast %149 : vector<2x32xf32> to vector<1x2x32xf32>
    tpu.vector_store %arg11[%c2_75, %c0_76, %c0_77], %152 {strides = array<i32>} : memref<3x2x32xf32, #tpu.memory_space<vmem>>, vector<1x2x32xf32>,
    %c2_78 = arith.constant 2 : index
    %c0_79 = arith.constant 0 : index
    %c0_80 = arith.constant 0 : index
    %153 = vector.load %arg12[%c2_78, %c0_79, %c0_80] : memref<3x2x32xf32, #tpu.memory_space<vmem>>, vector<1x2x32xf32>
    %154 = vector.shape_cast %153 : vector<1x2x32xf32> to vector<2x32xf32>
    %155 = vector.shape_cast %147 : vector<2x32xf32> to vector<1x2x32xf32>
    tpu.vector_store %arg12[%c2_78, %c0_79, %c0_80], %155 {strides = array<i32>} : memref<3x2x32xf32, #tpu.memory_space<vmem>>, vector<1x2x32xf32>,
    %156 = arith.truncf %149 : vector<2x32xf32> to vector<2x32xbf16>
    %c0_81 = arith.constant 0 : index
    %c0_82 = arith.constant 0 : index
    %157 = vector.load %arg7[%c0_81, %c0_82] : memref<32x32xbf16, #tpu.memory_space<vmem>>, vector<32x32xbf16>
    %cst_83 = arith.constant dense<0.000000e+00> : vector<2x32xf32>
    %158 = tpu.matmul %156, %157, %cst_83 {dimension_numbers = #tpu.dot_dimension_numbers<[1], [0], [0], [1], [0, 0, 1, 1], [], []>} : vector<2x32xbf16>, vector<32x32xbf16>, vector<2x32xf32> -> vector<2x32xf32>
    %c0_84 = arith.constant 0 : index
    %c0_85 = arith.constant 0 : index
    %159 = vector.load %arg8[%c0_84, %c0_85] : memref<1x32xf32, #tpu.memory_space<vmem>>, vector<1x32xf32>
    %160 = vector.broadcast %159 : vector<1x32xf32> to vector<2x32xf32>
    %161 = arith.addf %158, %160 : vector<2x32xf32>
    %162 = arith.truncf %161 : vector<2x32xf32> to vector<2x32xbf16>
    %c0_86 = arith.constant 0 : index
    %c0_87 = arith.constant 0 : index
    %c0_88 = arith.constant 0 : index
    %163 = vector.load %arg3[%c0_86, %c0_87, %c0_88] : memref<2x8x32xbf16, #tpu.memory_space<vmem>>, vector<2x8x32xbf16>
    %164 = vector.extract_strided_slice %162 {offsets = [0, 0], sizes = [2, 16], strides = [1, 1]} : vector<2x32xbf16> to vector<2x16xbf16>
    %165 = vector.shape_cast %164 : vector<2x16xbf16> to vector<2x1x16xbf16>
    %166 = vector.extract_strided_slice %163 {offsets = [0, 0, 0], sizes = [2, 8, 16], strides = [1, 1, 1]} : vector<2x8x32xbf16> to vector<2x8x16xbf16>
    "tpu.trace_start"() <{level = 10 : i32, message = "bqd,bkd->bqk"}> : () -> ()
    %cst_89 = arith.constant dense<0.000000e+00> : vector<2x1x8xf32>
    %167 = tpu.matmul %165, %166, %cst_89 {dimension_numbers = #tpu.dot_dimension_numbers<[2], [2], [1], [1], [0, 0, 0, 1, 1, 1], [0], [0]>} : vector<2x1x16xbf16>, vector<2x8x16xbf16>, vector<2x1x8xf32> -> vector<2x1x8xf32>
    "tpu.trace_stop"() : () -> ()
    %168 = vector.extract_strided_slice %162 {offsets = [0, 16], sizes = [2, 16], strides = [1, 1]} : vector<2x32xbf16> to vector<2x16xbf16>
    %169 = vector.shape_cast %168 : vector<2x16xbf16> to vector<2x1x16xbf16>
    %170 = vector.extract_strided_slice %163 {offsets = [0, 0, 16], sizes = [2, 8, 16], strides = [1, 1, 1]} : vector<2x8x32xbf16> to vector<2x8x16xbf16>
    "tpu.trace_start"() <{level = 10 : i32, message = "bqd,bkd->bqk"}> : () -> ()
    %cst_90 = arith.constant dense<0.000000e+00> : vector<2x1x8xf32>
    %171 = tpu.matmul %169, %170, %cst_90 {dimension_numbers = #tpu.dot_dimension_numbers<[2], [2], [1], [1], [0, 0, 0, 1, 1, 1], [0], [0]>} : vector<2x1x16xbf16>, vector<2x8x16xbf16>, vector<2x1x8xf32> -> vector<2x1x8xf32>
    "tpu.trace_stop"() : () -> ()
    %172 = tpu.concatenate %167, %171 in 1 : vector<2x1x8xf32>, vector<2x1x8xf32> -> vector<2x2x8xf32>
    %cst_91 = arith.constant 2.500000e-01 : f32
    %173 = vector.broadcast %cst_91 : f32 to vector<2x2x8xf32>
    %174 = arith.mulf %172, %173 : vector<2x2x8xf32>
    %175 = vector.shape_cast %10 : vector<2x8xf32> to vector<2x1x8xf32>
    %cst_92 = arith.constant 5.000000e-01 : f32
    %176 = vector.broadcast %cst_92 : f32 to vector<2x1x8xf32>
    %177 = arith.cmpf ogt, %175, %176 : vector<2x1x8xf32>
    %cst_93 = arith.constant -1.000000e+30 : f32
    %178 = vector.shape_cast %177 : vector<2x1x8xi1> to vector<2x1x8xi1>
    %179 = vector.broadcast %178 : vector<2x1x8xi1> to vector<2x2x8xi1>
    %180 = vector.broadcast %cst_93 : f32 to vector<2x2x8xf32>
    %181 = arith.select %179, %180, %174 : vector<2x2x8xi1>, vector<2x2x8xf32>
    %cst_94 = arith.constant dense<0xFF800000> : vector<2x2xf32>
    %182 = vector.multi_reduction <maximumf>, %181, %cst_94 [2] : vector<2x2x8xf32> to vector<2x2xf32>
    %183 = vector.shape_cast %182 : vector<2x2xf32> to vector<2x2x1xf32>
    %184 = vector.broadcast %183 : vector<2x2x1xf32> to vector<2x2x8xf32>
    %185 = arith.subf %181, %184 : vector<2x2x8xf32>
    %186 = math.exp %185 : vector<2x2x8xf32>
    %cst_95 = arith.constant dense<0.000000e+00> : vector<2x2xf32>
    %187 = vector.multi_reduction <add>, %186, %cst_95 [2] : vector<2x2x8xf32> to vector<2x2xf32>
    %188 = vector.shape_cast %187 : vector<2x2xf32> to vector<2x2x1xf32>
    %189 = vector.broadcast %188 : vector<2x2x1xf32> to vector<2x2x8xf32>
    %190 = arith.divf %186, %189 : vector<2x2x8xf32>
    %cst_96 = arith.constant dense<0.000000e+00> : vector<2x8xf32>
    %191 = vector.multi_reduction <add>, %190, %cst_96 [1] : vector<2x2x8xf32> to vector<2x8xf32>
    %cst_97 = arith.constant 2.000000e+00 : f32
    %192 = vector.broadcast %cst_97 : f32 to vector<2x8xf32>
    %193 = arith.divf %191, %192 : vector<2x8xf32>
    %cst_98 = arith.constant 9.99999971E-10 : f32
    %194 = vector.broadcast %cst_98 : f32 to vector<2x8xf32>
    %195 = arith.maximumf %193, %194 : vector<2x8xf32>
    %cst_99 = arith.constant dense<0.000000e+00> : vector<2xf32>
    %196 = vector.multi_reduction <add>, %195, %cst_99 [1] : vector<2x8xf32> to vector<2xf32>
    %197 = vector.shape_cast %196 : vector<2xf32> to vector<2x1xf32>
    %198 = vector.broadcast %197 : vector<2x1xf32> to vector<2x8xf32>
    %199 = arith.divf %195, %198 : vector<2x8xf32>
    %c0_100 = arith.constant 0 : index
    %c0_101 = arith.constant 0 : index
    %c0_102 = arith.constant 0 : index
    %200 = vector.load %arg9[%c0_100, %c0_101, %c0_102] : memref<1x2x8xf32, #tpu.memory_space<vmem>>, vector<1x2x8xf32>
    %201 = vector.shape_cast %200 : vector<1x2x8xf32> to vector<2x8xf32>
    %202 = vector.shape_cast %199 : vector<2x8xf32> to vector<1x2x8xf32>
    tpu.vector_store %arg9[%c0_100, %c0_101, %c0_102], %202 {strides = array<i32>} : memref<1x2x8xf32, #tpu.memory_space<vmem>>, vector<1x2x8xf32>,
    %203 = math.log %199 : vector<2x8xf32>
    %c0_103 = arith.constant 0 : index
    %c0_104 = arith.constant 0 : index
    %c0_105 = arith.constant 0 : index
    %204 = vector.load %arg1[%c0_103, %c0_104, %c0_105] : memref<1x2x8xf32, #tpu.memory_space<vmem>>, vector<1x2x8xf32>
    %205 = vector.shape_cast %204 : vector<1x2x8xf32> to vector<2x8xf32>
    %206 = arith.addf %203, %205 : vector<2x8xf32>
    %207 = tpu.iota {dimensions = array<i32: 1>} : vector<2x8xi32>
    %cst_106 = arith.constant dense<0xFF800000> : vector<2xf32>
    %208 = vector.multi_reduction <maximumf>, %206, %cst_106 [1] : vector<2x8xf32> to vector<2xf32>
    %209 = vector.shape_cast %208 : vector<2xf32> to vector<2x1xf32>
    %210 = vector.broadcast %209 : vector<2x1xf32> to vector<2x8xf32>
    %211 = arith.cmpf oeq, %206, %210 : vector<2x8xf32>
    %c8_i32_107 = arith.constant 8 : i32
    %212 = vector.broadcast %c8_i32_107 : i32 to vector<2x8xi32>
    %213 = arith.select %211, %207, %212 : vector<2x8xi1>, vector<2x8xi32>
    %cst_108 = arith.constant dense<2147483647> : vector<2xi32>
    %214 = vector.multi_reduction <minsi>, %213, %cst_108 [1] : vector<2x8xi32> to vector<2xi32>
    %215 = vector.shape_cast %214 : vector<2xi32> to vector<2x1xi32>
    %216 = vector.broadcast %215 : vector<2x1xi32> to vector<2x8xi32>
    %217 = arith.cmpi eq, %207, %216 : vector<2x8xi32>
    %218 = arith.extui %217 : vector<2x8xi1> to vector<2x8xi32>
    %219 = arith.sitofp %218 : vector<2x8xi32> to vector<2x8xf32>
    %220 = arith.sitofp %215 : vector<2x1xi32> to vector<2x1xf32>
    %c0_109 = arith.constant 0 : index
    %c0_110 = arith.constant 0 : index
    %c0_111 = arith.constant 0 : index
    %221 = vector.load %arg10[%c0_109, %c0_110, %c0_111] : memref<1x2x1xf32, #tpu.memory_space<vmem>>, vector<1x2x1xf32>
    %222 = vector.shape_cast %221 : vector<1x2x1xf32> to vector<2x1xf32>
    %223 = vector.shape_cast %220 : vector<2x1xf32> to vector<1x2x1xf32>
    tpu.vector_store %arg10[%c0_109, %c0_110, %c0_111], %223 {strides = array<i32>} : memref<1x2x1xf32, #tpu.memory_space<vmem>>, vector<1x2x1xf32>,
    %c0_i32_112 = arith.constant 0 : i32
    %224 = arith.cmpi eq, %arg0, %c0_i32_112 : i32
    %225 = arith.extui %224 : i1 to i32
    %c0_i32_113 = arith.constant 0 : i32
    %226 = arith.cmpi ne, %225, %c0_i32_113 : i32
    scf.if %226 {
      %c0_124 = arith.constant 0 : index
      %c0_125 = arith.constant 0 : index
      %236 = vector.load %arg15[%c0_124, %c0_125] : memref<2x8xf32, #tpu.memory_space<vmem>>, vector<2x8xf32>
      tpu.vector_store %arg15[%c0_124, %c0_125], %219 {strides = array<i32>} : memref<2x8xf32, #tpu.memory_space<vmem>>, vector<2x8xf32>,
    } else {
    }
    %c0_114 = arith.constant 0 : index
    %c0_115 = arith.constant 0 : index
    %227 = vector.load %arg14[%c0_114, %c0_115] : memref<2x8xf32, #tpu.memory_space<vmem>>, vector<2x8xf32>
    %228 = arith.maximumf %227, %219 : vector<2x8xf32>
    %c0_116 = arith.constant 0 : index
    %c0_117 = arith.constant 0 : index
    %229 = vector.load %arg14[%c0_116, %c0_117] : memref<2x8xf32, #tpu.memory_space<vmem>>, vector<2x8xf32>
    tpu.vector_store %arg14[%c0_116, %c0_117], %228 {strides = array<i32>} : memref<2x8xf32, #tpu.memory_space<vmem>>, vector<2x8xf32>,
    %230 = vector.shape_cast %219 : vector<2x8xf32> to vector<2x8x1xf32>
    %c0_118 = arith.constant 0 : index
    %c0_119 = arith.constant 0 : index
    %c0_120 = arith.constant 0 : index
    %231 = vector.load %arg2[%c0_118, %c0_119, %c0_120] : memref<2x8x32xf32, #tpu.memory_space<vmem>>, vector<2x8x32xf32>
    %232 = vector.broadcast %230 : vector<2x8x1xf32> to vector<2x8x32xf32>
    %233 = arith.mulf %232, %231 : vector<2x8x32xf32>
    %cst_121 = arith.constant dense<0.000000e+00> : vector<2x32xf32>
    %234 = vector.multi_reduction <add>, %233, %cst_121 [1] : vector<2x8x32xf32> to vector<2x32xf32>
    %c0_122 = arith.constant 0 : index
    %c0_123 = arith.constant 0 : index
    %235 = vector.load %arg13[%c0_122, %c0_123] : memref<2x32xf32, #tpu.memory_space<vmem>>, vector<2x32xf32>
    tpu.vector_store %arg13[%c0_122, %c0_123], %234 {strides = array<i32>} : memref<2x32xf32, #tpu.memory_space<vmem>>, vector<2x32xf32>,
    return
  }
  func.func @transform_0(%arg0: i32) -> (i32, i32, i32) {
    %c0_i32 = arith.constant 0 : i32
    %c0_i32_0 = arith.constant 0 : i32
    %c0_i32_1 = arith.constant 0 : i32
    return %arg0, %c0_i32, %c0_i32_0 : i32, i32, i32
  }
  func.func @transform_1(%arg0: i32) -> (i32, i32, i32) {
    %c0_i32 = arith.constant 0 : i32
    %c0_i32_0 = arith.constant 0 : i32
    %c0_i32_1 = arith.constant 0 : i32
    %c0_i32_2 = arith.constant 0 : i32
    return %c0_i32, %c0_i32_0, %c0_i32_1 : i32, i32, i32
  }
  func.func @transform_2(%arg0: i32) -> (i32, i32, i32) {
    %c0_i32 = arith.constant 0 : i32
    %c0_i32_0 = arith.constant 0 : i32
    %c0_i32_1 = arith.constant 0 : i32
    %c0_i32_2 = arith.constant 0 : i32
    return %c0_i32, %c0_i32_0, %c0_i32_1 : i32, i32, i32
  }
  func.func @transform_3(%arg0: i32) -> (i32, i32, i32) {
    %c0_i32 = arith.constant 0 : i32
    %c0_i32_0 = arith.constant 0 : i32
    %c0_i32_1 = arith.constant 0 : i32
    %c0_i32_2 = arith.constant 0 : i32
    return %c0_i32, %c0_i32_0, %c0_i32_1 : i32, i32, i32
  }
  func.func @transform_4(%arg0: i32) -> (i32, i32, i32) {
    %c0_i32 = arith.constant 0 : i32
    %c0_i32_0 = arith.constant 0 : i32
    %c0_i32_1 = arith.constant 0 : i32
    %c0_i32_2 = arith.constant 0 : i32
    return %c0_i32, %c0_i32_0, %c0_i32_1 : i32, i32, i32
  }
  func.func @transform_5(%arg0: i32) -> (i32, i32, i32) {
    %c0_i32 = arith.constant 0 : i32
    %c0_i32_0 = arith.constant 0 : i32
    %c0_i32_1 = arith.constant 0 : i32
    %c0_i32_2 = arith.constant 0 : i32
    return %c0_i32, %c0_i32_0, %c0_i32_1 : i32, i32, i32
  }
  func.func @transform_6(%arg0: i32) -> (i32, i32) {
    %c0_i32 = arith.constant 0 : i32
    %c0_i32_0 = arith.constant 0 : i32
    %c0_i32_1 = arith.constant 0 : i32
    return %c0_i32, %c0_i32_0 : i32, i32
  }
  func.func @transform_7(%arg0: i32) -> (i32, i32) {
    %c0_i32 = arith.constant 0 : i32
    %c0_i32_0 = arith.constant 0 : i32
    %c0_i32_1 = arith.constant 0 : i32
    return %c0_i32, %c0_i32_0 : i32, i32
  }
  func.func @transform_8(%arg0: i32) -> (i32, i32, i32) {
    %c0_i32 = arith.constant 0 : i32
    %c0_i32_0 = arith.constant 0 : i32
    %c0_i32_1 = arith.constant 0 : i32
    return %arg0, %c0_i32, %c0_i32_0 : i32, i32, i32
  }
  func.func @transform_9(%arg0: i32) -> (i32, i32, i32) {
    %c0_i32 = arith.constant 0 : i32
    %c0_i32_0 = arith.constant 0 : i32
    %c0_i32_1 = arith.constant 0 : i32
    return %arg0, %c0_i32, %c0_i32_0 : i32, i32, i32
  }
}

</mosaic_0001>

<llo_original>
// kernel: tspnet_forward.3
$region0: #{tspnet_forward.3}
  #allocation0 [shape = 'u32[]', space=smem, size = 0x4, offset = 0x4, fixed_abs, tag = 'smem constant byte address 0x4 - core index']
  #allocation1 [shape = 'u32[144,128]{1,0:T(1,128)}', space=vmem, size = 0x12000, scoped, tag = 'internal scratch']
  #allocation2 [shape = 'f32[3,2,32]{2,1,0:T(2,128)}', space=vmem, size = 0xc00, scoped, tag = 'scratch operand']
  #allocation3 [shape = 'f32[3,2,32]{2,1,0:T(2,128)}', space=vmem, size = 0xc00, scoped, tag = 'scratch operand']
  #allocation4 [shape = 'f32[2,32]{1,0:T(2,128)}', space=vmem, size = 0x400, scoped, tag = 'scratch operand']
  #allocation5 [shape = 'f32[2,8]{1,0:T(2,128)}', space=vmem, size = 0x400, scoped, tag = 'scratch operand']
  #allocation6 [shape = 'f32[2,8]{1,0:T(2,128)}', space=vmem, size = 0x400, scoped, tag = 'scratch operand']
  %s0 = inlined_call_operand.vmem [shape: f32[9,2,8], index: 0, kind: input, shape index: {}]
  %s1 = inlined_call_operand.vmem [shape: f32[2,8,32], index: 1, kind: input, shape index: {}]
  %s2 = inlined_call_operand.vmem [shape: bf16[2,8,32], index: 2, kind: input, shape index: {}]
  %s3 = inlined_call_operand.vmem [shape: bf16[3,32,128], index: 3, kind: input, shape index: {}]
  %s4 = inlined_call_operand.vmem [shape: bf16[3,32,128], index: 4, kind: input, shape index: {}]
  %s5 = inlined_call_operand.vmem [shape: f32[3,1,128], index: 5, kind: input, shape index: {}]
  %s6 = inlined_call_operand.vmem [shape: bf16[32,32], index: 6, kind: input, shape index: {}]
  %s7 = inlined_call_operand.vmem [shape: f32[1,32], index: 7, kind: input, shape index: {}]
  %s8 = inlined_call_operand.vmem [shape: f32[9,2,8], index: 8, kind: output, shape index: {0}]
  %s9 = inlined_call_operand.vmem [shape: f32[9,2,1], index: 9, kind: output, shape index: {1}]
  %10 = xla_tuple %s8, %s9
  %s11 = sld [smem:[#allocation0]]
  $region81: #{tspnet_forward.3} parent=0
    _
  %s13 = ssub.s32 1, %s11
  %s14 = scalar_select 0, %s13, %s11
  loop: start=0, step=1, limit=11
  $region2: #{tspnet_forward.3} parent=0 // loop_pre_header
    _
  $region3: #{tspnet_forward.3} parent=0 // loop_header
    %s16 = sphi 0, %s20
    %p17 = scmp.ge.s32.totalorder %s16, 11
    %s26 = sphi 0, %s28
    %s29 = sphi 0, %s26
    %s30 = sphi 0, %s29
    %s46 = sphi 0, %s30
    %s50 = sphi 0, %s50
    %s52 = sphi 0, %s50
    %s53 = sphi 0, %s52
    %s67 = sphi 0, %s53
    %s71 = sphi 0, %s71
    %s73 = sphi 0, %s71
    %s74 = sphi 0, %s73
    %s88 = sphi 0, %s74
    %s92 = sphi 0, %s92
    %s94 = sphi 0, %s92
    %s95 = sphi 0, %s94
    %s109 = sphi 0, %s95
    %s113 = sphi 0, %s113
    %s115 = sphi 0, %s113
    %s116 = sphi 0, %s115
    %s130 = sphi 0, %s116
    %s134 = sphi 0, %s134
    %s136 = sphi 0, %s134
    %s137 = sphi 0, %s136
    %s151 = sphi 0, %s137
    %s155 = sphi 0, %s155
    %s157 = sphi 0, %s155
    %s158 = sphi 0, %s157
    %s172 = sphi 0, %s158
    %s176 = sphi 0, %s176
    %s178 = sphi 0, %s176
    %s179 = sphi 0, %s178
    %s193 = sphi 0, %s179
    %s199 = sphi 0, %s201
    %s202 = sphi 0, %s199
    %s203 = sphi 0, %s202
    %s219 = sphi 0, %s203
    %s225 = sphi 0, %s227
    %s228 = sphi 0, %s225
    %s229 = sphi 0, %s228
    %s245 = sphi 0, %s229
  $region4: #{tspnet_forward.3} parent=0 // loop_header_branch
    %19 = sbr.rel (%p17) target = $region8
  $region5: #{tspnet_forward.3} parent=0 // loop_body
    %s21 = ssub.s32 %s16, 1
    %s22 = ssub.s32 %s16, 2
    %s23 = sadd.s32 %s16, 1
    %s24 = ssub.s32 %s16, %s23
    %p25 = scmp.eq.s32.totalorder %s24, 0
    %s27 = sadd.s32 %s26, 1
    %s28 = scalar_select %p25, %s26, %s27
    %p31 = pneg %p25
    %p32 = scmp.eq.s32.totalorder %s16, 8
    %p33 = por %p31, %p32
    %p34 = scmp.ne.s32.totalorder %s26, %s29
    %p35 = scmp.eq.s32.totalorder %s16, 0
    %p36 = por %p34, %p35
    %p37 = scmp.ne.s32.totalorder %s26, %s29
    %p38 = scmp.eq.s32.totalorder %s21, 8
    %p39 = por %p37, %p38
    %p40 = scmp.ne.s32.totalorder %s29, %s30
    %p41 = scmp.eq.s32.totalorder %s21, 0
    %p42 = por %p40, %p41
    %p43 = scmp.ne.s32.totalorder %s29, %s30
    %p44 = scmp.eq.s32.totalorder %s22, 8
    %p45 = por %p43, %p44
    %p47 = scmp.ne.s32.totalorder %s30, %s46
    %p48 = scmp.eq.s32.totalorder %s22, 0
    %p49 = por %p47, %p48
    %s51 = sadd.s32 %s50, 1
    %p54 = scmp.eq.s32.totalorder %s16, 8
    %p55 = scmp.ne.s32.totalorder %s50, %s52
    %p56 = scmp.eq.s32.totalorder %s16, 0
    %p57 = por %p55, %p56
    %p58 = scmp.ne.s32.totalorder %s50, %s52
    %p59 = scmp.eq.s32.totalorder %s21, 8
    %p60 = por %p58, %p59
    %p61 = scmp.ne.s32.totalorder %s52, %s53
    %p62 = scmp.eq.s32.totalorder %s21, 0
    %p63 = por %p61, %p62
    %p64 = scmp.ne.s32.totalorder %s52, %s53
    %p65 = scmp.eq.s32.totalorder %s22, 8
    %p66 = por %p64, %p65
    %p68 = scmp.ne.s32.totalorder %s53, %s67
    %p69 = scmp.eq.s32.totalorder %s22, 0
    %p70 = por %p68, %p69
    %s72 = sadd.s32 %s71, 1
    %p75 = scmp.eq.s32.totalorder %s16, 8
    %p76 = scmp.ne.s32.totalorder %s71, %s73
    %p77 = scmp.eq.s32.totalorder %s16, 0
    %p78 = por %p76, %p77
    %p79 = scmp.ne.s32.totalorder %s71, %s73
    %p80 = scmp.eq.s32.totalorder %s21, 8
    %p81 = por %p79, %p80
    %p82 = scmp.ne.s32.totalorder %s73, %s74
    %p83 = scmp.eq.s32.totalorder %s21, 0
    %p84 = por %p82, %p83
    %p85 = scmp.ne.s32.totalorder %s73, %s74
    %p86 = scmp.eq.s32.totalorder %s22, 8
    %p87 = por %p85, %p86
    %p89 = scmp.ne.s32.totalorder %s74, %s88
    %p90 = scmp.eq.s32.totalorder %s22, 0
    %p91 = por %p89, %p90
    %s93 = sadd.s32 %s92, 1
    %p96 = scmp.eq.s32.totalorder %s16, 8
    %p97 = scmp.ne.s32.totalorder %s92, %s94
    %p98 = scmp.eq.s32.totalorder %s16, 0
    %p99 = por %p97, %p98
    %p100 = scmp.ne.s32.totalorder %s92, %s94
    %p101 = scmp.eq.s32.totalorder %s21, 8
    %p102 = por %p100, %p101
    %p103 = scmp.ne.s32.totalorder %s94, %s95
    %p104 = scmp.eq.s32.totalorder %s21, 0
    %p105 = por %p103, %p104
    %p106 = scmp.ne.s32.totalorder %s94, %s95
    %p107 = scmp.eq.s32.totalorder %s22, 8
    %p108 = por %p106, %p107
    %p110 = scmp.ne.s32.totalorder %s95, %s109
    %p111 = scmp.eq.s32.totalorder %s22, 0
    %p112 = por %p110, %p111
    %s114 = sadd.s32 %s113, 1
    %p117 = scmp.eq.s32.totalorder %s16, 8
    %p118 = scmp.ne.s32.totalorder %s113, %s115
    %p119 = scmp.eq.s32.totalorder %s16, 0
    %p120 = por %p118, %p119
    %p121 = scmp.ne.s32.totalorder %s113, %s115
    %p122 = scmp.eq.s32.totalorder %s21, 8
    %p123 = por %p121, %p122
    %p124 = scmp.ne.s32.totalorder %s115, %s116
    %p125 = scmp.eq.s32.totalorder %s21, 0
    %p126 = por %p124, %p125
    %p127 = scmp.ne.s32.totalorder %s115, %s116
    %p128 = scmp.eq.s32.totalorder %s22, 8
    %p129 = por %p127, %p128
    %p131 = scmp.ne.s32.totalorder %s116, %s130
    %p132 = scmp.eq.s32.totalorder %s22, 0
    %p133 = por %p131, %p132
    %s135 = sadd.s32 %s134, 1
    %p138 = scmp.eq.s32.totalorder %s16, 8
    %p139 = scmp.ne.s32.totalorder %s134, %s136
    %p140 = scmp.eq.s32.totalorder %s16, 0
    %p141 = por %p139, %p140
    %p142 = scmp.ne.s32.totalorder %s134, %s136
    %p143 = scmp.eq.s32.totalorder %s21, 8
    %p144 = por %p142, %p143
    %p145 = scmp.ne.s32.totalorder %s136, %s137
    %p146 = scmp.eq.s32.totalorder %s21, 0
    %p147 = por %p145, %p146
    %p148 = scmp.ne.s32.totalorder %s136, %s137
    %p149 = scmp.eq.s32.totalorder %s22, 8
    %p150 = por %p148, %p149
    %p152 = scmp.ne.s32.totalorder %s137, %s151
    %p153 = scmp.eq.s32.totalorder %s22, 0
    %p154 = por %p152, %p153
    %s156 = sadd.s32 %s155, 1
    %p159 = scmp.eq.s32.totalorder %s16, 8
    %p160 = scmp.ne.s32.totalorder %s155, %s157
    %p161 = scmp.eq.s32.totalorder %s16, 0
    %p162 = por %p160, %p161
    %p163 = scmp.ne.s32.totalorder %s155, %s157
    %p164 = scmp.eq.s32.totalorder %s21, 8
    %p165 = por %p163, %p164
    %p166 = scmp.ne.s32.totalorder %s157, %s158
    %p167 = scmp.eq.s32.totalorder %s21, 0
    %p168 = por %p166, %p167
    %p169 = scmp.ne.s32.totalorder %s157, %s158
    %p170 = scmp.eq.s32.totalorder %s22, 8
    %p171 = por %p169, %p170
    %p173 = scmp.ne.s32.totalorder %s158, %s172
    %p174 = scmp.eq.s32.totalorder %s22, 0
    %p175 = por %p173, %p174
    %s177 = sadd.s32 %s176, 1
    %p180 = scmp.eq.s32.totalorder %s16, 8
    %p181 = scmp.ne.s32.totalorder %s176, %s178
    %p182 = scmp.eq.s32.totalorder %s16, 0
    %p183 = por %p181, %p182
    %p184 = scmp.ne.s32.totalorder %s176, %s178
    %p185 = scmp.eq.s32.totalorder %s21, 8
    %p186 = por %p184, %p185
    %p187 = scmp.ne.s32.totalorder %s178, %s179
    %p188 = scmp.eq.s32.totalorder %s21, 0
    %p189 = por %p187, %p188
    %p190 = scmp.ne.s32.totalorder %s178, %s179
    %p191 = scmp.eq.s32.totalorder %s22, 8
    %p192 = por %p190, %p191
    %p194 = scmp.ne.s32.totalorder %s179, %s193
    %p195 = scmp.eq.s32.totalorder %s22, 0
    %p196 = por %p194, %p195
    %s197 = ssub.s32 %s16, %s23
    %p198 = scmp.eq.s32.totalorder %s197, 0
    %s200 = sadd.s32 %s199, 1
    %s201 = scalar_select %p198, %s199, %s200
    %p204 = pneg %p198
    %p205 = scmp.eq.s32.totalorder %s16, 8
    %p206 = por %p204, %p205
    %p207 = scmp.ne.s32.totalorder %s199, %s202
    %p208 = scmp.eq.s32.totalorder %s16, 0
    %p209 = por %p207, %p208
    %p210 = scmp.ne.s32.totalorder %s199, %s202
    %p211 = scmp.eq.s32.totalorder %s21, 8
    %p212 = por %p210, %p211
    %p213 = scmp.ne.s32.totalorder %s202, %s203
    %p214 = scmp.eq.s32.totalorder %s21, 0
    %p215 = por %p213, %p214
    %p216 = scmp.ne.s32.totalorder %s202, %s203
    %p217 = scmp.eq.s32.totalorder %s22, 8
    %p218 = por %p216, %p217
    %p220 = scmp.ne.s32.totalorder %s203, %s219
    %p221 = scmp.eq.s32.totalorder %s22, 0
    %p222 = por %p220, %p221
    %s223 = ssub.s32 %s16, %s23
    %p224 = scmp.eq.s32.totalorder %s223, 0
    %s226 = sadd.s32 %s225, 1
    %s227 = scalar_select %p224, %s225, %s226
    %p230 = pneg %p224
    %p231 = scmp.eq.s32.totalorder %s16, 8
    %p232 = por %p230, %p231
    %p233 = scmp.ne.s32.totalorder %s225, %s228
    %p234 = scmp.eq.s32.totalorder %s16, 0
    %p235 = por %p233, %p234
    %p236 = scmp.ne.s32.totalorder %s225, %s228
    %p237 = scmp.eq.s32.totalorder %s21, 8
    %p238 = por %p236, %p237
    %p239 = scmp.ne.s32.totalorder %s228, %s229
    %p240 = scmp.eq.s32.totalorder %s21, 0
    %p241 = por %p239, %p240
    %p242 = scmp.ne.s32.totalorder %s228, %s229
    %p243 = scmp.eq.s32.totalorder %s22, 8
    %p244 = por %p242, %p243
    %p246 = scmp.ne.s32.totalorder %s229, %s245
    %p247 = scmp.eq.s32.totalorder %s22, 0
    %p248 = por %p246, %p247
    %p249 = scmp.le.s32.totalorder 1, %s16
    %p250 = scmp.lt.s32.totalorder %s16, 10
    %p251 = pnand %p249, %p250
    %p252 = pneg %p251
    // Predicated region
    $region9: #{tspnet_forward.3} parent=5 // pred_check
      _
    $region10: #{tspnet_forward.3} parent=5 // pred_check_branch
      %254 = sbr.rel (%p251) target = $region12
    $region11: #{tspnet_forward.3} parent=5 // pred_region
      %s255 = ssub.s32 %s16, 1
      // Predicated region
      $region13: #{tspnet_forward.3} parent=11 // pred_check
        %p256 = pneg %p63
      $region14: #{tspnet_forward.3} parent=11 // pred_check_branch
        %258 = sbr.rel (%p256) target = $region16
      $region15: #{tspnet_forward.3} parent=11 // pred_region
        _
      $region16: #{tspnet_forward.3} parent=11 // pred_fallthru
        _
      // Predicated region
      $region17: #{tspnet_forward.3} parent=11 // pred_check
        %p259 = pneg %p84
      $region18: #{tspnet_forward.3} parent=11 // pred_check_branch
        %261 = sbr.rel (%p259) target = $region20
      $region19: #{tspnet_forward.3} parent=11 // pred_region
        _
      $region20: #{tspnet_forward.3} parent=11 // pred_fallthru
        _
      // Predicated region
      $region21: #{tspnet_forward.3} parent=11 // pred_check
        %p262 = pneg %p105
      $region22: #{tspnet_forward.3} parent=11 // pred_check_branch
        %264 = sbr.rel (%p262) target = $region24
      $region23: #{tspnet_forward.3} parent=11 // pred_region
        _
      $region24: #{tspnet_forward.3} parent=11 // pred_fallthru
        _
      // Predicated region
      $region25: #{tspnet_forward.3} parent=11 // pred_check
        %p265 = pneg %p126
      $region26: #{tspnet_forward.3} parent=11 // pred_check_branch
        %267 = sbr.rel (%p265) target = $region28
      $region27: #{tspnet_forward.3} parent=11 // pred_region
        _
      $region28: #{tspnet_forward.3} parent=11 // pred_fallthru
        _
      // Predicated region
      $region29: #{tspnet_forward.3} parent=11 // pred_check
        %p268 = pneg %p147
      $region30: #{tspnet_forward.3} parent=11 // pred_check_branch
        %270 = sbr.rel (%p268) target = $region32
      $region31: #{tspnet_forward.3} parent=11 // pred_region
        _
      $region32: #{tspnet_forward.3} parent=11 // pred_fallthru
        _
      // Predicated region
      $region33: #{tspnet_forward.3} parent=11 // pred_check
        %p271 = pneg %p168
      $region34: #{tspnet_forward.3} parent=11 // pred_check_branch
        %273 = sbr.rel (%p271) target = $region36
      $region35: #{tspnet_forward.3} parent=11 // pred_region
        _
      $region36: #{tspnet_forward.3} parent=11 // pred_fallthru
        _
      // Predicated region
      $region37: #{tspnet_forward.3} parent=11 // pred_check
        %p274 = pneg %p189
      $region38: #{tspnet_forward.3} parent=11 // pred_check_branch
        %276 = sbr.rel (%p274) target = $region40
      $region39: #{tspnet_forward.3} parent=11 // pred_region
        _
      $region40: #{tspnet_forward.3} parent=11 // pred_fallthru
        _
    $region12: #{tspnet_forward.3} parent=5 // pred_fallthru
      _
    %p277 = scmp.lt.s32.totalorder %s16, 9
    // Predicated region
    $region41: #{tspnet_forward.3} parent=5 // pred_check
      %p278 = pneg %p277
    $region42: #{tspnet_forward.3} parent=5 // pred_check_branch
      %280 = sbr.rel (%p278) target = $region44
    $region43: #{tspnet_forward.3} parent=5 // pred_region
      // Predicated region
      $region45: #{tspnet_forward.3} parent=43 // pred_check
        %p281 = pneg %p36
      $region46: #{tspnet_forward.3} parent=43 // pred_check_branch
        %283 = sbr.rel (%p281) target = $region48
      $region47: #{tspnet_forward.3} parent=43 // pred_region
        %p284 = scmp.lt.s32.totalorder %s16, 8
        %s285 = scalar_select %p284, %s16, 8
        %s286 = smul.addr %s285, 2
        %s287 = scalar_lea.vmem %s0, %s286
      $region48: #{tspnet_forward.3} parent=43 // pred_fallthru
        _
    $region44: #{tspnet_forward.3} parent=5 // pred_fallthru
      _
    %p288 = scmp.le.s32.totalorder 1, %s16
    %p289 = scmp.lt.s32.totalorder %s16, 10
    %p290 = pnand %p288, %p289
    %p291 = pneg %p290
    // Predicated region
    $region49: #{tspnet_forward.3} parent=5 // pred_check
      _
    $region50: #{tspnet_forward.3} parent=5 // pred_check_branch
      %293 = sbr.rel (%p290) target = $region52
    $region51: #{tspnet_forward.3} parent=5 // pred_region
      %s294 = ssub.s32 %s16, 1
      %p295 = scmp.lt.s32.totalorder %s21, 8
      %s296 = scalar_select %p295, %s21, 8
      %s297 = smul.addr %s296, 2
      %s298 = scalar_lea.vmem %s0, %s297
      %p299 = pneg %p42
      %p300 = pneg %p39
      %p301 = pneg %p63
      %p302 = pneg %p60
      %p303 = pneg %p84
      %p304 = pneg %p81
      %p305 = pneg %p105
      %p306 = pneg %p102
      %p307 = pneg %p126
      %p308 = pneg %p123
      %p309 = pneg %p147
      %p310 = pneg %p144
      %p311 = pneg %p168
      %p312 = pneg %p165
      %p313 = pneg %p189
      %p314 = pneg %p186
      %p315 = pneg %p215
      %p316 = pneg %p212
      %p317 = scmp.lt.s32.totalorder %s21, 8
      %s318 = scalar_select %p317, %s21, 8
      %s319 = smul.addr %s318, 2
      %s320 = scalar_lea.vmem %s8, %s319
      %p321 = pneg %p241
      %p322 = pneg %p238
      %p323 = scmp.lt.s32.totalorder %s21, 8
      %s324 = scalar_select %p323, %s21, 8
      %s325 = smul.addr %s324, 2
      %s326 = scalar_lea.vmem %s9, %s325
      %p327 = scmp.lt.s32.totalorder %s21, 8
      %s328 = scalar_select %p327, %s21, 8
      %s329 = smul.addr %s328, 2
      %s330 = scalar_lea.vmem %s0, %s329
      %p331 = scmp.lt.s32.totalorder %s21, 8
      %s332 = scalar_select %p331, %s21, 8
      %s333 = smul.addr %s332, 2
      %s334 = scalar_lea.vmem %s8, %s333
      %p335 = scmp.lt.s32.totalorder %s21, 8
      %s336 = scalar_select %p335, %s21, 8
      %s337 = smul.addr %s336, 2
      %s338 = scalar_lea.vmem %s9, %s337
      %p340 = scmp.eq.s32.totalorder %s21, 0
      // Predicated region
      $region53: #{tspnet_forward.3} parent=51 // pred_check
        %p341 = pneg %p340
      $region54: #{tspnet_forward.3} parent=51 // pred_check_branch
        %343 = sbr.rel (%p341) target = $region56
      $region55: #{tspnet_forward.3} parent=51 // pred_region
        %vm344 = vcmask 254976
        %345 = vst.msk [vmem:[#allocation2] sm:$0x3] %vm344, 0.0
        %346 = vst.msk [vmem:[#allocation2 + $0x2] sm:$0x3] %vm344, 0.0
        %347 = vst.msk [vmem:[#allocation2 + $0x4] sm:$0x3] %vm344, 0.0
        %348 = vst.msk [vmem:[#allocation3] sm:$0x3] %vm344, 0.0
        %349 = vst.msk [vmem:[#allocation3 + $0x2] sm:$0x3] %vm344, 0.0
        %350 = vst.msk [vmem:[#allocation3 + $0x4] sm:$0x3] %vm344, 0.0
        %351 = vst.msk [vmem:[#allocation4] sm:$0x3] %vm344, 0.0
        %vm352 = vcmask 58368
        %353 = vst.msk [vmem:[#allocation5] sm:$0x3] %vm352, 0.0
        %354 = vst.msk [vmem:[#allocation6] sm:$0x3] %vm352, 0.0
      $region56: #{tspnet_forward.3} parent=51 // pred_fallthru
        _
      %p355 = scmp.eq.s32.totalorder %s21, 8
      %s356 = scalar_select %p355, 1, 0
      %s357 = scvt.s32.f32 %s356
      %v358 = vld [vmem:[#allocation5] sm:$0x3]
      %v359 = vld [vmem:[#allocation6] sm:$0x3]
      %v360 = vstv %s357
      %v361 = vmul.f32 %v360, %v359
      %v362 = vsub.f32 %v358, %v361
      %v363 = vld [vmem:[#allocation4] sm:$0x3]
      %v364 = vpack.c.bf16 %v363, %v363
      %v365 = vld [vmem:[%s3] sm:$0xf]
      %v366 = vld [vmem:[%s3 + $0x4] sm:$0xf]
      %v367 = vld [vmem:[%s3 + $0x8] sm:$0xf]
      %v368 = vld [vmem:[%s3 + $0xc] sm:$0xf]
      %v369 = vld [vmem:[#allocation2] sm:$0x3]
      %v370 = vpack.c.bf16 %v369, %v369
      %v371 = vld [vmem:[%s4] sm:$0xf]
      %v372 = vld [vmem:[%s4 + $0x4] sm:$0xf]
      %v373 = vld [vmem:[%s4 + $0x8] sm:$0xf]
      %v374 = vld [vmem:[%s4 + $0xc] sm:$0xf]
      %v379 = vunpack.c.l.b16 %v371
      %v380 = vunpack.c.l.b16 %v372
      %v381 = vunpack.c.l.b16 %v373
      %v382 = vunpack.c.l.b16 %v374
      %v383 = vpack.c.b16 %v380, %v379
      %v384 = vpack.c.b16 %v382, %v381
      %vm387 = vcmask 261120
      %v389 = vsel %vm387, %v370, 0
      %391 = vmatprep.subr.bf16.mxu0 0
      %392 = vmatpush1.bf16.msra.mxu0 0
      %393 = vmatprep.subr.bf16.mxu0 0
      %394 = vmatpush1.bf16.msra.mxu0 0
      %395 = vmatprep.subr.bf16.mxu0 0
      %396 = vmatpush1.bf16.msra.mxu0 0
      %397 = vmatprep.subr.bf16.mxu0 0
      %398 = vmatpush1.bf16.msra.mxu0 0
      %399 = vmatprep.subr.bf16.mxu0 0
      %400 = vmatpush1.bf16.msra.mxu0 0
      %401 = vmatprep.subr.bf16.mxu0 0
      %402 = vmatpush1.bf16.msra.mxu0 0
      %403 = vmatprep.subr.bf16.mxu0 0
      %404 = vmatpush1.bf16.msra.mxu0 %v384
      %405 = vmatprep.subr.bf16.mxu0 0
      %406 = vmatpush1.bf16.msra.mxu0 %v383
      %407 = vmatprep.subr.bf16.mxu0 0
      %408 = vmatpush2.bf16.msra.mxu0 0
      %409 = vmatprep.subr.bf16.mxu0 0
      %410 = vmatpush2.bf16.msra.mxu0 0
      %411 = vmatprep.subr.bf16.mxu0 0
      %412 = vmatpush2.bf16.msra.mxu0 0
      %413 = vmatprep.subr.bf16.mxu0 0
      %414 = vmatpush2.bf16.msra.mxu0 0
      %415 = vmatprep.subr.bf16.mxu0 0
      %416 = vmatpush2.bf16.msra.mxu0 0
      %417 = vmatprep.subr.bf16.mxu0 0
      %418 = vmatpush2.bf16.msra.mxu0 0
      %419 = vmatprep.subr.bf16.mxu0 0
      %420 = vmatpush2.bf16.msra.mxu0 0
      %421 = vmatprep.subr.bf16.mxu0 0
      %422 = vmatpush2.bf16.msra.mxu0 0
      %423 = vmatprep.mubr.bf16.mxu0 0
      %424 = vmatmul.mubr.bf16.gmra.mxu0 %v389
      %v425 = vpop.f32.mrf.mxu0
      %v426 = vadd.f32 0.0, %v425
      %v427 = vpop.f32.mrf.mxu0
      %v428 = vpop.f32.mrf.mxu0
      %v429 = vpop.f32.mrf.mxu0
      %430 = vdwg.mxu0
      %v435 = vunpack.c.l.b16 %v365
      %v436 = vunpack.c.l.b16 %v366
      %v437 = vunpack.c.l.b16 %v367
      %v438 = vunpack.c.l.b16 %v368
      %v439 = vpack.c.b16 %v436, %v435
      %v440 = vpack.c.b16 %v438, %v437
      %v444 = vsel %vm387, %v364, 0
      %446 = vmatprep.subr.bf16.mxu0 0
      %447 = vmatpush1.bf16.msra.mxu0 0
      %448 = vmatprep.subr.bf16.mxu0 0
      %449 = vmatpush1.bf16.msra.mxu0 0
      %450 = vmatprep.subr.bf16.mxu0 0
      %451 = vmatpush1.bf16.msra.mxu0 0
      %452 = vmatprep.subr.bf16.mxu0 0
      %453 = vmatpush1.bf16.msra.mxu0 0
      %454 = vmatprep.subr.bf16.mxu0 0
      %455 = vmatpush1.bf16.msra.mxu0 0
      %456 = vmatprep.subr.bf16.mxu0 0
      %457 = vmatpush1.bf16.msra.mxu0 0
      %458 = vmatprep.subr.bf16.mxu0 0
      %459 = vmatpush1.bf16.msra.mxu0 %v440
      %460 = vmatprep.subr.bf16.mxu0 0
      %461 = vmatpush1.bf16.msra.mxu0 %v439
      %462 = vmatprep.subr.bf16.mxu0 0
      %463 = vmatpush2.bf16.msra.mxu0 0
      %464 = vmatprep.subr.bf16.mxu0 0
      %465 = vmatpush2.bf16.msra.mxu0 0
      %466 = vmatprep.subr.bf16.mxu0 0
      %467 = vmatpush2.bf16.msra.mxu0 0
      %468 = vmatprep.subr.bf16.mxu0 0
      %469 = vmatpush2.bf16.msra.mxu0 0
      %470 = vmatprep.subr.bf16.mxu0 0
      %471 = vmatpush2.bf16.msra.mxu0 0
      %472 = vmatprep.subr.bf16.mxu0 0
      %473 = vmatpush2.bf16.msra.mxu0 0
      %474 = vmatprep.subr.bf16.mxu0 0
      %475 = vmatpush2.bf16.msra.mxu0 0
      %476 = vmatprep.subr.bf16.mxu0 0
      %477 = vmatpush2.bf16.msra.mxu0 0
      %478 = vmatprep.mubr.bf16.mxu0 0
      %479 = vmatmul.mubr.bf16.gmra.mxu0 %v444
      %v480 = vpop.f32.mrf.mxu0
      %v481 = vadd.f32 %v426, %v480
      %v482 = vpop.f32.mrf.mxu0
      %v483 = vpop.f32.mrf.mxu0
      %v484 = vpop.f32.mrf.mxu0
      %485 = vdwg.mxu0
      %v486 = vld [vmem:[%s5] sm:$0x1]
      %v488 = vlaneseq
      %v489 = vshrl.u32 %v488, 7
      %v490 = vsub.s32 0, %v489
      %v491 = vrot.slane %v486, %v490
      %v493 = vadd.f32 %v481, %v491
      %v494 = vxor.u32 %v493, 2147483648
      %v495 = vmul.f32 %v494, 1.442695
      %v496 = vpow.pop %v495
      %v497 = vadd.f32 %v496, 1.0
      %v498 = vrcp.pop %v497
      %v499 = vmul.f32 1.0, %v498
      %v500 = vtanh.pop %v493
      %v501 = vld [vmem:[#allocation3] sm:$0x3]
      %503 = vrot.lane.b32.xlu0 %v501, 32
      %v504 = vpop.permute.xlu0 %503
      %v506 = vmul.f32 %v499, %v504
      %508 = vrot.lane.b32.xlu0 %v500, 64
      %v509 = vpop.permute.xlu0 %508
      %v511 = vmul.f32 %v499, %v509
      %513 = vrot.lane.b32.xlu0 %v511, 32
      %v514 = vpop.permute.xlu0 %513
      %v516 = vadd.f32 %v506, %v514
      %v517 = vtanh.pop %v516
      %519 = vrot.lane.b32.xlu0 %v517, 64
      %v520 = vpop.permute.xlu0 %519
      %v522 = vmul.f32 %v499, %v520
      %524 = vrot.lane.b32.xlu0 %v522, 32
      %v525 = vpop.permute.xlu0 %524
      %vm527 = vcmask 254976
      %528 = vst.msk [vmem:[#allocation2] sm:$0x3] %vm527, %v525
      %530 = vrot.lane.b32.xlu0 %v516, 96
      %v531 = vpop.permute.xlu0 %530
      %533 = vst.msk [vmem:[#allocation3] sm:$0x3] %vm527, %v531
      %v534 = vpack.c.bf16 %v522, %v522
      %s535 = scalar_lea.vmem %s3, 16
      %v536 = vld [vmem:[%s535] sm:$0xf]
      %v537 = vld [vmem:[%s535 + $0x4] sm:$0xf]
      %v538 = vld [vmem:[%s535 + $0x8] sm:$0xf]
      %v539 = vld [vmem:[%s535 + $0xc] sm:$0xf]
      %s540 = scalar_lea.vmem [#allocation2], 2
      %v541 = vld [vmem:[%s540] sm:$0x3]
      %v542 = vpack.c.bf16 %v541, %v541
      %s543 = scalar_lea.vmem %s4, 16
      %v544 = vld [vmem:[%s543] sm:$0xf]
      %v545 = vld [vmem:[%s543 + $0x4] sm:$0xf]
      %v546 = vld [vmem:[%s543 + $0x8] sm:$0xf]
      %v547 = vld [vmem:[%s543 + $0xc] sm:$0xf]
      %v552 = vunpack.c.l.b16 %v544
      %v553 = vunpack.c.l.b16 %v545
      %v554 = vunpack.c.l.b16 %v546
      %v555 = vunpack.c.l.b16 %v547
      %v556 = vpack.c.b16 %v553, %v552
      %v557 = vpack.c.b16 %v555, %v554
      %v561 = vsel %vm387, %v542, 0
      %563 = vmatprep.subr.bf16.mxu0 0
      %564 = vmatpush1.bf16.msra.mxu0 0
      %565 = vmatprep.subr.bf16.mxu0 0
      %566 = vmatpush1.bf16.msra.mxu0 0
      %567 = vmatprep.subr.bf16.mxu0 0
      %568 = vmatpush1.bf16.msra.mxu0 0
      %569 = vmatprep.subr.bf16.mxu0 0
      %570 = vmatpush1.bf16.msra.mxu0 0
      %571 = vmatprep.subr.bf16.mxu0 0
      %572 = vmatpush1.bf16.msra.mxu0 0
      %573 = vmatprep.subr.bf16.mxu0 0
      %574 = vmatpush1.bf16.msra.mxu0 0
      %575 = vmatprep.subr.bf16.mxu0 0
      %576 = vmatpush1.bf16.msra.mxu0 %v557
      %577 = vmatprep.subr.bf16.mxu0 0
      %578 = vmatpush1.bf16.msra.mxu0 %v556
      %579 = vmatprep.subr.bf16.mxu0 0
      %580 = vmatpush2.bf16.msra.mxu0 0
      %581 = vmatprep.subr.bf16.mxu0 0
      %582 = vmatpush2.bf16.msra.mxu0 0
      %583 = vmatprep.subr.bf16.mxu0 0
      %584 = vmatpush2.bf16.msra.mxu0 0
      %585 = vmatprep.subr.bf16.mxu0 0
      %586 = vmatpush2.bf16.msra.mxu0 0
      %587 = vmatprep.subr.bf16.mxu0 0
      %588 = vmatpush2.bf16.msra.mxu0 0
      %589 = vmatprep.subr.bf16.mxu0 0
      %590 = vmatpush2.bf16.msra.mxu0 0
      %591 = vmatprep.subr.bf16.mxu0 0
      %592 = vmatpush2.bf16.msra.mxu0 0
      %593 = vmatprep.subr.bf16.mxu0 0
      %594 = vmatpush2.bf16.msra.mxu0 0
      %595 = vmatprep.mubr.bf16.mxu0 0
      %596 = vmatmul.mubr.bf16.gmra.mxu0 %v561
      %v597 = vpop.f32.mrf.mxu0
      %v598 = vadd.f32 0.0, %v597
      %v599 = vpop.f32.mrf.mxu0
      %v600 = vpop.f32.mrf.mxu0
      %v601 = vpop.f32.mrf.mxu0
      %602 = vdwg.mxu0
      %604 = vrot.lane.b32.xlu0 %v534, 32
      %v605 = vpop.permute.xlu0 %604
      %v610 = vunpack.c.l.b16 %v536
      %v611 = vunpack.c.l.b16 %v537
      %v612 = vunpack.c.l.b16 %v538
      %v613 = vunpack.c.l.b16 %v539
      %v614 = vpack.c.b16 %v611, %v610
      %v615 = vpack.c.b16 %v613, %v612
      %v619 = vsel %vm387, %v605, 0
      %621 = vmatprep.subr.bf16.mxu0 0
      %622 = vmatpush1.bf16.msra.mxu0 0
      %623 = vmatprep.subr.bf16.mxu0 0
      %624 = vmatpush1.bf16.msra.mxu0 0
      %625 = vmatprep.subr.bf16.mxu0 0
      %626 = vmatpush1.bf16.msra.mxu0 0
      %627 = vmatprep.subr.bf16.mxu0 0
      %628 = vmatpush1.bf16.msra.mxu0 0
      %629 = vmatprep.subr.bf16.mxu0 0
      %630 = vmatpush1.bf16.msra.mxu0 0
      %631 = vmatprep.subr.bf16.mxu0 0
      %632 = vmatpush1.bf16.msra.mxu0 0
      %633 = vmatprep.subr.bf16.mxu0 0
      %634 = vmatpush1.bf16.msra.mxu0 %v615
      %635 = vmatprep.subr.bf16.mxu0 0
      %636 = vmatpush1.bf16.msra.mxu0 %v614
      %637 = vmatprep.subr.bf16.mxu0 0
      %638 = vmatpush2.bf16.msra.mxu0 0
      %639 = vmatprep.subr.bf16.mxu0 0
      %640 = vmatpush2.bf16.msra.mxu0 0
      %641 = vmatprep.subr.bf16.mxu0 0
      %642 = vmatpush2.bf16.msra.mxu0 0
      %643 = vmatprep.subr.bf16.mxu0 0
      %644 = vmatpush2.bf16.msra.mxu0 0
      %645 = vmatprep.subr.bf16.mxu0 0
      %646 = vmatpush2.bf16.msra.mxu0 0
      %647 = vmatprep.subr.bf16.mxu0 0
      %648 = vmatpush2.bf16.msra.mxu0 0
      %649 = vmatprep.subr.bf16.mxu0 0
      %650 = vmatpush2.bf16.msra.mxu0 0
      %651 = vmatprep.subr.bf16.mxu0 0
      %652 = vmatpush2.bf16.msra.mxu0 0
      %653 = vmatprep.mubr.bf16.mxu0 0
      %654 = vmatmul.mubr.bf16.gmra.mxu0 %v619
      %v655 = vpop.f32.mrf.mxu0
      %v656 = vadd.f32 %v598, %v655
      %v657 = vpop.f32.mrf.mxu0
      %v658 = vpop.f32.mrf.mxu0
      %v659 = vpop.f32.mrf.mxu0
      %660 = vdwg.mxu0
      %s661 = scalar_lea.vmem %s5, 1
      %v662 = vld [vmem:[%s661] sm:$0x1]
      %v664 = vlaneseq
      %v665 = vshrl.u32 %v664, 7
      %v666 = vsub.s32 0, %v665
      %v667 = vrot.slane %v662, %v666
      %v669 = vadd.f32 %v656, %v667
      %v670 = vxor.u32 %v669, 2147483648
      %v671 = vmul.f32 %v670, 1.442695
      %v672 = vpow.pop %v671
      %v673 = vadd.f32 %v672, 1.0
      %v674 = vrcp.pop %v673
      %v675 = vmul.f32 1.0, %v674
      %v676 = vtanh.pop %v669
      %s677 = scalar_lea.vmem [#allocation3], 2
      %v678 = vld [vmem:[%s677] sm:$0x3]
      %680 = vrot.lane.b32.xlu0 %v678, 32
      %v681 = vpop.permute.xlu0 %680
      %v683 = vmul.f32 %v675, %v681
      %685 = vrot.lane.b32.xlu0 %v676, 64
      %v686 = vpop.permute.xlu0 %685
      %v688 = vmul.f32 %v675, %v686
      %690 = vrot.lane.b32.xlu0 %v688, 32
      %v691 = vpop.permute.xlu0 %690
      %v693 = vadd.f32 %v683, %v691
      %v694 = vtanh.pop %v693
      %696 = vrot.lane.b32.xlu0 %v694, 64
      %v697 = vpop.permute.xlu0 %696
      %v699 = vmul.f32 %v675, %v697
      %701 = vrot.lane.b32.xlu0 %v699, 32
      %v702 = vpop.permute.xlu0 %701
      %704 = vst.msk [vmem:[%s540] sm:$0x3] %vm527, %v702
      %706 = vrot.lane.b32.xlu0 %v693, 96
      %v707 = vpop.permute.xlu0 %706
      %709 = vst.msk [vmem:[%s677] sm:$0x3] %vm527, %v707
      %v710 = vpack.c.bf16 %v699, %v699
      %s711 = scalar_lea.vmem %s3, 32
      %v712 = vld [vmem:[%s711] sm:$0xf]
      %v713 = vld [vmem:[%s711 + $0x4] sm:$0xf]
      %v714 = vld [vmem:[%s711 + $0x8] sm:$0xf]
      %v715 = vld [vmem:[%s711 + $0xc] sm:$0xf]
      %s716 = scalar_lea.vmem [#allocation2], 4
      %v717 = vld [vmem:[%s716] sm:$0x3]
      %v718 = vpack.c.bf16 %v717, %v717
      %s719 = scalar_lea.vmem %s4, 32
      %v720 = vld [vmem:[%s719] sm:$0xf]
      %v721 = vld [vmem:[%s719 + $0x4] sm:$0xf]
      %v722 = vld [vmem:[%s719 + $0x8] sm:$0xf]
      %v723 = vld [vmem:[%s719 + $0xc] sm:$0xf]
      %v728 = vunpack.c.l.b16 %v720
      %v729 = vunpack.c.l.b16 %v721
      %v730 = vunpack.c.l.b16 %v722
      %v731 = vunpack.c.l.b16 %v723
      %v732 = vpack.c.b16 %v729, %v728
      %v733 = vpack.c.b16 %v731, %v730
      %v737 = vsel %vm387, %v718, 0
      %739 = vmatprep.subr.bf16.mxu0 0
      %740 = vmatpush1.bf16.msra.mxu0 0
      %741 = vmatprep.subr.bf16.mxu0 0
      %742 = vmatpush1.bf16.msra.mxu0 0
      %743 = vmatprep.subr.bf16.mxu0 0
      %744 = vmatpush1.bf16.msra.mxu0 0
      %745 = vmatprep.subr.bf16.mxu0 0
      %746 = vmatpush1.bf16.msra.mxu0 0
      %747 = vmatprep.subr.bf16.mxu0 0
      %748 = vmatpush1.bf16.msra.mxu0 0
      %749 = vmatprep.subr.bf16.mxu0 0
      %750 = vmatpush1.bf16.msra.mxu0 0
      %751 = vmatprep.subr.bf16.mxu0 0
      %752 = vmatpush1.bf16.msra.mxu0 %v733
      %753 = vmatprep.subr.bf16.mxu0 0
      %754 = vmatpush1.bf16.msra.mxu0 %v732
      %755 = vmatprep.subr.bf16.mxu0 0
      %756 = vmatpush2.bf16.msra.mxu0 0
      %757 = vmatprep.subr.bf16.mxu0 0
      %758 = vmatpush2.bf16.msra.mxu0 0
      %759 = vmatprep.subr.bf16.mxu0 0
      %760 = vmatpush2.bf16.msra.mxu0 0
      %761 = vmatprep.subr.bf16.mxu0 0
      %762 = vmatpush2.bf16.msra.mxu0 0
      %763 = vmatprep.subr.bf16.mxu0 0
      %764 = vmatpush2.bf16.msra.mxu0 0
      %765 = vmatprep.subr.bf16.mxu0 0
      %766 = vmatpush2.bf16.msra.mxu0 0
      %767 = vmatprep.subr.bf16.mxu0 0
      %768 = vmatpush2.bf16.msra.mxu0 0
      %769 = vmatprep.subr.bf16.mxu0 0
      %770 = vmatpush2.bf16.msra.mxu0 0
      %771 = vmatprep.mubr.bf16.mxu0 0
      %772 = vmatmul.mubr.bf16.gmra.mxu0 %v737
      %v773 = vpop.f32.mrf.mxu0
      %v774 = vadd.f32 0.0, %v773
      %v775 = vpop.f32.mrf.mxu0
      %v776 = vpop.f32.mrf.mxu0
      %v777 = vpop.f32.mrf.mxu0
      %778 = vdwg.mxu0
      %780 = vrot.lane.b32.xlu0 %v710, 32
      %v781 = vpop.permute.xlu0 %780
      %v786 = vunpack.c.l.b16 %v712
      %v787 = vunpack.c.l.b16 %v713
      %v788 = vunpack.c.l.b16 %v714
      %v789 = vunpack.c.l.b16 %v715
      %v790 = vpack.c.b16 %v787, %v786
      %v791 = vpack.c.b16 %v789, %v788
      %v795 = vsel %vm387, %v781, 0
      %797 = vmatprep.subr.bf16.mxu0 0
      %798 = vmatpush1.bf16.msra.mxu0 0
      %799 = vmatprep.subr.bf16.mxu0 0
      %800 = vmatpush1.bf16.msra.mxu0 0
      %801 = vmatprep.subr.bf16.mxu0 0
      %802 = vmatpush1.bf16.msra.mxu0 0
      %803 = vmatprep.subr.bf16.mxu0 0
      %804 = vmatpush1.bf16.msra.mxu0 0
      %805 = vmatprep.subr.bf16.mxu0 0
      %806 = vmatpush1.bf16.msra.mxu0 0
      %807 = vmatprep.subr.bf16.mxu0 0
      %808 = vmatpush1.bf16.msra.mxu0 0
      %809 = vmatprep.subr.bf16.mxu0 0
      %810 = vmatpush1.bf16.msra.mxu0 %v791
      %811 = vmatprep.subr.bf16.mxu0 0
      %812 = vmatpush1.bf16.msra.mxu0 %v790
      %813 = vmatprep.subr.bf16.mxu0 0
      %814 = vmatpush2.bf16.msra.mxu0 0
      %815 = vmatprep.subr.bf16.mxu0 0
      %816 = vmatpush2.bf16.msra.mxu0 0
      %817 = vmatprep.subr.bf16.mxu0 0
      %818 = vmatpush2.bf16.msra.mxu0 0
      %819 = vmatprep.subr.bf16.mxu0 0
      %820 = vmatpush2.bf16.msra.mxu0 0
      %821 = vmatprep.subr.bf16.mxu0 0
      %822 = vmatpush2.bf16.msra.mxu0 0
      %823 = vmatprep.subr.bf16.mxu0 0
      %824 = vmatpush2.bf16.msra.mxu0 0
      %825 = vmatprep.subr.bf16.mxu0 0
      %826 = vmatpush2.bf16.msra.mxu0 0
      %827 = vmatprep.subr.bf16.mxu0 0
      %828 = vmatpush2.bf16.msra.mxu0 0
      %829 = vmatprep.mubr.bf16.mxu0 0
      %830 = vmatmul.mubr.bf16.gmra.mxu0 %v795
      %v831 = vpop.f32.mrf.mxu0
      %v832 = vadd.f32 %v774, %v831
      %v833 = vpop.f32.mrf.mxu0
      %v834 = vpop.f32.mrf.mxu0
      %v835 = vpop.f32.mrf.mxu0
      %836 = vdwg.mxu0
      %s837 = scalar_lea.vmem %s5, 2
      %v838 = vld [vmem:[%s837] sm:$0x1]
      %v840 = vlaneseq
      %v841 = vshrl.u32 %v840, 7
      %v842 = vsub.s32 0, %v841
      %v843 = vrot.slane %v838, %v842
      %v845 = vadd.f32 %v832, %v843
      %v846 = vxor.u32 %v845, 2147483648
      %v847 = vmul.f32 %v846, 1.442695
      %v848 = vpow.pop %v847
      %v849 = vadd.f32 %v848, 1.0
      %v850 = vrcp.pop %v849
      %v851 = vmul.f32 1.0, %v850
      %v852 = vtanh.pop %v845
      %s853 = scalar_lea.vmem [#allocation3], 4
      %v854 = vld [vmem:[%s853] sm:$0x3]
      %856 = vrot.lane.b32.xlu0 %v854, 32
      %v857 = vpop.permute.xlu0 %856
      %v859 = vmul.f32 %v851, %v857
      %861 = vrot.lane.b32.xlu0 %v852, 64
      %v862 = vpop.permute.xlu0 %861
      %v864 = vmul.f32 %v851, %v862
      %866 = vrot.lane.b32.xlu0 %v864, 32
      %v867 = vpop.permute.xlu0 %866
      %v869 = vadd.f32 %v859, %v867
      %v870 = vtanh.pop %v869
      %872 = vrot.lane.b32.xlu0 %v870, 64
      %v873 = vpop.permute.xlu0 %872
      %v875 = vmul.f32 %v851, %v873
      %877 = vrot.lane.b32.xlu0 %v875, 32
      %v878 = vpop.permute.xlu0 %877
      %880 = vst.msk [vmem:[%s716] sm:$0x3] %vm527, %v878
      %882 = vrot.lane.b32.xlu0 %v869, 96
      %v883 = vpop.permute.xlu0 %882
      %885 = vst.msk [vmem:[%s853] sm:$0x3] %vm527, %v883
      %v886 = vpack.c.bf16 %v875, %v875
      %v887 = vld [vmem:[%s6] sm:$0xf]
      %v888 = vld [vmem:[%s6 + $0x4] sm:$0xf]
      %v889 = vld [vmem:[%s6 + $0x8] sm:$0xf]
      %v890 = vld [vmem:[%s6 + $0xc] sm:$0xf]
      %v891 = vld [vmem:[%s7] sm:$0x1]
      %v893 = vlaneseq
      %v894 = vshrl.u32 %v893, 7
      %v895 = vsub.s32 0, %v894
      %v896 = vrot.slane %v891, %v895
      %899 = vrot.lane.b32.xlu0 %v886, 32
      %v900 = vpop.permute.xlu0 %899
      %v905 = vunpack.c.l.b16 %v887
      %v906 = vunpack.c.l.b16 %v888
      %v907 = vunpack.c.l.b16 %v889
      %v908 = vunpack.c.l.b16 %v890
      %v909 = vpack.c.b16 %v906, %v905
      %v910 = vpack.c.b16 %v908, %v907
      %v914 = vsel %vm387, %v900, 0
      %916 = vmatprep.subr.bf16.mxu0 0
      %917 = vmatpush1.bf16.msra.mxu0 0
      %918 = vmatprep.subr.bf16.mxu0 0
      %919 = vmatpush1.bf16.msra.mxu0 0
      %920 = vmatprep.subr.bf16.mxu0 0
      %921 = vmatpush1.bf16.msra.mxu0 0
      %922 = vmatprep.subr.bf16.mxu0 0
      %923 = vmatpush1.bf16.msra.mxu0 0
      %924 = vmatprep.subr.bf16.mxu0 0
      %925 = vmatpush1.bf16.msra.mxu0 0
      %926 = vmatprep.subr.bf16.mxu0 0
      %927 = vmatpush1.bf16.msra.mxu0 0
      %928 = vmatprep.subr.bf16.mxu0 0
      %929 = vmatpush1.bf16.msra.mxu0 %v910
      %930 = vmatprep.subr.bf16.mxu0 0
      %931 = vmatpush1.bf16.msra.mxu0 %v909
      %932 = vmatprep.subr.bf16.mxu0 0
      %933 = vmatpush2.bf16.msra.mxu0 0
      %934 = vmatprep.subr.bf16.mxu0 0
      %935 = vmatpush2.bf16.msra.mxu0 0
      %936 = vmatprep.subr.bf16.mxu0 0
      %937 = vmatpush2.bf16.msra.mxu0 0
      %938 = vmatprep.subr.bf16.mxu0 0
      %939 = vmatpush2.bf16.msra.mxu0 0
      %940 = vmatprep.subr.bf16.mxu0 0
      %941 = vmatpush2.bf16.msra.mxu0 0
      %942 = vmatprep.subr.bf16.mxu0 0
      %943 = vmatpush2.bf16.msra.mxu0 0
      %944 = vmatprep.subr.bf16.mxu0 0
      %945 = vmatpush2.bf16.msra.mxu0 0
      %946 = vmatprep.subr.bf16.mxu0 0
      %947 = vmatpush2.bf16.msra.mxu0 0
      %948 = vmatprep.mubr.bf16.mxu0 0
      %949 = vmatmul.mubr.bf16.gmra.mxu0 %v914
      %v950 = vpop.f32.mrf.mxu0
      %v951 = vadd.f32 %v896, %v950
      %v952 = vpop.f32.mrf.mxu0
      %v953 = vpop.f32.mrf.mxu0
      %v954 = vpop.f32.mrf.mxu0
      %955 = vdwg.mxu0
      %v956 = vpack.c.bf16 %v951, %v951
      %v957 = vld [vmem:[%s2] sm:$0xf]
      %v958 = vld [vmem:[%s2 + $0x4] sm:$0xf]
      %v961 = vunpack.c.l.s4 1966171168
      %v962 = vunpack.c.0.s8 %v961
      %v963 = vlaneseq
      %v964 = vshrl.u32 %v963, 7
      %v965 = vsub.s32 %v962, %v964
      %v966 = vrot.slane %v956, %v965
      %v968 = vunpack.c.l.s4 1966171168
      %v969 = vunpack.c.0.s8 %v968
      %v970 = vlaneseq
      %v971 = vshrl.u32 %v970, 7
      %v972 = vsub.s32 %v969, %v971
      %v973 = vrot.slane %v966, %v972
      %v974 = vunpack.i.l.s16 %v973
      %v975 = vunpack.i.h.s16 %v973
      %v976 = vpack.i.b16 %v974, %v974
      %v977 = vlaneseq
      %v978 = vshrl.u32 %v977, 7
      %v979 = vsub.s32 0, %v978
      %v980 = vrot.slane %v976, %v979
      %vm981 = vcmask 130048
      %v983 = vsel %vm981, %v980, 0
      %v986 = vsel %vm981, %v957, 0
      %988 = vmatprep.subr.bf16.mxu0 0
      %989 = vmatpush1.bf16.xpose.msra.mxu0 0
      %990 = vmatprep.subr.bf16.mxu0 0
      %991 = vmatpush1.bf16.xpose.msra.mxu0 0
      %992 = vmatprep.subr.bf16.mxu0 0
      %993 = vmatpush1.bf16.xpose.msra.mxu0 0
      %994 = vmatprep.subr.bf16.mxu0 0
      %995 = vmatpush1.bf16.xpose.msra.mxu0 0
      %996 = vmatprep.subr.bf16.mxu0 0
      %997 = vmatpush1.bf16.xpose.msra.mxu0 0
      %998 = vmatprep.subr.bf16.mxu0 0
      %999 = vmatpush1.bf16.xpose.msra.mxu0 0
      %1000 = vmatprep.subr.bf16.mxu0 0
      %1001 = vmatpush1.bf16.xpose.msra.mxu0 0
      %1002 = vmatprep.subr.bf16.mxu0 0
      %1003 = vmatpush1.bf16.xpose.msra.mxu0 %v986
      %1004 = vmatprep.subr.bf16.mxu0 0
      %1005 = vmatpush2.bf16.xpose.msra.mxu0 0
      %1006 = vmatprep.subr.bf16.mxu0 0
      %1007 = vmatpush2.bf16.xpose.msra.mxu0 0
      %1008 = vmatprep.subr.bf16.mxu0 0
      %1009 = vmatpush2.bf16.xpose.msra.mxu0 0
      %1010 = vmatprep.subr.bf16.mxu0 0
      %1011 = vmatpush2.bf16.xpose.msra.mxu0 0
      %1012 = vmatprep.subr.bf16.mxu0 0
      %1013 = vmatpush2.bf16.xpose.msra.mxu0 0
      %1014 = vmatprep.subr.bf16.mxu0 0
      %1015 = vmatpush2.bf16.xpose.msra.mxu0 0
      %1016 = vmatprep.subr.bf16.mxu0 0
      %1017 = vmatpush2.bf16.xpose.msra.mxu0 0
      %1018 = vmatprep.subr.bf16.mxu0 0
      %1019 = vmatpush2.bf16.xpose.msra.mxu0 0
      %1020 = vmatprep.mubr.bf16.mxu0 0
      %1021 = vmatmul.mubr.bf16.gmra.mxu0 %v983
      %v1022 = vpop.f32.mrf.mxu0
      %v1023 = vadd.f32 0.0, %v1022
      %v1024 = vpop.f32.mrf.mxu0
      %v1025 = vpop.f32.mrf.mxu0
      %v1026 = vpop.f32.mrf.mxu0
      %1027 = vdwg.mxu0
      %v1028 = vpack.i.b16 %v975, %v975
      %v1029 = vlaneseq
      %v1030 = vshrl.u32 %v1029, 7
      %v1031 = vsub.s32 0, %v1030
      %v1032 = vrot.slane %v1028, %v1031
      %v1034 = vsel %vm981, %v1032, 0
      %v1037 = vsel %vm981, %v958, 0
      %1039 = vmatprep.subr.bf16.mxu0 0
      %1040 = vmatpush1.bf16.xpose.msra.mxu0 0
      %1041 = vmatprep.subr.bf16.mxu0 0
      %1042 = vmatpush1.bf16.xpose.msra.mxu0 0
      %1043 = vmatprep.subr.bf16.mxu0 0
      %1044 = vmatpush1.bf16.xpose.msra.mxu0 0
      %1045 = vmatprep.subr.bf16.mxu0 0
      %1046 = vmatpush1.bf16.xpose.msra.mxu0 0
      %1047 = vmatprep.subr.bf16.mxu0 0
      %1048 = vmatpush1.bf16.xpose.msra.mxu0 0
      %1049 = vmatprep.subr.bf16.mxu0 0
      %1050 = vmatpush1.bf16.xpose.msra.mxu0 0
      %1051 = vmatprep.subr.bf16.mxu0 0
      %1052 = vmatpush1.bf16.xpose.msra.mxu0 0
      %1053 = vmatprep.subr.bf16.mxu0 0
      %1054 = vmatpush1.bf16.xpose.msra.mxu0 %v1037
      %1055 = vmatprep.subr.bf16.mxu0 0
      %1056 = vmatpush2.bf16.xpose.msra.mxu0 0
      %1057 = vmatprep.subr.bf16.mxu0 0
      %1058 = vmatpush2.bf16.xpose.msra.mxu0 0
      %1059 = vmatprep.subr.bf16.mxu0 0
      %1060 = vmatpush2.bf16.xpose.msra.mxu0 0
      %1061 = vmatprep.subr.bf16.mxu0 0
      %1062 = vmatpush2.bf16.xpose.msra.mxu0 0
      %1063 = vmatprep.subr.bf16.mxu0 0
      %1064 = vmatpush2.bf16.xpose.msra.mxu0 0
      %1065 = vmatprep.subr.bf16.mxu0 0
      %1066 = vmatpush2.bf16.xpose.msra.mxu0 0
      %1067 = vmatprep.subr.bf16.mxu0 0
      %1068 = vmatpush2.bf16.xpose.msra.mxu0 0
      %1069 = vmatprep.subr.bf16.mxu0 0
      %1070 = vmatpush2.bf16.xpose.msra.mxu0 0
      %1071 = vmatprep.mubr.bf16.mxu0 0
      %1072 = vmatmul.mubr.bf16.gmra.mxu0 %v1034
      %v1073 = vpop.f32.mrf.mxu0
      %v1074 = vadd.f32 0.0, %v1073
      %v1075 = vpop.f32.mrf.mxu0
      %v1076 = vpop.f32.mrf.mxu0
      %v1077 = vpop.f32.mrf.mxu0
      %1078 = vdwg.mxu0
      %1079 = vrot.lane.b32.xlu0 %v980, 112
      %v1080 = vpop.permute.xlu0 %1079
      %v1082 = vunpack.c.l.b16 %v957
      %v1083 = vpack.c.b16 %v1082, %v1082
      %1084 = vrot.lane.b32.xlu0 %v1083, 112
      %v1085 = vpop.permute.xlu0 %1084
      %v1087 = vsel %vm981, %v1080, 0
      %v1090 = vsel %vm981, %v1085, 0
      %1092 = vmatprep.subr.bf16.mxu0 0
      %1093 = vmatpush1.bf16.xpose.msra.mxu0 0
      %1094 = vmatprep.subr.bf16.mxu0 0
      %1095 = vmatpush1.bf16.xpose.msra.mxu0 0
      %1096 = vmatprep.subr.bf16.mxu0 0
      %1097 = vmatpush1.bf16.xpose.msra.mxu0 0
      %1098 = vmatprep.subr.bf16.mxu0 0
      %1099 = vmatpush1.bf16.xpose.msra.mxu0 0
      %1100 = vmatprep.subr.bf16.mxu0 0
      %1101 = vmatpush1.bf16.xpose.msra.mxu0 0
      %1102 = vmatprep.subr.bf16.mxu0 0
      %1103 = vmatpush1.bf16.xpose.msra.mxu0 0
      %1104 = vmatprep.subr.bf16.mxu0 0
      %1105 = vmatpush1.bf16.xpose.msra.mxu0 0
      %1106 = vmatprep.subr.bf16.mxu0 0
      %1107 = vmatpush1.bf16.xpose.msra.mxu0 %v1090
      %1108 = vmatprep.subr.bf16.mxu0 0
      %1109 = vmatpush2.bf16.xpose.msra.mxu0 0
      %1110 = vmatprep.subr.bf16.mxu0 0
      %1111 = vmatpush2.bf16.xpose.msra.mxu0 0
      %1112 = vmatprep.subr.bf16.mxu0 0
      %1113 = vmatpush2.bf16.xpose.msra.mxu0 0
      %1114 = vmatprep.subr.bf16.mxu0 0
      %1115 = vmatpush2.bf16.xpose.msra.mxu0 0
      %1116 = vmatprep.subr.bf16.mxu0 0
      %1117 = vmatpush2.bf16.xpose.msra.mxu0 0
      %1118 = vmatprep.subr.bf16.mxu0 0
      %1119 = vmatpush2.bf16.xpose.msra.mxu0 0
      %1120 = vmatprep.subr.bf16.mxu0 0
      %1121 = vmatpush2.bf16.xpose.msra.mxu0 0
      %1122 = vmatprep.subr.bf16.mxu0 0
      %1123 = vmatpush2.bf16.xpose.msra.mxu0 0
      %1124 = vmatprep.mubr.bf16.mxu0 0
      %1125 = vmatmul.mubr.bf16.gmra.mxu0 %v1087
      %v1126 = vpop.f32.mrf.mxu0
      %v1127 = vadd.f32 0.0, %v1126
      %v1128 = vpop.f32.mrf.mxu0
      %v1129 = vpop.f32.mrf.mxu0
      %v1130 = vpop.f32.mrf.mxu0
      %1131 = vdwg.mxu0
      %1132 = vrot.lane.b32.xlu0 %v1032, 112
      %v1133 = vpop.permute.xlu0 %1132
      %v1135 = vunpack.c.l.b16 %v958
      %v1136 = vpack.c.b16 %v1135, %v1135
      %1137 = vrot.lane.b32.xlu0 %v1136, 112
      %v1138 = vpop.permute.xlu0 %1137
      %v1140 = vsel %vm981, %v1133, 0
      %v1143 = vsel %vm981, %v1138, 0
      %1145 = vmatprep.subr.bf16.mxu0 0
      %1146 = vmatpush1.bf16.xpose.msra.mxu0 0
      %1147 = vmatprep.subr.bf16.mxu0 0
      %1148 = vmatpush1.bf16.xpose.msra.mxu0 0
      %1149 = vmatprep.subr.bf16.mxu0 0
      %1150 = vmatpush1.bf16.xpose.msra.mxu0 0
      %1151 = vmatprep.subr.bf16.mxu0 0
      %1152 = vmatpush1.bf16.xpose.msra.mxu0 0
      %1153 = vmatprep.subr.bf16.mxu0 0
      %1154 = vmatpush1.bf16.xpose.msra.mxu0 0
      %1155 = vmatprep.subr.bf16.mxu0 0
      %1156 = vmatpush1.bf16.xpose.msra.mxu0 0
      %1157 = vmatprep.subr.bf16.mxu0 0
      %1158 = vmatpush1.bf16.xpose.msra.mxu0 0
      %1159 = vmatprep.subr.bf16.mxu0 0
      %1160 = vmatpush1.bf16.xpose.msra.mxu0 %v1143
      %1161 = vmatprep.subr.bf16.mxu0 0
      %1162 = vmatpush2.bf16.xpose.msra.mxu0 0
      %1163 = vmatprep.subr.bf16.mxu0 0
      %1164 = vmatpush2.bf16.xpose.msra.mxu0 0
      %1165 = vmatprep.subr.bf16.mxu0 0
      %1166 = vmatpush2.bf16.xpose.msra.mxu0 0
      %1167 = vmatprep.subr.bf16.mxu0 0
      %1168 = vmatpush2.bf16.xpose.msra.mxu0 0
      %1169 = vmatprep.subr.bf16.mxu0 0
      %1170 = vmatpush2.bf16.xpose.msra.mxu0 0
      %1171 = vmatprep.subr.bf16.mxu0 0
      %1172 = vmatpush2.bf16.xpose.msra.mxu0 0
      %1173 = vmatprep.subr.bf16.mxu0 0
      %1174 = vmatpush2.bf16.xpose.msra.mxu0 0
      %1175 = vmatprep.subr.bf16.mxu0 0
      %1176 = vmatpush2.bf16.xpose.msra.mxu0 0
      %1177 = vmatprep.mubr.bf16.mxu0 0
      %1178 = vmatmul.mubr.bf16.gmra.mxu0 %v1140
      %v1179 = vpop.f32.mrf.mxu0
      %v1180 = vadd.f32 0.0, %v1179
      %v1181 = vpop.f32.mrf.mxu0
      %v1182 = vpop.f32.mrf.mxu0
      %v1183 = vpop.f32.mrf.mxu0
      %1184 = vdwg.mxu0
      %v1187 = vrot.slane %v1127, 7
      %v1188 = vrot.slane %v1180, 7
      %vm1191 = vcmask 1040384
      %v1192 = vsel %vm1191, %v1023, %v1187
      %v1193 = vsel %vm1191, %v1074, %v1188
      %v1194 = vmul.f32 %v1192, 0.25
      %v1195 = vmul.f32 %v1193, 0.25
      %v1198 = vunpack.c.l.s4 1966171168
      %v1199 = vunpack.c.0.s8 %v1198
      %v1200 = vlaneseq
      %v1201 = vshrl.u32 %v1200, 7
      %v1202 = vsub.s32 %v1199, %v1201
      %v1203 = vrot.slane %v362, %v1202
      %v1204 = vcombine.high %v1203, %v1203
      %v1206 = vunpack.c.l.s4 1966171168
      %v1207 = vunpack.c.0.s8 %v1206
      %v1208 = vlaneseq
      %v1209 = vshrl.u32 %v1208, 7
      %v1210 = vsub.s32 %v1207, %v1209
      %v1211 = vrot.slane %v1203, %v1210
      %v1213 = vunpack.c.l.s4 1966171168
      %v1214 = vunpack.c.0.s8 %v1213
      %v1215 = vlaneseq
      %v1216 = vshrl.u32 %v1215, 7
      %v1217 = vsub.s32 %v1214, %v1216
      %v1218 = vrot.slane %v1204, %v1217
      %vm1221 = vcmp.gt.f32.partialorder %v1211, 0.5
      %vm1222 = vcmp.gt.f32.partialorder %v1218, 0.5
      %v1223 = vsel %vm1221, 1, 0
      %v1224 = vsel %vm1222, 1, 0
      %v1225 = vlaneseq
      %v1226 = vshrl.u32 %v1225, 7
      %v1227 = vsub.s32 0, %v1226
      %v1228 = vrot.slane %v1223, %v1227
      %v1229 = vlaneseq
      %v1230 = vshrl.u32 %v1229, 7
      %v1231 = vsub.s32 0, %v1230
      %v1232 = vrot.slane %v1224, %v1231
      %vm1233 = vcmp.eq.s32.totalorder %v1228, 1
      %vm1234 = vcmp.eq.s32.totalorder %v1232, 1
      %v1235 = vsel %vm1233, -1e+30, %v1194
      %v1236 = vsel %vm1234, -1e+30, %v1195
      %vm1237 = vcmask 58368
      %v1238 = vsel %vm1237, %v1235, -inf
      %1239 = vmax.xlane.f32.xlu0 %v1238
      %v1240 = vpop.xlane.xlu0 %1239
      %v1241 = vsel %vm1237, %v1236, -inf
      %1242 = vmax.xlane.f32.xlu0 %v1241
      %v1243 = vpop.xlane.xlu0 %1242
      %v1244 = vsub.f32 %v1235, %v1240
      %v1245 = vsub.f32 %v1236, %v1243
      %v1246 = vmul.f32 %v1244, 1.442695
      %v1247 = vpow.pop %v1246
      %v1248 = vmul.f32 %v1245, 1.442695
      %v1249 = vpow.pop %v1248
      %v1250 = vsel %vm1237, %v1247, 0.0
      %1251 = vadd.xlane.f32.xlu0 %v1250
      %v1252 = vpop.xlane.xlu0 %1251
      %v1253 = vsel %vm1237, %v1249, 0.0
      %1254 = vadd.xlane.f32.xlu0 %v1253
      %v1255 = vpop.xlane.xlu0 %1254
      %v1256 = vrcp.pop %v1252
      %v1257 = vmul.f32 %v1247, %v1256
      %v1258 = vrcp.pop %v1255
      %v1259 = vmul.f32 %v1249, %v1258
      %v1260 = vsel %vm1237, %v1257, 0.0
      %v1261 = vrot.slane %v1260, 4
      %v1262 = vadd.f32 %v1260, %v1261
      %v1263 = vrot.slane %v1262, 2
      %v1264 = vadd.f32 %v1262, %v1263
      %v1265 = vrot.slane %v1264, 1
      %v1266 = vadd.f32 %v1264, %v1265
      %v1267 = vsel %vm1237, %v1259, 0.0
      %v1268 = vrot.slane %v1267, 4
      %v1269 = vadd.f32 %v1267, %v1268
      %v1270 = vrot.slane %v1269, 2
      %v1271 = vadd.f32 %v1269, %v1270
      %v1272 = vrot.slane %v1271, 1
      %v1273 = vadd.f32 %v1271, %v1272
      %v1274 = vrcp.pop 2.0
      %v1275 = vmul.f32 %v1266, %v1274
      %v1276 = vmul.f32 %v1273, %v1274
      %v1277 = vmax.f32 %v1275, 1e-09
      %v1278 = vmax.f32 %v1276, 1e-09
      %vm1281 = vcmask 1041409
      %v1282 = vsel %vm1281, %v1278, %v1277
      %v1284 = vsel %vm1237, %v1282, 0.0
      %1285 = vadd.xlane.f32.xlu0 %v1284
      %v1286 = vpop.xlane.xlu0 %1285
      %v1288 = vrot.slane %v1286, 1
      %v1291 = vrcp.pop %v1286
      %v1292 = vmul.f32 %v1277, %v1291
      %v1293 = vrcp.pop %v1288
      %v1294 = vmul.f32 %v1278, %v1293
      %v1297 = vrot.slane %v1294, 7
      %v1298 = vsel %vm1281, %v1297, %v1292
      %1300 = vst.msk [vmem:[%s334] sm:$0x3] %vm1237, %v1298
      %v1301 = vlog2.pop %v1292
      %v1302 = vmul.f32 %v1301, 0.6931472
      %v1303 = vlog2.pop %v1294
      %v1304 = vmul.f32 %v1303, 0.6931472
      %v1305 = vld [vmem:[%s330] sm:$0x3]
      %v1307 = vrot.slane %v1305, 1
      %v1310 = vadd.f32 %v1302, %v1305
      %v1311 = vadd.f32 %v1304, %v1307
      %v1312 = vlaneseq
      %v1313 = vand.u32 %v1312, 127
      %v1316 = vrot.slane %v1311, 7
      %v1317 = vsel %vm1281, %v1316, %v1310
      %v1319 = vsel %vm1237, %v1317, -inf
      %1320 = vmax.xlane.f32.xlu0 %v1319
      %v1321 = vpop.xlane.xlu0 %1320
      %v1323 = vrot.slane %v1321, 1
      %vm1326 = vcmp.eq.f32.partialorder %v1310, %v1321
      %vm1327 = vcmp.eq.f32.partialorder %v1311, %v1323
      %v1328 = vsel %vm1326, %v1313, 8
      %v1329 = vsel %vm1327, %v1313, 8
      %v1330 = vrot.slane %v1329, 7
      %v1331 = vsel %vm1281, %v1330, %v1328
      %v1332 = vsel %vm1237, %v1331, 2147483647
      %v1333 = vand.u32 %v1332, 65535
      %v1334 = vshra.s32 %v1332, 16
      %v1335 = vcvt.s32.f32 %v1333
      %v1336 = vcvt.s32.f32 %v1334
      %1337 = vmin.xlane.f32.xlu0 %v1336
      %v1338 = vpop.xlane.xlu0 %1337
      %vm1339 = vcmp.eq.f32.partialorder %v1336, %v1338
      %v1340 = vsel %vm1339, %v1335, inf
      %1341 = vmin.xlane.f32.xlu0 %v1340
      %v1342 = vpop.xlane.xlu0 %1341
      %v1343 = vcvt.f32.s32 %v1342
      %v1344 = vcvt.f32.s32 %v1338
      %v1345 = vshll.u32 %v1344, 16
      %v1346 = vadd.s32 %v1345, %v1343
      %vm1347 = vcmp.eq.s32.totalorder %v1313, %v1346
      %v1348 = vsel %vm1347, 1, 0
      %v1349 = vcvt.s32.f32 %v1348
      %v1350 = vcvt.s32.f32 %v1346
      %vm1351 = vcmask 1024
      %1352 = vst.msk [vmem:[%s338] sm:$0x3] %vm1351, %v1350
      // Predicated region
      $region57: #{tspnet_forward.3} parent=51 // pred_check
        %p1353 = pneg %p340
      $region58: #{tspnet_forward.3} parent=51 // pred_check_branch
        %1355 = sbr.rel (%p1353) target = $region60
      $region59: #{tspnet_forward.3} parent=51 // pred_region
        %1356 = vst.msk [vmem:[#allocation6] sm:$0x3] %vm1237, %v1349
      $region60: #{tspnet_forward.3} parent=51 // pred_fallthru
        _
      %v1357 = vld [vmem:[#allocation5] sm:$0x3]
      %v1358 = vmax.f32 %v1357, %v1349
      %1359 = vst.msk [vmem:[#allocation5] sm:$0x3] %vm1237, %v1358
      %v1360 = vlaneseq
      %v1361 = vshrl.u32 %v1360, 7
      %v1362 = vsub.s32 0, %v1361
      %v1363 = vrot.slane %v1349, %v1362
      %1365 = vbcast.lane.b32.xlu0 %v1363, 256
      %v1366 = vpop.permute.xlu0 %1365
      %v1367 = vlaneseq
      %v1368 = vshrl.u32 %v1367, 7
      %v1369 = vsub.s32 1, %v1368
      %v1370 = vrot.slane %v1349, %v1369
      %1372 = vbcast.lane.b32.xlu0 %v1370, 256
      %v1373 = vpop.permute.xlu0 %1372
      %v1374 = vld [vmem:[%s1] sm:$0xff]
      %v1375 = vld [vmem:[%s1 + $0x8] sm:$0xff]
      %v1376 = vmul.f32 %v1366, %v1374
      %v1377 = vmul.f32 %v1373, %v1375
      %v1378 = vsel %vm387, %v1376, 0.0
      %v1379 = vrot.slane %v1378, 4
      %v1380 = vadd.f32 %v1378, %v1379
      %v1381 = vrot.slane %v1380, 2
      %v1382 = vadd.f32 %v1380, %v1381
      %v1383 = vrot.slane %v1382, 1
      %v1384 = vadd.f32 %v1382, %v1383
      %v1385 = vsel %vm387, %v1377, 0.0
      %v1386 = vrot.slane %v1385, 4
      %v1387 = vadd.f32 %v1385, %v1386
      %v1388 = vrot.slane %v1387, 2
      %v1389 = vadd.f32 %v1387, %v1388
      %v1390 = vrot.slane %v1389, 1
      %v1391 = vadd.f32 %v1389, %v1390
      %v1394 = vsel %vm1281, %v1391, %v1384
      %1396 = vst.msk [vmem:[#allocation4] sm:$0x3] %vm527, %v1394
      %p1397 = scmp.lt.s32.totalorder %s21, 8
      %s1398 = scalar_select %p1397, %s21, 8
      %s1399 = smul.addr %s1398, 2
      %s1400 = scalar_lea.vmem %s8, %s1399
      %p1401 = scmp.lt.s32.totalorder %s21, 8
      %s1402 = scalar_select %p1401, %s21, 8
      %s1403 = smul.addr %s1402, 2
      %s1404 = scalar_lea.vmem %s9, %s1403
      // Predicated region
      $region61: #{tspnet_forward.3} parent=51 // pred_check
        %p1405 = pneg %p212
      $region62: #{tspnet_forward.3} parent=51 // pred_check_branch
        %1407 = sbr.rel (%p1405) target = $region64
      $region63: #{tspnet_forward.3} parent=51 // pred_region
        _
      $region64: #{tspnet_forward.3} parent=51 // pred_fallthru
        _
      // Predicated region
      $region65: #{tspnet_forward.3} parent=51 // pred_check
        %p1408 = pneg %p238
      $region66: #{tspnet_forward.3} parent=51 // pred_check_branch
        %1410 = sbr.rel (%p1408) target = $region68
      $region67: #{tspnet_forward.3} parent=51 // pred_region
        _
      $region68: #{tspnet_forward.3} parent=51 // pred_fallthru
        _
    $region52: #{tspnet_forward.3} parent=5 // pred_fallthru
      _
    %p1411 = scmp.le.s32.totalorder 2, %s16
    // Predicated region
    $region69: #{tspnet_forward.3} parent=5 // pred_check
      %p1412 = pneg %p1411
    $region70: #{tspnet_forward.3} parent=5 // pred_check_branch
      %1414 = sbr.rel (%p1412) target = $region72
    $region71: #{tspnet_forward.3} parent=5 // pred_region
      %s1415 = ssub.s32 %s16, 2
      // Predicated region
      $region73: #{tspnet_forward.3} parent=71 // pred_check
        %p1416 = pneg %p218
      $region74: #{tspnet_forward.3} parent=71 // pred_check_branch
        %1418 = sbr.rel (%p1416) target = $region76
      $region75: #{tspnet_forward.3} parent=71 // pred_region
        %p1419 = scmp.lt.s32.totalorder %s22, 8
        %s1420 = scalar_select %p1419, %s22, 8
        %s1421 = smul.addr %s1420, 2
        %s1422 = scalar_lea.vmem %s8, %s1421
      $region76: #{tspnet_forward.3} parent=71 // pred_fallthru
        _
      // Predicated region
      $region77: #{tspnet_forward.3} parent=71 // pred_check
        %p1423 = pneg %p244
      $region78: #{tspnet_forward.3} parent=71 // pred_check_branch
        %1425 = sbr.rel (%p1423) target = $region80
      $region79: #{tspnet_forward.3} parent=71 // pred_region
        %p1426 = scmp.lt.s32.totalorder %s22, 8
        %s1427 = scalar_select %p1426, %s22, 8
        %s1428 = smul.addr %s1427, 2
        %s1429 = scalar_lea.vmem %s9, %s1428
      $region80: #{tspnet_forward.3} parent=71 // pred_fallthru
        _
    $region72: #{tspnet_forward.3} parent=5 // pred_fallthru
      _
  $region6: #{tspnet_forward.3} parent=0 // loop_footer
    %s20 = sadd.s32 1, %s16
  $region7: #{tspnet_forward.3} parent=0 // loop_footer_branch
    %15 = sbr.rel target = $region3
  $region8: #{tspnet_forward.3} parent=0 // loop_exit
    _

// kernel: tspnet_forward.2
$region0: #{tspnet_forward.2}
  #allocation0 [shape = 'u32[]', space=smem, size = 0x4, offset = 0x4, fixed_abs, tag = 'smem constant byte address 0x4 - core index']
  #allocation1 [shape = 'u32[144,128]{1,0:T(1,128)}', space=vmem, size = 0x12000, scoped, tag = 'internal scratch']
  #allocation2 [shape = 'f32[3,2,32]{2,1,0:T(2,128)}', space=vmem, size = 0xc00, scoped, tag = 'scratch operand']
  #allocation3 [shape = 'f32[3,2,32]{2,1,0:T(2,128)}', space=vmem, size = 0xc00, scoped, tag = 'scratch operand']
  %s0 = inlined_call_operand.vmem [shape: f32[8,2,2], index: 0, kind: input, shape index: {}]
  %s1 = inlined_call_operand.vmem [shape: bf16[2,32], index: 1, kind: input, shape index: {}]
  %s2 = inlined_call_operand.vmem [shape: f32[1,32], index: 2, kind: input, shape index: {}]
  %s3 = inlined_call_operand.hbm [shape: bf16[3,32,128], index: 3, kind: input, shape index: {}]
  %s4 = inlined_call_operand.hbm [shape: bf16[3,32,128], index: 4, kind: input, shape index: {}]
  %s5 = inlined_call_operand.vmem [shape: f32[3,1,128], index: 5, kind: input, shape index: {}]
  %s6 = inlined_call_operand.vmem [shape: bf16[32,32], index: 6, kind: input, shape index: {}]
  %s7 = inlined_call_operand.vmem [shape: f32[1,32], index: 7, kind: input, shape index: {}]
  %s8 = inlined_call_operand.vmem [shape: f32[8,2,32], index: 8, kind: output, shape index: {0}]
  %s9 = inlined_call_operand.vmem [shape: bf16[8,2,32], index: 9, kind: output, shape index: {1}]
  %10 = xla_tuple %s8, %s9
  %s11 = sld [smem:[#allocation0]]
  $region85: #{tspnet_forward.2} parent=0
    _
  %s13 = ssub.s32 1, %s11
  %s14 = scalar_select 0, %s13, %s11
  $region1: #{tspnet_forward.2} parent=0
    #allocation4 [shape = 'u8[24576]{0}', space=vmem, size = 0x6000, scoped, tag = 'input window, operand 3, single buffered']
    #allocation5 [shape = 's32[2]{0}', space=sflag, size = 0x8, scoped, tag = 'scoped memory for tspnet_forward.2']
    #allocation6 [shape = 'u8[24576]{0}', space=vmem, size = 0x6000, scoped, tag = 'input window, operand 4, single buffered']
    #allocation7 [shape = 's32[1]{0}', space=sflag, size = 0x4, scoped, tag = 'scoped memory for tspnet_forward.2']
    %15 = vsyncpa [#allocation5], 0
    %16 = vsyncpa [#allocation7], 0
    loop: start=0, step=1, limit=10
    $region2: #{tspnet_forward.2} parent=1 // loop_pre_header
      _
    $region3: #{tspnet_forward.2} parent=1 // loop_header
      %s18 = sphi 0, %s22
      %p19 = scmp.ge.s32.totalorder %s18, 10
      %s28 = sphi 0, %s30
      %s31 = sphi 0, %s28
      %s32 = sphi 0, %s31
      %s48 = sphi 0, %s32
      %s52 = sphi 0, %s52
      %s54 = sphi 0, %s52
      %s55 = sphi 0, %s54
      %s69 = sphi 0, %s55
      %s73 = sphi 0, %s73
      %s75 = sphi 0, %s73
      %s76 = sphi 0, %s75
      %s90 = sphi 0, %s76
      %s94 = sphi 0, %s94
      %s96 = sphi 0, %s94
      %s97 = sphi 0, %s96
      %s111 = sphi 0, %s97
      %s115 = sphi 0, %s115
      %s117 = sphi 0, %s115
      %s118 = sphi 0, %s117
      %s132 = sphi 0, %s118
      %s136 = sphi 0, %s136
      %s138 = sphi 0, %s136
      %s139 = sphi 0, %s138
      %s153 = sphi 0, %s139
      %s157 = sphi 0, %s157
      %s159 = sphi 0, %s157
      %s160 = sphi 0, %s159
      %s174 = sphi 0, %s160
      %s178 = sphi 0, %s178
      %s180 = sphi 0, %s178
      %s181 = sphi 0, %s180
      %s195 = sphi 0, %s181
      %s201 = sphi 0, %s203
      %s204 = sphi 0, %s201
      %s205 = sphi 0, %s204
      %s221 = sphi 0, %s205
      %s227 = sphi 0, %s229
      %s230 = sphi 0, %s227
      %s231 = sphi 0, %s230
      %s247 = sphi 0, %s231
    $region4: #{tspnet_forward.2} parent=1 // loop_header_branch
      %21 = sbr.rel (%p19) target = $region8
    $region5: #{tspnet_forward.2} parent=1 // loop_body
      %s23 = ssub.s32 %s18, 1
      %s24 = ssub.s32 %s18, 2
      %s25 = sadd.s32 %s18, 1
      %s26 = ssub.s32 %s18, %s25
      %p27 = scmp.eq.s32.totalorder %s26, 0
      %s29 = sadd.s32 %s28, 1
      %s30 = scalar_select %p27, %s28, %s29
      %p33 = pneg %p27
      %p34 = scmp.eq.s32.totalorder %s18, 7
      %p35 = por %p33, %p34
      %p36 = scmp.ne.s32.totalorder %s28, %s31
      %p37 = scmp.eq.s32.totalorder %s18, 0
      %p38 = por %p36, %p37
      %p39 = scmp.ne.s32.totalorder %s28, %s31
      %p40 = scmp.eq.s32.totalorder %s23, 7
      %p41 = por %p39, %p40
      %p42 = scmp.ne.s32.totalorder %s31, %s32
      %p43 = scmp.eq.s32.totalorder %s23, 0
      %p44 = por %p42, %p43
      %p45 = scmp.ne.s32.totalorder %s31, %s32
      %p46 = scmp.eq.s32.totalorder %s24, 7
      %p47 = por %p45, %p46
      %p49 = scmp.ne.s32.totalorder %s32, %s48
      %p50 = scmp.eq.s32.totalorder %s24, 0
      %p51 = por %p49, %p50
      %s53 = sadd.s32 %s52, 1
      %p56 = scmp.eq.s32.totalorder %s18, 7
      %p57 = scmp.ne.s32.totalorder %s52, %s54
      %p58 = scmp.eq.s32.totalorder %s18, 0
      %p59 = por %p57, %p58
      %p60 = scmp.ne.s32.totalorder %s52, %s54
      %p61 = scmp.eq.s32.totalorder %s23, 7
      %p62 = por %p60, %p61
      %p63 = scmp.ne.s32.totalorder %s54, %s55
      %p64 = scmp.eq.s32.totalorder %s23, 0
      %p65 = por %p63, %p64
      %p66 = scmp.ne.s32.totalorder %s54, %s55
      %p67 = scmp.eq.s32.totalorder %s24, 7
      %p68 = por %p66, %p67
      %p70 = scmp.ne.s32.totalorder %s55, %s69
      %p71 = scmp.eq.s32.totalorder %s24, 0
      %p72 = por %p70, %p71
      %s74 = sadd.s32 %s73, 1
      %p77 = scmp.eq.s32.totalorder %s18, 7
      %p78 = scmp.ne.s32.totalorder %s73, %s75
      %p79 = scmp.eq.s32.totalorder %s18, 0
      %p80 = por %p78, %p79
      %p81 = scmp.ne.s32.totalorder %s73, %s75
      %p82 = scmp.eq.s32.totalorder %s23, 7
      %p83 = por %p81, %p82
      %p84 = scmp.ne.s32.totalorder %s75, %s76
      %p85 = scmp.eq.s32.totalorder %s23, 0
      %p86 = por %p84, %p85
      %p87 = scmp.ne.s32.totalorder %s75, %s76
      %p88 = scmp.eq.s32.totalorder %s24, 7
      %p89 = por %p87, %p88
      %p91 = scmp.ne.s32.totalorder %s76, %s90
      %p92 = scmp.eq.s32.totalorder %s24, 0
      %p93 = por %p91, %p92
      %s95 = sadd.s32 %s94, 1
      %p98 = scmp.eq.s32.totalorder %s18, 7
      %p99 = scmp.ne.s32.totalorder %s94, %s96
      %p100 = scmp.eq.s32.totalorder %s18, 0
      %p101 = por %p99, %p100
      %p102 = scmp.ne.s32.totalorder %s94, %s96
      %p103 = scmp.eq.s32.totalorder %s23, 7
      %p104 = por %p102, %p103
      %p105 = scmp.ne.s32.totalorder %s96, %s97
      %p106 = scmp.eq.s32.totalorder %s23, 0
      %p107 = por %p105, %p106
      %p108 = scmp.ne.s32.totalorder %s96, %s97
      %p109 = scmp.eq.s32.totalorder %s24, 7
      %p110 = por %p108, %p109
      %p112 = scmp.ne.s32.totalorder %s97, %s111
      %p113 = scmp.eq.s32.totalorder %s24, 0
      %p114 = por %p112, %p113
      %s116 = sadd.s32 %s115, 1
      %p119 = scmp.eq.s32.totalorder %s18, 7
      %p120 = scmp.ne.s32.totalorder %s115, %s117
      %p121 = scmp.eq.s32.totalorder %s18, 0
      %p122 = por %p120, %p121
      %p123 = scmp.ne.s32.totalorder %s115, %s117
      %p124 = scmp.eq.s32.totalorder %s23, 7
      %p125 = por %p123, %p124
      %p126 = scmp.ne.s32.totalorder %s117, %s118
      %p127 = scmp.eq.s32.totalorder %s23, 0
      %p128 = por %p126, %p127
      %p129 = scmp.ne.s32.totalorder %s117, %s118
      %p130 = scmp.eq.s32.totalorder %s24, 7
      %p131 = por %p129, %p130
      %p133 = scmp.ne.s32.totalorder %s118, %s132
      %p134 = scmp.eq.s32.totalorder %s24, 0
      %p135 = por %p133, %p134
      %s137 = sadd.s32 %s136, 1
      %p140 = scmp.eq.s32.totalorder %s18, 7
      %p141 = scmp.ne.s32.totalorder %s136, %s138
      %p142 = scmp.eq.s32.totalorder %s18, 0
      %p143 = por %p141, %p142
      %p144 = scmp.ne.s32.totalorder %s136, %s138
      %p145 = scmp.eq.s32.totalorder %s23, 7
      %p146 = por %p144, %p145
      %p147 = scmp.ne.s32.totalorder %s138, %s139
      %p148 = scmp.eq.s32.totalorder %s23, 0
      %p149 = por %p147, %p148
      %p150 = scmp.ne.s32.totalorder %s138, %s139
      %p151 = scmp.eq.s32.totalorder %s24, 7
      %p152 = por %p150, %p151
      %p154 = scmp.ne.s32.totalorder %s139, %s153
      %p155 = scmp.eq.s32.totalorder %s24, 0
      %p156 = por %p154, %p155
      %s158 = sadd.s32 %s157, 1
      %p161 = scmp.eq.s32.totalorder %s18, 7
      %p162 = scmp.ne.s32.totalorder %s157, %s159
      %p163 = scmp.eq.s32.totalorder %s18, 0
      %p164 = por %p162, %p163
      %p165 = scmp.ne.s32.totalorder %s157, %s159
      %p166 = scmp.eq.s32.totalorder %s23, 7
      %p167 = por %p165, %p166
      %p168 = scmp.ne.s32.totalorder %s159, %s160
      %p169 = scmp.eq.s32.totalorder %s23, 0
      %p170 = por %p168, %p169
      %p171 = scmp.ne.s32.totalorder %s159, %s160
      %p172 = scmp.eq.s32.totalorder %s24, 7
      %p173 = por %p171, %p172
      %p175 = scmp.ne.s32.totalorder %s160, %s174
      %p176 = scmp.eq.s32.totalorder %s24, 0
      %p177 = por %p175, %p176
      %s179 = sadd.s32 %s178, 1
      %p182 = scmp.eq.s32.totalorder %s18, 7
      %p183 = scmp.ne.s32.totalorder %s178, %s180
      %p184 = scmp.eq.s32.totalorder %s18, 0
      %p185 = por %p183, %p184
      %p186 = scmp.ne.s32.totalorder %s178, %s180
      %p187 = scmp.eq.s32.totalorder %s23, 7
      %p188 = por %p186, %p187
      %p189 = scmp.ne.s32.totalorder %s180, %s181
      %p190 = scmp.eq.s32.totalorder %s23, 0
      %p191 = por %p189, %p190
      %p192 = scmp.ne.s32.totalorder %s180, %s181
      %p193 = scmp.eq.s32.totalorder %s24, 7
      %p194 = por %p192, %p193
      %p196 = scmp.ne.s32.totalorder %s181, %s195
      %p197 = scmp.eq.s32.totalorder %s24, 0
      %p198 = por %p196, %p197
      %s199 = ssub.s32 %s18, %s25
      %p200 = scmp.eq.s32.totalorder %s199, 0
      %s202 = sadd.s32 %s201, 1
      %s203 = scalar_select %p200, %s201, %s202
      %p206 = pneg %p200
      %p207 = scmp.eq.s32.totalorder %s18, 7
      %p208 = por %p206, %p207
      %p209 = scmp.ne.s32.totalorder %s201, %s204
      %p210 = scmp.eq.s32.totalorder %s18, 0
      %p211 = por %p209, %p210
      %p212 = scmp.ne.s32.totalorder %s201, %s204
      %p213 = scmp.eq.s32.totalorder %s23, 7
      %p214 = por %p212, %p213
      %p215 = scmp.ne.s32.totalorder %s204, %s205
      %p216 = scmp.eq.s32.totalorder %s23, 0
      %p217 = por %p215, %p216
      %p218 = scmp.ne.s32.totalorder %s204, %s205
      %p219 = scmp.eq.s32.totalorder %s24, 7
      %p220 = por %p218, %p219
      %p222 = scmp.ne.s32.totalorder %s205, %s221
      %p223 = scmp.eq.s32.totalorder %s24, 0
      %p224 = por %p222, %p223
      %s225 = ssub.s32 %s18, %s25
      %p226 = scmp.eq.s32.totalorder %s225, 0
      %s228 = sadd.s32 %s227, 1
      %s229 = scalar_select %p226, %s227, %s228
      %p232 = pneg %p226
      %p233 = scmp.eq.s32.totalorder %s18, 7
      %p234 = por %p232, %p233
      %p235 = scmp.ne.s32.totalorder %s227, %s230
      %p236 = scmp.eq.s32.totalorder %s18, 0
      %p237 = por %p235, %p236
      %p238 = scmp.ne.s32.totalorder %s227, %s230
      %p239 = scmp.eq.s32.totalorder %s23, 7
      %p240 = por %p238, %p239
      %p241 = scmp.ne.s32.totalorder %s230, %s231
      %p242 = scmp.eq.s32.totalorder %s23, 0
      %p243 = por %p241, %p242
      %p244 = scmp.ne.s32.totalorder %s230, %s231
      %p245 = scmp.eq.s32.totalorder %s24, 7
      %p246 = por %p244, %p245
      %p248 = scmp.ne.s32.totalorder %s231, %s247
      %p249 = scmp.eq.s32.totalorder %s24, 0
      %p250 = por %p248, %p249
      %p251 = scmp.le.s32.totalorder 1, %s18
      %p252 = scmp.lt.s32.totalorder %s18, 9
      %p253 = pnand %p251, %p252
      %p254 = pneg %p253
      // Predicated region
      $region9: #{tspnet_forward.2} parent=5 // pred_check
        _
      $region10: #{tspnet_forward.2} parent=5 // pred_check_branch
        %256 = sbr.rel (%p253) target = $region12
      $region11: #{tspnet_forward.2} parent=5 // pred_region
        %s257 = ssub.s32 %s18, 1
        // Predicated region
        $region13: #{tspnet_forward.2} parent=11 // pred_check
          %p258 = pneg %p65
        $region14: #{tspnet_forward.2} parent=11 // pred_check_branch
          %260 = sbr.rel (%p258) target = $region16
        $region15: #{tspnet_forward.2} parent=11 // pred_region
          _
        $region16: #{tspnet_forward.2} parent=11 // pred_fallthru
          _
        // Predicated region
        $region17: #{tspnet_forward.2} parent=11 // pred_check
          %p261 = pneg %p86
        $region18: #{tspnet_forward.2} parent=11 // pred_check_branch
          %263 = sbr.rel (%p261) target = $region20
        $region19: #{tspnet_forward.2} parent=11 // pred_region
          _
        $region20: #{tspnet_forward.2} parent=11 // pred_fallthru
          _
        // Predicated region
        $region21: #{tspnet_forward.2} parent=11 // pred_check
          %p264 = pneg %p107
        $region22: #{tspnet_forward.2} parent=11 // pred_check_branch
          %266 = sbr.rel (%p264) target = $region24
        $region23: #{tspnet_forward.2} parent=11 // pred_region
          %s268 = ssub.s32 768, 768
          %269 = vsyncadd [#allocation5], %s268
          %s270 = sshll.u32 [#allocation4], 4
          %s271 = int_to_ptr.vmem [resolvable:$true] %s270
          %276 = dma.hbm_to_vmem [thread:$0]  %s3, 768, %s271, [#allocation5], 64, 64, 4
        $region24: #{tspnet_forward.2} parent=11 // pred_fallthru
          _
        // Predicated region
        $region25: #{tspnet_forward.2} parent=11 // pred_check
          %p277 = pneg %p128
        $region26: #{tspnet_forward.2} parent=11 // pred_check_branch
          %279 = sbr.rel (%p277) target = $region28
        $region27: #{tspnet_forward.2} parent=11 // pred_region
          %s281 = ssub.s32 768, 768
          %282 = vsyncadd [#allocation7], %s281
          %s283 = sshll.u32 [#allocation6], 4
          %s284 = int_to_ptr.vmem [resolvable:$true] %s283
          %289 = dma.hbm_to_vmem [thread:$0]  %s4, 768, %s284, [#allocation7], 64, 64, 4
        $region28: #{tspnet_forward.2} parent=11 // pred_fallthru
          _
        // Predicated region
        $region29: #{tspnet_forward.2} parent=11 // pred_check
          %p290 = pneg %p149
        $region30: #{tspnet_forward.2} parent=11 // pred_check_branch
          %292 = sbr.rel (%p290) target = $region32
        $region31: #{tspnet_forward.2} parent=11 // pred_region
          _
        $region32: #{tspnet_forward.2} parent=11 // pred_fallthru
          _
        // Predicated region
        $region33: #{tspnet_forward.2} parent=11 // pred_check
          %p293 = pneg %p170
        $region34: #{tspnet_forward.2} parent=11 // pred_check_branch
          %295 = sbr.rel (%p293) target = $region36
        $region35: #{tspnet_forward.2} parent=11 // pred_region
          _
        $region36: #{tspnet_forward.2} parent=11 // pred_fallthru
          _
        // Predicated region
        $region37: #{tspnet_forward.2} parent=11 // pred_check
          %p296 = pneg %p191
        $region38: #{tspnet_forward.2} parent=11 // pred_check_branch
          %298 = sbr.rel (%p296) target = $region40
        $region39: #{tspnet_forward.2} parent=11 // pred_region
          _
        $region40: #{tspnet_forward.2} parent=11 // pred_fallthru
          _
      $region12: #{tspnet_forward.2} parent=5 // pred_fallthru
        _
      %p299 = scmp.lt.s32.totalorder %s18, 8
      // Predicated region
      $region41: #{tspnet_forward.2} parent=5 // pred_check
        %p300 = pneg %p299
      $region42: #{tspnet_forward.2} parent=5 // pred_check_branch
        %302 = sbr.rel (%p300) target = $region44
      $region43: #{tspnet_forward.2} parent=5 // pred_region
        // Predicated region
        $region45: #{tspnet_forward.2} parent=43 // pred_check
          %p303 = pneg %p38
        $region46: #{tspnet_forward.2} parent=43 // pred_check_branch
          %305 = sbr.rel (%p303) target = $region48
        $region47: #{tspnet_forward.2} parent=43 // pred_region
          %p306 = scmp.lt.s32.totalorder %s18, 7
          %s307 = scalar_select %p306, %s18, 7
          %s308 = smul.addr %s307, 2
          %s309 = scalar_lea.vmem %s0, %s308
        $region48: #{tspnet_forward.2} parent=43 // pred_fallthru
          _
      $region44: #{tspnet_forward.2} parent=5 // pred_fallthru
        _
      %p310 = scmp.le.s32.totalorder 1, %s18
      %p311 = scmp.lt.s32.totalorder %s18, 9
      %p312 = pnand %p310, %p311
      %p313 = pneg %p312
      // Predicated region
      $region49: #{tspnet_forward.2} parent=5 // pred_check
        _
      $region50: #{tspnet_forward.2} parent=5 // pred_check_branch
        %315 = sbr.rel (%p312) target = $region52
      $region51: #{tspnet_forward.2} parent=5 // pred_region
        %s316 = ssub.s32 %s18, 1
        // Predicated region
        $region53: #{tspnet_forward.2} parent=51 // pred_check
          %p317 = pneg %p107
        $region54: #{tspnet_forward.2} parent=51 // pred_check_branch
          %319 = sbr.rel (%p317) target = $region56
        $region55: #{tspnet_forward.2} parent=51 // pred_region
          %320 = dma.done [#allocation5], 768
        $region56: #{tspnet_forward.2} parent=51 // pred_fallthru
          _
        // Predicated region
        $region57: #{tspnet_forward.2} parent=51 // pred_check
          %p321 = pneg %p128
        $region58: #{tspnet_forward.2} parent=51 // pred_check_branch
          %323 = sbr.rel (%p321) target = $region60
        $region59: #{tspnet_forward.2} parent=51 // pred_region
          %324 = dma.done [#allocation7], 768
        $region60: #{tspnet_forward.2} parent=51 // pred_fallthru
          _
        %p325 = scmp.lt.s32.totalorder %s23, 7
        %s326 = scalar_select %p325, %s23, 7
        %s327 = smul.addr %s326, 2
        %s328 = scalar_lea.vmem %s0, %s327
        %p329 = pneg %p44
        %p330 = pneg %p41
        %p331 = pneg %p65
        %p332 = pneg %p62
        %p333 = pneg %p86
        %p334 = pneg %p83
        %p335 = pneg %p107
        %p336 = pneg %p104
        %p337 = pneg %p128
        %p338 = pneg %p125
        %p339 = pneg %p149
        %p340 = pneg %p146
        %p341 = pneg %p170
        %p342 = pneg %p167
        %p343 = pneg %p191
        %p344 = pneg %p188
        %p345 = pneg %p217
        %p346 = pneg %p214
        %p347 = scmp.lt.s32.totalorder %s23, 7
        %s348 = scalar_select %p347, %s23, 7
        %s349 = smul.addr %s348, 2
        %s350 = scalar_lea.vmem %s8, %s349
        %p351 = pneg %p243
        %p352 = pneg %p240
        %p353 = scmp.lt.s32.totalorder %s23, 7
        %s354 = scalar_select %p353, %s23, 7
        %s355 = scalar_lea.vmem %s9, %s354
        %p356 = scmp.lt.s32.totalorder %s23, 7
        %s357 = scalar_select %p356, %s23, 7
        %s358 = smul.addr %s357, 2
        %s359 = scalar_lea.vmem %s0, %s358
        %p360 = scmp.lt.s32.totalorder %s23, 7
        %s361 = scalar_select %p360, %s23, 7
        %s362 = smul.addr %s361, 2
        %s363 = scalar_lea.vmem %s8, %s362
        %p364 = scmp.lt.s32.totalorder %s23, 7
        %s365 = scalar_select %p364, %s23, 7
        %s366 = scalar_lea.vmem %s9, %s365
        %p368 = scmp.eq.s32.totalorder %s23, 0
        // Predicated region
        $region61: #{tspnet_forward.2} parent=51 // pred_check
          %p369 = pneg %p368
        $region62: #{tspnet_forward.2} parent=51 // pred_check_branch
          %371 = sbr.rel (%p369) target = $region64
        $region63: #{tspnet_forward.2} parent=51 // pred_region
          %vm372 = vcmask 254976
          %373 = vst.msk [vmem:[#allocation2] sm:$0x3] %vm372, 0.0
          %374 = vst.msk [vmem:[#allocation2 + $0x2] sm:$0x3] %vm372, 0.0
          %375 = vst.msk [vmem:[#allocation2 + $0x4] sm:$0x3] %vm372, 0.0
          %376 = vst.msk [vmem:[#allocation3] sm:$0x3] %vm372, 0.0
          %377 = vst.msk [vmem:[#allocation3 + $0x2] sm:$0x3] %vm372, 0.0
          %378 = vst.msk [vmem:[#allocation3 + $0x4] sm:$0x3] %vm372, 0.0
        $region64: #{tspnet_forward.2} parent=51 // pred_fallthru
          _
        %v379 = vld [vmem:[%s359] sm:$0x3]
        %v380 = vpack.c.bf16 %v379, %v379
        %v381 = vld [vmem:[%s1] sm:$0x1]
        %v382 = vld [vmem:[%s2] sm:$0x1]
        %v384 = vlaneseq
        %v385 = vshrl.u32 %v384, 7
        %v386 = vsub.s32 0, %v385
        %v387 = vrot.slane %v382, %v386
        %vm389 = vcmask 15360
        %v391 = vsel %vm389, %v380, 0
        %vm393 = vcmask 1040384
        %v395 = vsel %vm393, %v381, 0
        %397 = vmatprep.subr.bf16.mxu0 0
        %398 = vmatpush1.bf16.msra.mxu0 0
        %399 = vmatprep.subr.bf16.mxu0 0
        %400 = vmatpush1.bf16.msra.mxu0 0
        %401 = vmatprep.subr.bf16.mxu0 0
        %402 = vmatpush1.bf16.msra.mxu0 0
        %403 = vmatprep.subr.bf16.mxu0 0
        %404 = vmatpush1.bf16.msra.mxu0 0
        %405 = vmatprep.subr.bf16.mxu0 0
        %406 = vmatpush1.bf16.msra.mxu0 0
        %407 = vmatprep.subr.bf16.mxu0 0
        %408 = vmatpush1.bf16.msra.mxu0 0
        %409 = vmatprep.subr.bf16.mxu0 0
        %410 = vmatpush1.bf16.msra.mxu0 0
        %411 = vmatprep.subr.bf16.mxu0 0
        %412 = vmatpush1.bf16.msra.mxu0 %v395
        %413 = vmatprep.subr.bf16.mxu0 0
        %414 = vmatpush2.bf16.msra.mxu0 0
        %415 = vmatprep.subr.bf16.mxu0 0
        %416 = vmatpush2.bf16.msra.mxu0 0
        %417 = vmatprep.subr.bf16.mxu0 0
        %418 = vmatpush2.bf16.msra.mxu0 0
        %419 = vmatprep.subr.bf16.mxu0 0
        %420 = vmatpush2.bf16.msra.mxu0 0
        %421 = vmatprep.subr.bf16.mxu0 0
        %422 = vmatpush2.bf16.msra.mxu0 0
        %423 = vmatprep.subr.bf16.mxu0 0
        %424 = vmatpush2.bf16.msra.mxu0 0
        %425 = vmatprep.subr.bf16.mxu0 0
        %426 = vmatpush2.bf16.msra.mxu0 0
        %427 = vmatprep.subr.bf16.mxu0 0
        %428 = vmatpush2.bf16.msra.mxu0 0
        %429 = vmatprep.mubr.bf16.mxu0 0
        %430 = vmatmul.mubr.bf16.gmra.mxu0 %v391
        %v431 = vpop.f32.mrf.mxu0
        %v432 = vadd.f32 %v387, %v431
        %v433 = vpop.f32.mrf.mxu0
        %v434 = vpop.f32.mrf.mxu0
        %v435 = vpop.f32.mrf.mxu0
        %436 = vdwg.mxu0
        %v437 = vpack.c.bf16 %v432, %v432
        %v438 = vld [vmem:[#allocation4] sm:$0xf]
        %v439 = vld [vmem:[#allocation4 + $0x4] sm:$0xf]
        %v440 = vld [vmem:[#allocation4 + $0x8] sm:$0xf]
        %v441 = vld [vmem:[#allocation4 + $0xc] sm:$0xf]
        %v442 = vld [vmem:[#allocation2] sm:$0x3]
        %v443 = vpack.c.bf16 %v442, %v442
        %v444 = vld [vmem:[#allocation6] sm:$0xf]
        %v445 = vld [vmem:[#allocation6 + $0x4] sm:$0xf]
        %v446 = vld [vmem:[#allocation6 + $0x8] sm:$0xf]
        %v447 = vld [vmem:[#allocation6 + $0xc] sm:$0xf]
        %v452 = vunpack.c.l.b16 %v444
        %v453 = vunpack.c.l.b16 %v445
        %v454 = vunpack.c.l.b16 %v446
        %v455 = vunpack.c.l.b16 %v447
        %v456 = vpack.c.b16 %v453, %v452
        %v457 = vpack.c.b16 %v455, %v454
        %vm460 = vcmask 261120
        %v462 = vsel %vm460, %v443, 0
        %464 = vmatprep.subr.bf16.mxu0 0
        %465 = vmatpush1.bf16.msra.mxu0 0
        %466 = vmatprep.subr.bf16.mxu0 0
        %467 = vmatpush1.bf16.msra.mxu0 0
        %468 = vmatprep.subr.bf16.mxu0 0
        %469 = vmatpush1.bf16.msra.mxu0 0
        %470 = vmatprep.subr.bf16.mxu0 0
        %471 = vmatpush1.bf16.msra.mxu0 0
        %472 = vmatprep.subr.bf16.mxu0 0
        %473 = vmatpush1.bf16.msra.mxu0 0
        %474 = vmatprep.subr.bf16.mxu0 0
        %475 = vmatpush1.bf16.msra.mxu0 0
        %476 = vmatprep.subr.bf16.mxu0 0
        %477 = vmatpush1.bf16.msra.mxu0 %v457
        %478 = vmatprep.subr.bf16.mxu0 0
        %479 = vmatpush1.bf16.msra.mxu0 %v456
        %480 = vmatprep.subr.bf16.mxu0 0
        %481 = vmatpush2.bf16.msra.mxu0 0
        %482 = vmatprep.subr.bf16.mxu0 0
        %483 = vmatpush2.bf16.msra.mxu0 0
        %484 = vmatprep.subr.bf16.mxu0 0
        %485 = vmatpush2.bf16.msra.mxu0 0
        %486 = vmatprep.subr.bf16.mxu0 0
        %487 = vmatpush2.bf16.msra.mxu0 0
        %488 = vmatprep.subr.bf16.mxu0 0
        %489 = vmatpush2.bf16.msra.mxu0 0
        %490 = vmatprep.subr.bf16.mxu0 0
        %491 = vmatpush2.bf16.msra.mxu0 0
        %492 = vmatprep.subr.bf16.mxu0 0
        %493 = vmatpush2.bf16.msra.mxu0 0
        %494 = vmatprep.subr.bf16.mxu0 0
        %495 = vmatpush2.bf16.msra.mxu0 0
        %496 = vmatprep.mubr.bf16.mxu0 0
        %497 = vmatmul.mubr.bf16.gmra.mxu0 %v462
        %v498 = vpop.f32.mrf.mxu0
        %v499 = vadd.f32 0.0, %v498
        %v500 = vpop.f32.mrf.mxu0
        %v501 = vpop.f32.mrf.mxu0
        %v502 = vpop.f32.mrf.mxu0
        %503 = vdwg.mxu0
        %v508 = vunpack.c.l.b16 %v438
        %v509 = vunpack.c.l.b16 %v439
        %v510 = vunpack.c.l.b16 %v440
        %v511 = vunpack.c.l.b16 %v441
        %v512 = vpack.c.b16 %v509, %v508
        %v513 = vpack.c.b16 %v511, %v510
        %v517 = vsel %vm460, %v437, 0
        %519 = vmatprep.subr.bf16.mxu0 0
        %520 = vmatpush1.bf16.msra.mxu0 0
        %521 = vmatprep.subr.bf16.mxu0 0
        %522 = vmatpush1.bf16.msra.mxu0 0
        %523 = vmatprep.subr.bf16.mxu0 0
        %524 = vmatpush1.bf16.msra.mxu0 0
        %525 = vmatprep.subr.bf16.mxu0 0
        %526 = vmatpush1.bf16.msra.mxu0 0
        %527 = vmatprep.subr.bf16.mxu0 0
        %528 = vmatpush1.bf16.msra.mxu0 0
        %529 = vmatprep.subr.bf16.mxu0 0
        %530 = vmatpush1.bf16.msra.mxu0 0
        %531 = vmatprep.subr.bf16.mxu0 0
        %532 = vmatpush1.bf16.msra.mxu0 %v513
        %533 = vmatprep.subr.bf16.mxu0 0
        %534 = vmatpush1.bf16.msra.mxu0 %v512
        %535 = vmatprep.subr.bf16.mxu0 0
        %536 = vmatpush2.bf16.msra.mxu0 0
        %537 = vmatprep.subr.bf16.mxu0 0
        %538 = vmatpush2.bf16.msra.mxu0 0
        %539 = vmatprep.subr.bf16.mxu0 0
        %540 = vmatpush2.bf16.msra.mxu0 0
        %541 = vmatprep.subr.bf16.mxu0 0
        %542 = vmatpush2.bf16.msra.mxu0 0
        %543 = vmatprep.subr.bf16.mxu0 0
        %544 = vmatpush2.bf16.msra.mxu0 0
        %545 = vmatprep.subr.bf16.mxu0 0
        %546 = vmatpush2.bf16.msra.mxu0 0
        %547 = vmatprep.subr.bf16.mxu0 0
        %548 = vmatpush2.bf16.msra.mxu0 0
        %549 = vmatprep.subr.bf16.mxu0 0
        %550 = vmatpush2.bf16.msra.mxu0 0
        %551 = vmatprep.mubr.bf16.mxu0 0
        %552 = vmatmul.mubr.bf16.gmra.mxu0 %v517
        %v553 = vpop.f32.mrf.mxu0
        %v554 = vadd.f32 %v499, %v553
        %v555 = vpop.f32.mrf.mxu0
        %v556 = vpop.f32.mrf.mxu0
        %v557 = vpop.f32.mrf.mxu0
        %558 = vdwg.mxu0
        %v559 = vld [vmem:[%s5] sm:$0x1]
        %v561 = vlaneseq
        %v562 = vshrl.u32 %v561, 7
        %v563 = vsub.s32 0, %v562
        %v564 = vrot.slane %v559, %v563
        %v566 = vadd.f32 %v554, %v564
        %v567 = vxor.u32 %v566, 2147483648
        %v568 = vmul.f32 %v567, 1.442695
        %v569 = vpow.pop %v568
        %v570 = vadd.f32 %v569, 1.0
        %v571 = vrcp.pop %v570
        %v572 = vmul.f32 1.0, %v571
        %v573 = vtanh.pop %v566
        %v574 = vld [vmem:[#allocation3] sm:$0x3]
        %576 = vrot.lane.b32.xlu0 %v574, 32
        %v577 = vpop.permute.xlu0 %576
        %v579 = vmul.f32 %v572, %v577
        %581 = vrot.lane.b32.xlu0 %v573, 64
        %v582 = vpop.permute.xlu0 %581
        %v584 = vmul.f32 %v572, %v582
        %586 = vrot.lane.b32.xlu0 %v584, 32
        %v587 = vpop.permute.xlu0 %586
        %v589 = vadd.f32 %v579, %v587
        %v590 = vtanh.pop %v589
        %592 = vrot.lane.b32.xlu0 %v590, 64
        %v593 = vpop.permute.xlu0 %592
        %v595 = vmul.f32 %v572, %v593
        %597 = vrot.lane.b32.xlu0 %v595, 32
        %v598 = vpop.permute.xlu0 %597
        %vm600 = vcmask 254976
        %601 = vst.msk [vmem:[#allocation2] sm:$0x3] %vm600, %v598
        %603 = vrot.lane.b32.xlu0 %v589, 96
        %v604 = vpop.permute.xlu0 %603
        %606 = vst.msk [vmem:[#allocation3] sm:$0x3] %vm600, %v604
        %v607 = vpack.c.bf16 %v595, %v595
        %s608 = scalar_lea.vmem [#allocation4], 16
        %v609 = vld [vmem:[%s608] sm:$0xf]
        %v610 = vld [vmem:[%s608 + $0x4] sm:$0xf]
        %v611 = vld [vmem:[%s608 + $0x8] sm:$0xf]
        %v612 = vld [vmem:[%s608 + $0xc] sm:$0xf]
        %s613 = scalar_lea.vmem [#allocation2], 2
        %v614 = vld [vmem:[%s613] sm:$0x3]
        %v615 = vpack.c.bf16 %v614, %v614
        %s616 = scalar_lea.vmem [#allocation6], 16
        %v617 = vld [vmem:[%s616] sm:$0xf]
        %v618 = vld [vmem:[%s616 + $0x4] sm:$0xf]
        %v619 = vld [vmem:[%s616 + $0x8] sm:$0xf]
        %v620 = vld [vmem:[%s616 + $0xc] sm:$0xf]
        %v625 = vunpack.c.l.b16 %v617
        %v626 = vunpack.c.l.b16 %v618
        %v627 = vunpack.c.l.b16 %v619
        %v628 = vunpack.c.l.b16 %v620
        %v629 = vpack.c.b16 %v626, %v625
        %v630 = vpack.c.b16 %v628, %v627
        %v634 = vsel %vm460, %v615, 0
        %636 = vmatprep.subr.bf16.mxu0 0
        %637 = vmatpush1.bf16.msra.mxu0 0
        %638 = vmatprep.subr.bf16.mxu0 0
        %639 = vmatpush1.bf16.msra.mxu0 0
        %640 = vmatprep.subr.bf16.mxu0 0
        %641 = vmatpush1.bf16.msra.mxu0 0
        %642 = vmatprep.subr.bf16.mxu0 0
        %643 = vmatpush1.bf16.msra.mxu0 0
        %644 = vmatprep.subr.bf16.mxu0 0
        %645 = vmatpush1.bf16.msra.mxu0 0
        %646 = vmatprep.subr.bf16.mxu0 0
        %647 = vmatpush1.bf16.msra.mxu0 0
        %648 = vmatprep.subr.bf16.mxu0 0
        %649 = vmatpush1.bf16.msra.mxu0 %v630
        %650 = vmatprep.subr.bf16.mxu0 0
        %651 = vmatpush1.bf16.msra.mxu0 %v629
        %652 = vmatprep.subr.bf16.mxu0 0
        %653 = vmatpush2.bf16.msra.mxu0 0
        %654 = vmatprep.subr.bf16.mxu0 0
        %655 = vmatpush2.bf16.msra.mxu0 0
        %656 = vmatprep.subr.bf16.mxu0 0
        %657 = vmatpush2.bf16.msra.mxu0 0
        %658 = vmatprep.subr.bf16.mxu0 0
        %659 = vmatpush2.bf16.msra.mxu0 0
        %660 = vmatprep.subr.bf16.mxu0 0
        %661 = vmatpush2.bf16.msra.mxu0 0
        %662 = vmatprep.subr.bf16.mxu0 0
        %663 = vmatpush2.bf16.msra.mxu0 0
        %664 = vmatprep.subr.bf16.mxu0 0
        %665 = vmatpush2.bf16.msra.mxu0 0
        %666 = vmatprep.subr.bf16.mxu0 0
        %667 = vmatpush2.bf16.msra.mxu0 0
        %668 = vmatprep.mubr.bf16.mxu0 0
        %669 = vmatmul.mubr.bf16.gmra.mxu0 %v634
        %v670 = vpop.f32.mrf.mxu0
        %v671 = vadd.f32 0.0, %v670
        %v672 = vpop.f32.mrf.mxu0
        %v673 = vpop.f32.mrf.mxu0
        %v674 = vpop.f32.mrf.mxu0
        %675 = vdwg.mxu0
        %677 = vrot.lane.b32.xlu0 %v607, 32
        %v678 = vpop.permute.xlu0 %677
        %v683 = vunpack.c.l.b16 %v609
        %v684 = vunpack.c.l.b16 %v610
        %v685 = vunpack.c.l.b16 %v611
        %v686 = vunpack.c.l.b16 %v612
        %v687 = vpack.c.b16 %v684, %v683
        %v688 = vpack.c.b16 %v686, %v685
        %v692 = vsel %vm460, %v678, 0
        %694 = vmatprep.subr.bf16.mxu0 0
        %695 = vmatpush1.bf16.msra.mxu0 0
        %696 = vmatprep.subr.bf16.mxu0 0
        %697 = vmatpush1.bf16.msra.mxu0 0
        %698 = vmatprep.subr.bf16.mxu0 0
        %699 = vmatpush1.bf16.msra.mxu0 0
        %700 = vmatprep.subr.bf16.mxu0 0
        %701 = vmatpush1.bf16.msra.mxu0 0
        %702 = vmatprep.subr.bf16.mxu0 0
        %703 = vmatpush1.bf16.msra.mxu0 0
        %704 = vmatprep.subr.bf16.mxu0 0
        %705 = vmatpush1.bf16.msra.mxu0 0
        %706 = vmatprep.subr.bf16.mxu0 0
        %707 = vmatpush1.bf16.msra.mxu0 %v688
        %708 = vmatprep.subr.bf16.mxu0 0
        %709 = vmatpush1.bf16.msra.mxu0 %v687
        %710 = vmatprep.subr.bf16.mxu0 0
        %711 = vmatpush2.bf16.msra.mxu0 0
        %712 = vmatprep.subr.bf16.mxu0 0
        %713 = vmatpush2.bf16.msra.mxu0 0
        %714 = vmatprep.subr.bf16.mxu0 0
        %715 = vmatpush2.bf16.msra.mxu0 0
        %716 = vmatprep.subr.bf16.mxu0 0
        %717 = vmatpush2.bf16.msra.mxu0 0
        %718 = vmatprep.subr.bf16.mxu0 0
        %719 = vmatpush2.bf16.msra.mxu0 0
        %720 = vmatprep.subr.bf16.mxu0 0
        %721 = vmatpush2.bf16.msra.mxu0 0
        %722 = vmatprep.subr.bf16.mxu0 0
        %723 = vmatpush2.bf16.msra.mxu0 0
        %724 = vmatprep.subr.bf16.mxu0 0
        %725 = vmatpush2.bf16.msra.mxu0 0
        %726 = vmatprep.mubr.bf16.mxu0 0
        %727 = vmatmul.mubr.bf16.gmra.mxu0 %v692
        %v728 = vpop.f32.mrf.mxu0
        %v729 = vadd.f32 %v671, %v728
        %v730 = vpop.f32.mrf.mxu0
        %v731 = vpop.f32.mrf.mxu0
        %v732 = vpop.f32.mrf.mxu0
        %733 = vdwg.mxu0
        %s734 = scalar_lea.vmem %s5, 1
        %v735 = vld [vmem:[%s734] sm:$0x1]
        %v737 = vlaneseq
        %v738 = vshrl.u32 %v737, 7
        %v739 = vsub.s32 0, %v738
        %v740 = vrot.slane %v735, %v739
        %v742 = vadd.f32 %v729, %v740
        %v743 = vxor.u32 %v742, 2147483648
        %v744 = vmul.f32 %v743, 1.442695
        %v745 = vpow.pop %v744
        %v746 = vadd.f32 %v745, 1.0
        %v747 = vrcp.pop %v746
        %v748 = vmul.f32 1.0, %v747
        %v749 = vtanh.pop %v742
        %s750 = scalar_lea.vmem [#allocation3], 2
        %v751 = vld [vmem:[%s750] sm:$0x3]
        %753 = vrot.lane.b32.xlu0 %v751, 32
        %v754 = vpop.permute.xlu0 %753
        %v756 = vmul.f32 %v748, %v754
        %758 = vrot.lane.b32.xlu0 %v749, 64
        %v759 = vpop.permute.xlu0 %758
        %v761 = vmul.f32 %v748, %v759
        %763 = vrot.lane.b32.xlu0 %v761, 32
        %v764 = vpop.permute.xlu0 %763
        %v766 = vadd.f32 %v756, %v764
        %v767 = vtanh.pop %v766
        %769 = vrot.lane.b32.xlu0 %v767, 64
        %v770 = vpop.permute.xlu0 %769
        %v772 = vmul.f32 %v748, %v770
        %774 = vrot.lane.b32.xlu0 %v772, 32
        %v775 = vpop.permute.xlu0 %774
        %777 = vst.msk [vmem:[%s613] sm:$0x3] %vm600, %v775
        %779 = vrot.lane.b32.xlu0 %v766, 96
        %v780 = vpop.permute.xlu0 %779
        %782 = vst.msk [vmem:[%s750] sm:$0x3] %vm600, %v780
        %v783 = vpack.c.bf16 %v772, %v772
        %s784 = scalar_lea.vmem [#allocation4], 32
        %v785 = vld [vmem:[%s784] sm:$0xf]
        %v786 = vld [vmem:[%s784 + $0x4] sm:$0xf]
        %v787 = vld [vmem:[%s784 + $0x8] sm:$0xf]
        %v788 = vld [vmem:[%s784 + $0xc] sm:$0xf]
        %s789 = scalar_lea.vmem [#allocation2], 4
        %v790 = vld [vmem:[%s789] sm:$0x3]
        %v791 = vpack.c.bf16 %v790, %v790
        %s792 = scalar_lea.vmem [#allocation6], 32
        %v793 = vld [vmem:[%s792] sm:$0xf]
        %v794 = vld [vmem:[%s792 + $0x4] sm:$0xf]
        %v795 = vld [vmem:[%s792 + $0x8] sm:$0xf]
        %v796 = vld [vmem:[%s792 + $0xc] sm:$0xf]
        %v801 = vunpack.c.l.b16 %v793
        %v802 = vunpack.c.l.b16 %v794
        %v803 = vunpack.c.l.b16 %v795
        %v804 = vunpack.c.l.b16 %v796
        %v805 = vpack.c.b16 %v802, %v801
        %v806 = vpack.c.b16 %v804, %v803
        %v810 = vsel %vm460, %v791, 0
        %812 = vmatprep.subr.bf16.mxu0 0
        %813 = vmatpush1.bf16.msra.mxu0 0
        %814 = vmatprep.subr.bf16.mxu0 0
        %815 = vmatpush1.bf16.msra.mxu0 0
        %816 = vmatprep.subr.bf16.mxu0 0
        %817 = vmatpush1.bf16.msra.mxu0 0
        %818 = vmatprep.subr.bf16.mxu0 0
        %819 = vmatpush1.bf16.msra.mxu0 0
        %820 = vmatprep.subr.bf16.mxu0 0
        %821 = vmatpush1.bf16.msra.mxu0 0
        %822 = vmatprep.subr.bf16.mxu0 0
        %823 = vmatpush1.bf16.msra.mxu0 0
        %824 = vmatprep.subr.bf16.mxu0 0
        %825 = vmatpush1.bf16.msra.mxu0 %v806
        %826 = vmatprep.subr.bf16.mxu0 0
        %827 = vmatpush1.bf16.msra.mxu0 %v805
        %828 = vmatprep.subr.bf16.mxu0 0
        %829 = vmatpush2.bf16.msra.mxu0 0
        %830 = vmatprep.subr.bf16.mxu0 0
        %831 = vmatpush2.bf16.msra.mxu0 0
        %832 = vmatprep.subr.bf16.mxu0 0
        %833 = vmatpush2.bf16.msra.mxu0 0
        %834 = vmatprep.subr.bf16.mxu0 0
        %835 = vmatpush2.bf16.msra.mxu0 0
        %836 = vmatprep.subr.bf16.mxu0 0
        %837 = vmatpush2.bf16.msra.mxu0 0
        %838 = vmatprep.subr.bf16.mxu0 0
        %839 = vmatpush2.bf16.msra.mxu0 0
        %840 = vmatprep.subr.bf16.mxu0 0
        %841 = vmatpush2.bf16.msra.mxu0 0
        %842 = vmatprep.subr.bf16.mxu0 0
        %843 = vmatpush2.bf16.msra.mxu0 0
        %844 = vmatprep.mubr.bf16.mxu0 0
        %845 = vmatmul.mubr.bf16.gmra.mxu0 %v810
        %v846 = vpop.f32.mrf.mxu0
        %v847 = vadd.f32 0.0, %v846
        %v848 = vpop.f32.mrf.mxu0
        %v849 = vpop.f32.mrf.mxu0
        %v850 = vpop.f32.mrf.mxu0
        %851 = vdwg.mxu0
        %853 = vrot.lane.b32.xlu0 %v783, 32
        %v854 = vpop.permute.xlu0 %853
        %v859 = vunpack.c.l.b16 %v785
        %v860 = vunpack.c.l.b16 %v786
        %v861 = vunpack.c.l.b16 %v787
        %v862 = vunpack.c.l.b16 %v788
        %v863 = vpack.c.b16 %v860, %v859
        %v864 = vpack.c.b16 %v862, %v861
        %v868 = vsel %vm460, %v854, 0
        %870 = vmatprep.subr.bf16.mxu0 0
        %871 = vmatpush1.bf16.msra.mxu0 0
        %872 = vmatprep.subr.bf16.mxu0 0
        %873 = vmatpush1.bf16.msra.mxu0 0
        %874 = vmatprep.subr.bf16.mxu0 0
        %875 = vmatpush1.bf16.msra.mxu0 0
        %876 = vmatprep.subr.bf16.mxu0 0
        %877 = vmatpush1.bf16.msra.mxu0 0
        %878 = vmatprep.subr.bf16.mxu0 0
        %879 = vmatpush1.bf16.msra.mxu0 0
        %880 = vmatprep.subr.bf16.mxu0 0
        %881 = vmatpush1.bf16.msra.mxu0 0
        %882 = vmatprep.subr.bf16.mxu0 0
        %883 = vmatpush1.bf16.msra.mxu0 %v864
        %884 = vmatprep.subr.bf16.mxu0 0
        %885 = vmatpush1.bf16.msra.mxu0 %v863
        %886 = vmatprep.subr.bf16.mxu0 0
        %887 = vmatpush2.bf16.msra.mxu0 0
        %888 = vmatprep.subr.bf16.mxu0 0
        %889 = vmatpush2.bf16.msra.mxu0 0
        %890 = vmatprep.subr.bf16.mxu0 0
        %891 = vmatpush2.bf16.msra.mxu0 0
        %892 = vmatprep.subr.bf16.mxu0 0
        %893 = vmatpush2.bf16.msra.mxu0 0
        %894 = vmatprep.subr.bf16.mxu0 0
        %895 = vmatpush2.bf16.msra.mxu0 0
        %896 = vmatprep.subr.bf16.mxu0 0
        %897 = vmatpush2.bf16.msra.mxu0 0
        %898 = vmatprep.subr.bf16.mxu0 0
        %899 = vmatpush2.bf16.msra.mxu0 0
        %900 = vmatprep.subr.bf16.mxu0 0
        %901 = vmatpush2.bf16.msra.mxu0 0
        %902 = vmatprep.mubr.bf16.mxu0 0
        %903 = vmatmul.mubr.bf16.gmra.mxu0 %v868
        %v904 = vpop.f32.mrf.mxu0
        %v905 = vadd.f32 %v847, %v904
        %v906 = vpop.f32.mrf.mxu0
        %v907 = vpop.f32.mrf.mxu0
        %v908 = vpop.f32.mrf.mxu0
        %909 = vdwg.mxu0
        %s910 = scalar_lea.vmem %s5, 2
        %v911 = vld [vmem:[%s910] sm:$0x1]
        %v913 = vlaneseq
        %v914 = vshrl.u32 %v913, 7
        %v915 = vsub.s32 0, %v914
        %v916 = vrot.slane %v911, %v915
        %v918 = vadd.f32 %v905, %v916
        %v919 = vxor.u32 %v918, 2147483648
        %v920 = vmul.f32 %v919, 1.442695
        %v921 = vpow.pop %v920
        %v922 = vadd.f32 %v921, 1.0
        %v923 = vrcp.pop %v922
        %v924 = vmul.f32 1.0, %v923
        %v925 = vtanh.pop %v918
        %s926 = scalar_lea.vmem [#allocation3], 4
        %v927 = vld [vmem:[%s926] sm:$0x3]
        %929 = vrot.lane.b32.xlu0 %v927, 32
        %v930 = vpop.permute.xlu0 %929
        %v932 = vmul.f32 %v924, %v930
        %934 = vrot.lane.b32.xlu0 %v925, 64
        %v935 = vpop.permute.xlu0 %934
        %v937 = vmul.f32 %v924, %v935
        %939 = vrot.lane.b32.xlu0 %v937, 32
        %v940 = vpop.permute.xlu0 %939
        %v942 = vadd.f32 %v932, %v940
        %v943 = vtanh.pop %v942
        %945 = vrot.lane.b32.xlu0 %v943, 64
        %v946 = vpop.permute.xlu0 %945
        %v948 = vmul.f32 %v924, %v946
        %950 = vrot.lane.b32.xlu0 %v948, 32
        %v951 = vpop.permute.xlu0 %950
        %953 = vst.msk [vmem:[%s789] sm:$0x3] %vm600, %v951
        %955 = vrot.lane.b32.xlu0 %v942, 96
        %v956 = vpop.permute.xlu0 %955
        %958 = vst.msk [vmem:[%s926] sm:$0x3] %vm600, %v956
        %959 = vst.msk [vmem:[%s363] sm:$0x3] %vm600, %v951
        %v960 = vpack.c.bf16 %v948, %v948
        %v961 = vld [vmem:[%s6] sm:$0xf]
        %v962 = vld [vmem:[%s6 + $0x4] sm:$0xf]
        %v963 = vld [vmem:[%s6 + $0x8] sm:$0xf]
        %v964 = vld [vmem:[%s6 + $0xc] sm:$0xf]
        %v965 = vld [vmem:[%s7] sm:$0x1]
        %v967 = vlaneseq
        %v968 = vshrl.u32 %v967, 7
        %v969 = vsub.s32 0, %v968
        %v970 = vrot.slane %v965, %v969
        %973 = vrot.lane.b32.xlu0 %v960, 32
        %v974 = vpop.permute.xlu0 %973
        %v979 = vunpack.c.l.b16 %v961
        %v980 = vunpack.c.l.b16 %v962
        %v981 = vunpack.c.l.b16 %v963
        %v982 = vunpack.c.l.b16 %v964
        %v983 = vpack.c.b16 %v980, %v979
        %v984 = vpack.c.b16 %v982, %v981
        %v988 = vsel %vm460, %v974, 0
        %990 = vmatprep.subr.bf16.mxu0 0
        %991 = vmatpush1.bf16.msra.mxu0 0
        %992 = vmatprep.subr.bf16.mxu0 0
        %993 = vmatpush1.bf16.msra.mxu0 0
        %994 = vmatprep.subr.bf16.mxu0 0
        %995 = vmatpush1.bf16.msra.mxu0 0
        %996 = vmatprep.subr.bf16.mxu0 0
        %997 = vmatpush1.bf16.msra.mxu0 0
        %998 = vmatprep.subr.bf16.mxu0 0
        %999 = vmatpush1.bf16.msra.mxu0 0
        %1000 = vmatprep.subr.bf16.mxu0 0
        %1001 = vmatpush1.bf16.msra.mxu0 0
        %1002 = vmatprep.subr.bf16.mxu0 0
        %1003 = vmatpush1.bf16.msra.mxu0 %v984
        %1004 = vmatprep.subr.bf16.mxu0 0
        %1005 = vmatpush1.bf16.msra.mxu0 %v983
        %1006 = vmatprep.subr.bf16.mxu0 0
        %1007 = vmatpush2.bf16.msra.mxu0 0
        %1008 = vmatprep.subr.bf16.mxu0 0
        %1009 = vmatpush2.bf16.msra.mxu0 0
        %1010 = vmatprep.subr.bf16.mxu0 0
        %1011 = vmatpush2.bf16.msra.mxu0 0
        %1012 = vmatprep.subr.bf16.mxu0 0
        %1013 = vmatpush2.bf16.msra.mxu0 0
        %1014 = vmatprep.subr.bf16.mxu0 0
        %1015 = vmatpush2.bf16.msra.mxu0 0
        %1016 = vmatprep.subr.bf16.mxu0 0
        %1017 = vmatpush2.bf16.msra.mxu0 0
        %1018 = vmatprep.subr.bf16.mxu0 0
        %1019 = vmatpush2.bf16.msra.mxu0 0
        %1020 = vmatprep.subr.bf16.mxu0 0
        %1021 = vmatpush2.bf16.msra.mxu0 0
        %1022 = vmatprep.mubr.bf16.mxu0 0
        %1023 = vmatmul.mubr.bf16.gmra.mxu0 %v988
        %v1024 = vpop.f32.mrf.mxu0
        %v1025 = vadd.f32 %v970, %v1024
        %v1026 = vpop.f32.mrf.mxu0
        %v1027 = vpop.f32.mrf.mxu0
        %v1028 = vpop.f32.mrf.mxu0
        %1029 = vdwg.mxu0
        %v1030 = vpack.c.bf16 %v1025, %v1025
        %vm1031 = vcmask 253952
        %1032 = vst.msk [vmem:[%s366] sm:$0x1] %vm1031, %v1030
        %p1033 = scmp.lt.s32.totalorder %s23, 7
        %s1034 = scalar_select %p1033, %s23, 7
        %s1035 = smul.addr %s1034, 2
        %s1036 = scalar_lea.vmem %s8, %s1035
        %p1037 = scmp.lt.s32.totalorder %s23, 7
        %s1038 = scalar_select %p1037, %s23, 7
        %s1039 = scalar_lea.vmem %s9, %s1038
        // Predicated region
        $region65: #{tspnet_forward.2} parent=51 // pred_check
          %p1040 = pneg %p214
        $region66: #{tspnet_forward.2} parent=51 // pred_check_branch
          %1042 = sbr.rel (%p1040) target = $region68
        $region67: #{tspnet_forward.2} parent=51 // pred_region
          _
        $region68: #{tspnet_forward.2} parent=51 // pred_fallthru
          _
        // Predicated region
        $region69: #{tspnet_forward.2} parent=51 // pred_check
          %p1043 = pneg %p240
        $region70: #{tspnet_forward.2} parent=51 // pred_check_branch
          %1045 = sbr.rel (%p1043) target = $region72
        $region71: #{tspnet_forward.2} parent=51 // pred_region
          _
        $region72: #{tspnet_forward.2} parent=51 // pred_fallthru
          _
      $region52: #{tspnet_forward.2} parent=5 // pred_fallthru
        _
      %p1046 = scmp.le.s32.totalorder 2, %s18
      // Predicated region
      $region73: #{tspnet_forward.2} parent=5 // pred_check
        %p1047 = pneg %p1046
      $region74: #{tspnet_forward.2} parent=5 // pred_check_branch
        %1049 = sbr.rel (%p1047) target = $region76
      $region75: #{tspnet_forward.2} parent=5 // pred_region
        %s1050 = ssub.s32 %s18, 2
        // Predicated region
        $region77: #{tspnet_forward.2} parent=75 // pred_check
          %p1051 = pneg %p220
        $region78: #{tspnet_forward.2} parent=75 // pred_check_branch
          %1053 = sbr.rel (%p1051) target = $region80
        $region79: #{tspnet_forward.2} parent=75 // pred_region
          %p1054 = scmp.lt.s32.totalorder %s24, 7
          %s1055 = scalar_select %p1054, %s24, 7
          %s1056 = smul.addr %s1055, 2
          %s1057 = scalar_lea.vmem %s8, %s1056
        $region80: #{tspnet_forward.2} parent=75 // pred_fallthru
          _
        // Predicated region
        $region81: #{tspnet_forward.2} parent=75 // pred_check
          %p1058 = pneg %p246
        $region82: #{tspnet_forward.2} parent=75 // pred_check_branch
          %1060 = sbr.rel (%p1058) target = $region84
        $region83: #{tspnet_forward.2} parent=75 // pred_region
          %p1061 = scmp.lt.s32.totalorder %s24, 7
          %s1062 = scalar_select %p1061, %s24, 7
          %s1063 = scalar_lea.vmem %s9, %s1062
        $region84: #{tspnet_forward.2} parent=75 // pred_fallthru
          _
      $region76: #{tspnet_forward.2} parent=5 // pred_fallthru
        _
    $region6: #{tspnet_forward.2} parent=1 // loop_footer
      %s22 = sadd.s32 1, %s18
    $region7: #{tspnet_forward.2} parent=1 // loop_footer_branch
      %17 = sbr.rel target = $region3
    $region8: #{tspnet_forward.2} parent=1 // loop_exit
      _
    %1064 = vsyncpa [#allocation5], 1
    %s1065 = scalar_lea.sflag [#allocation5], 1
    %1066 = vsyncpa %s1065, 1
    %1067 = vsyncpa [#allocation7], 1

</llo_original>
